<compile_context>
chip_gen: v6e
topology: v6e:2x2x1
jax: 0.10.0
libtpu: 0.0.40
codegen_flags: <defaults>
</compile_context>

<pallas_src>
import functools

import jax
import jax.numpy as jnp
from jax import lax
from jax.experimental import pallas as pl
from jax.experimental.pallas import tpu as pltpu


def _round_up(x, m):
    return (x + m - 1) // m * m


def _vmem_limit(nbytes):
    # Actual need with generous headroom; stays far under v7x's 64 MiB physical.
    return int(min(96 * 1024 * 1024, max(4 * 1024 * 1024, 2 * nbytes + (2 << 20))))


# (kernel, stride, out_channels) for the three Nature-DQN conv layers.
_CONV_CFG = ((8, 4, 32), (4, 2, 64), (3, 1, 64))


# ----------------------------- Pallas kernels --------------------------------
def _conv_tap_gemm_kernel(x_ref, w_ref, b_ref, o_ref, *, tap_offsets, rows):
    # x_ref: (1, Rp, K)   bf16  one sample's space-to-depth rows (+ halo padding)
    # w_ref: (T, K, Cout) bf16  per-tap weights, VMEM resident across the grid
    # b_ref: (1, Cout)    f32
    # o_ref: (1, Ro, Cout) bf16
    acc = None
    for t, off in enumerate(tap_offsets):          # static unrolled tap loop
        xt = x_ref[0, off:off + rows, :]           # static contiguous slice
        part = jnp.dot(xt, w_ref[t], preferred_element_type=jnp.float32)
        acc = part if acc is None else acc + part
    acc = jnp.maximum(acc + b_ref[...], 0.0)       # bias + ReLU epilogue in f32
    o_ref[0] = acc.astype(o_ref.dtype)


def _mlp_head_kernel(x_ref, w1_ref, b1_ref, w2_ref, b2_ref, o_ref):
    # Fused Linear(hidden) + ReLU + Linear(action); hidden never leaves VMEM.
    h = jnp.dot(x_ref[...], w1_ref[...], preferred_element_type=jnp.float32)
    h = jnp.maximum(h + b1_ref[...], 0.0)
    o = jnp.dot(h.astype(jnp.bfloat16), w2_ref[...],
                preferred_element_type=jnp.float32)
    o_ref[...] = o + b2_ref[...]


# ------------------------------ conv wrapper ----------------------------------
def conv2d_relu(x, w_taps, b2, *, kh, kw, stride):
    """Valid conv + ReLU.

    x:      (N, H, W, C) bf16 NHWC activation.
    w_taps: (T, stride*stride*C, Cout) bf16 tap-major weights (see prepare_params).
    b2:     (1, Cout) f32 bias.
    Returns (N, Ho, Wo, Cout) bf16.
    """
    N, H, W, C = x.shape
    s = stride
    Ho = (H - kh) // s + 1
    Wo = (W - kw) // s + 1
    T, K, cout = w_taps.shape
    khq = -(-kh // s)
    kwq = -(-kw // s)

    # --- space-to-depth: stride-s conv becomes a stride-1 conv on (Hq, Wq) ---
    Hp, Wp = _round_up(H, s), _round_up(W, s)
    if (Hp, Wp) != (H, W):
        x = jnp.pad(x, ((0, 0), (0, Hp - H), (0, Wp - W), (0, 0)))
    Hq, Wq = Hp // s, Wp // s
    if s > 1:
        x = x.reshape(N, Hq, s, Wq, s, C).transpose(0, 1, 3, 2, 4, 5)
    R = Hq * Wq
    x2 = x.reshape(N, R, K)

    # Per-tap row offsets in the flattened (Hq*Wq) grid; halo rows are padded so
    # every static slice stays in bounds (only discarded edge rows read them).
    tap_offsets = tuple(di * Wq + dj for di in range(khq) for dj in range(kwq))
    Ro = _round_up(R, 16)                              # compute rows (>= valid rows)
    Rp = _round_up(Ro + tap_offsets[-1], 16)           # input rows incl. halo
    x2 = jnp.pad(x2, ((0, 0), (0, Rp - R), (0, 0)))

    flops = 2 * N * Ho * Wo * kh * kw * C * cout
    bytes_accessed = x2.size * 2 + w_taps.size * 2 + b2.size * 4 + N * Ro * cout * 2

    out = pl.pallas_call(
        functools.partial(_conv_tap_gemm_kernel, tap_offsets=tap_offsets, rows=Ro),
        out_shape=jax.ShapeDtypeStruct((N, Ro, cout), jnp.bfloat16),
        grid_spec=pltpu.PrefetchScalarGridSpec(
            num_scalar_prefetch=0,
            grid=(N,),                                               # one sample/step
            in_specs=[
                pl.BlockSpec((1, Rp, K), lambda n: (n, 0, 0)),       # activation
                pl.BlockSpec((T, K, cout), lambda n: (0, 0, 0)),     # weights resident
                pl.BlockSpec((1, cout), lambda n: (0, 0)),           # bias resident
            ],
            out_specs=pl.BlockSpec((1, Ro, cout), lambda n: (n, 0, 0)),
        ),
        compiler_params=pltpu.CompilerParams(
            dimension_semantics=("parallel",),                       # megacore on v7x
            vmem_limit_bytes=_vmem_limit(
                2 * (Rp * K + Ro * cout) * 2 + w_taps.size * 2 + b2.size * 4
                + Ro * cout * 4),
        ),
        cost_estimate=pl.CostEstimate(
            flops=flops, transcendentals=0, bytes_accessed=bytes_accessed),
    )(x2, w_taps, b2)

    # All Hq*Wq positions were computed; keep only the valid Ho x Wo window.
    return out[:, :R, :].reshape(N, Hq, Wq, cout)[:, :Ho, :Wo, :]


# ------------------------------ MLP head --------------------------------------
def mlp_head(x, w1, b1, w2, b2, *, tm_cap=256):
    """Fused Linear(hidden) + ReLU + Linear(action), M-tiled over the batch."""
    M, K = x.shape
    H = w1.shape[1]
    A = w2.shape[1]

    nt = max(1, -(-M // tm_cap))
    tm = _round_up(-(-M // nt), 16)          # adaptive tile, multiple of 16 rows
    Mp = tm * nt
    xb = jnp.pad(x, ((0, Mp - M), (0, 0))).astype(jnp.bfloat16)

    out = pl.pallas_call(
        _mlp_head_kernel,
        out_shape=jax.ShapeDtypeStruct((Mp, A), jnp.float32),
        grid_spec=pltpu.PrefetchScalarGridSpec(
            num_scalar_prefetch=0,
            grid=(nt,),
            in_specs=[
                pl.BlockSpec((tm, K), lambda i: (i, 0)),     # activation tile
                pl.BlockSpec((K, H), lambda i: (0, 0)),      # weights resident
                pl.BlockSpec((1, H), lambda i: (0, 0)),
                pl.BlockSpec((H, A), lambda i: (0, 0)),
                pl.BlockSpec((1, A), lambda i: (0, 0)),
            ],
            out_specs=pl.BlockSpec((tm, A), lambda i: (i, 0)),
        ),
        compiler_params=pltpu.CompilerParams(
            dimension_semantics=("parallel",),
            vmem_limit_bytes=_vmem_limit(
                2 * (tm * K * 2 + tm * A * 4) + (K * H + H * A) * 2
                + (H + A) * 4 + tm * H * 4),
        ),
        cost_estimate=pl.CostEstimate(
            flops=2 * M * K * H + 2 * M * H * A,
            transcendentals=0,
            bytes_accessed=xb.size * 2 + (w1.size + w2.size) * 2
            + (b1.size + b2.size) * 4 + M * A * 4),
    )(xb, w1, b1, w2, b2)
    return out[:M]


# ------------------------------ parameters ------------------------------------
def _conv_out(x, k, s):
    return (x - k) // s + 1


def init_params(input_size, action_size, hidden_size=512, seed=0):
    """Raw f32 params: conv weights HWIO, linear weights (in, out).
    The flatten feeding wl1 is (C, H, W)-major, matching PyTorch's nn.Flatten."""
    c, h, w = input_size
    for k, s, _ in _CONV_CFG:
        h, w = _conv_out(h, k, s), _conv_out(w, k, s)
    flat = _CONV_CFG[-1][2] * h * w

    keys = jax.random.split(jax.random.PRNGKey(seed), 10)
    sc = 0.05
    params = {}
    cin = c
    for li, (k, s, cout) in enumerate(_CONV_CFG, start=1):
        params[f"w{li}"] = jax.random.normal(keys[2 * li - 2], (k, k, cin, cout),
                                             jnp.float32) * sc
        params[f"b{li}"] = jax.random.normal(keys[2 * li - 1], (cout,),
                                             jnp.float32) * sc
        cin = cout
    params["wl1"] = jax.random.normal(keys[6], (flat, hidden_size), jnp.float32) * sc
    params["bl1"] = jax.random.normal(keys[7], (hidden_size,), jnp.float32) * sc
    params["wl2"] = jax.random.normal(keys[8], (hidden_size, action_size),
                                      jnp.float32) * sc
    params["bl2"] = jax.random.normal(keys[9], (action_size,), jnp.float32) * sc
    return params


def _space_to_depth_weight(w, stride):
    """(kh, kw, C, Cout) f32 -> (T, stride*stride*C, Cout) bf16 tap-major weights
    for the equivalent stride-1 conv over the space-to-depth input."""
    kh, kw, c, cout = w.shape
    s = stride
    khq, kwq = -(-kh // s), -(-kw // s)
    w = jnp.pad(w, ((0, khq * s - kh), (0, kwq * s - kw), (0, 0), (0, 0)))
    w = w.reshape(khq, s, kwq, s, c, cout).transpose(0, 2, 1, 3, 4, 5)
    return w.reshape(khq * kwq, s * s * c, cout).astype(jnp.bfloat16)


def prepare_params(params):
    """One-time conversion to kernel-ready layout/dtype (bf16 weights, 2-D f32
    biases): no per-step weight pad/cast ops remain in the forward pass."""
    kp = {}
    for li, (k, s, _) in enumerate(_CONV_CFG, start=1):
        kp[f"w{li}"] = _space_to_depth_weight(params[f"w{li}"], s)
        kp[f"b{li}"] = params[f"b{li}"].astype(jnp.float32).reshape(1, -1)
    kp["wl1"] = params["wl1"].astype(jnp.bfloat16)
    kp["bl1"] = params["bl1"].astype(jnp.float32).reshape(1, -1)
    kp["wl2"] = params["wl2"].astype(jnp.bfloat16)
    kp["bl2"] = params["bl2"].astype(jnp.float32).reshape(1, -1)
    return kp


# ------------------------------ forward ---------------------------------------
def nature_paper_conv_forward(kparams, x_nchw):
    """x_nchw: (N, C, H, W) f32 (PyTorch convention) -> (N, action_size) f32."""
    x = jnp.transpose(x_nchw, (0, 2, 3, 1)).astype(jnp.bfloat16)   # NCHW -> NHWC
    for li, (k, s, _) in enumerate(_CONV_CFG, start=1):
        x = conv2d_relu(x, kparams[f"w{li}"], kparams[f"b{li}"], kh=k, kw=k, stride=s)
    n = x.shape[0]
    # Flatten in (C, H, W)-major order to match PyTorch nn.Flatten on NCHW.
    x = jnp.transpose(x, (0, 3, 1, 2)).reshape(n, -1)
    return mlp_head(x, kparams["wl1"], kparams["bl1"], kparams["wl2"], kparams["bl2"])


# ------------------------- pure-JAX reference (XLA) ---------------------------
def reference_forward(params, x_nchw):
    """Reference with the same bf16 quantization points as the Pallas kernels."""
    q = lambda a: a.astype(jnp.bfloat16).astype(jnp.float32)
    x = q(jnp.transpose(x_nchw, (0, 2, 3, 1)))
    for li, (k, s, _) in enumerate(_CONV_CFG, start=1):
        w = q(params[f"w{li}"])
        x = lax.conv_general_dilated(x, w, window_strides=(s, s), padding="VALID",
                                     dimension_numbers=("NHWC", "HWIO", "NHWC"))
        x = q(jnp.maximum(x + params[f"b{li}"], 0.0))
    n = x.shape[0]
    x = jnp.transpose(x, (0, 3, 1, 2)).reshape(n, -1)
    h = q(jnp.maximum(x @ q(params["wl1"]) + params["bl1"], 0.0))
    return h @ q(params["wl2"]) + params["bl2"]


if __name__ == "__main__":
    # Smallest valid shapes: 36x36 input gives conv spatial outputs 8 -> 3 -> 1.
    batch, input_size, action_size = 2, (4, 36, 36), 6

    params = init_params(input_size, action_size, hidden_size=512, seed=0)
    kparams = prepare_params(params)                     # one-time weight prep
    x = jax.random.normal(jax.random.PRNGKey(0), (batch,) + input_size,
                          dtype=jnp.float32)

    fwd = jax.jit(nature_paper_conv_forward)
    out = fwd(kparams, x)
    jax.block_until_ready(out)

    assert out.shape == (batch, action_size), out.shape
    assert out.dtype == jnp.float32

    ref = reference_forward(params, x)
    max_diff = float(jnp.max(jnp.abs(out - ref)))
    assert jnp.allclose(out, ref, atol=1e-2, rtol=1e-2), max_diff

    print("KERNEL_OK")
</pallas_src>

<mosaic_0001>
module attributes {stable_mosaic.version = 11 : i64} {
  func.func @_conv_tap_gemm_kernel(%arg0: i32, %arg1: memref<1x112x64xbf16, #tpu.memory_space<vmem>>, %arg2: memref<4x64x32xbf16, #tpu.memory_space<vmem>>, %arg3: memref<1x32xf32, #tpu.memory_space<vmem>>, %arg4: memref<1x96x32xbf16, #tpu.memory_space<vmem>>) attributes {dimension_semantics = [#tpu.dimension_semantics<parallel>], iteration_bounds = array<i64: 2>, scalar_prefetch = 0 : i64, scratch_operands = 0 : i64, tpu.core_type = #tpu.core_type<tc>, window_params = [{transform_indices = @transform_0, window_bounds = array<i64: 1, 112, 64>}, {pipeline_mode = #tpu.pipeline_mode<synchronous>, transform_indices = @transform_1, window_bounds = array<i64: 4, 64, 32>}, {pipeline_mode = #tpu.pipeline_mode<synchronous>, transform_indices = @transform_2, window_bounds = array<i64: 1, 32>}, {transform_indices = @transform_3, window_bounds = array<i64: 1, 96, 32>}]} {
    %c0 = arith.constant 0 : index
    %c0_0 = arith.constant 0 : index
    %c0_1 = arith.constant 0 : index
    %0 = vector.load %arg1[%c0, %c0_0, %c0_1] : memref<1x112x64xbf16, #tpu.memory_space<vmem>>, vector<1x96x64xbf16>
    %1 = vector.shape_cast %0 : vector<1x96x64xbf16> to vector<96x64xbf16>
    %c0_2 = arith.constant 0 : index
    %c0_3 = arith.constant 0 : index
    %c0_4 = arith.constant 0 : index
    %2 = vector.load %arg2[%c0_2, %c0_3, %c0_4] : memref<4x64x32xbf16, #tpu.memory_space<vmem>>, vector<1x64x32xbf16>
    %3 = vector.shape_cast %2 : vector<1x64x32xbf16> to vector<64x32xbf16>
    %cst = arith.constant dense<0.000000e+00> : vector<96x32xf32>
    %4 = tpu.matmul %1, %3, %cst {dimension_numbers = #tpu.dot_dimension_numbers<[1], [0], [0], [1], [0, 0, 1, 1], [], []>} : vector<96x64xbf16>, vector<64x32xbf16>, vector<96x32xf32> -> vector<96x32xf32>
    %c0_5 = arith.constant 0 : index
    %c1 = arith.constant 1 : index
    %c0_6 = arith.constant 0 : index
    %5 = vector.load %arg1[%c0_5, %c1, %c0_6] : memref<1x112x64xbf16, #tpu.memory_space<vmem>>, vector<1x96x64xbf16>
    %6 = vector.shape_cast %5 : vector<1x96x64xbf16> to vector<96x64xbf16>
    %c1_7 = arith.constant 1 : index
    %c0_8 = arith.constant 0 : index
    %c0_9 = arith.constant 0 : index
    %7 = vector.load %arg2[%c1_7, %c0_8, %c0_9] : memref<4x64x32xbf16, #tpu.memory_space<vmem>>, vector<1x64x32xbf16>
    %8 = vector.shape_cast %7 : vector<1x64x32xbf16> to vector<64x32xbf16>
    %cst_10 = arith.constant dense<0.000000e+00> : vector<96x32xf32>
    %9 = tpu.matmul %6, %8, %cst_10 {dimension_numbers = #tpu.dot_dimension_numbers<[1], [0], [0], [1], [0, 0, 1, 1], [], []>} : vector<96x64xbf16>, vector<64x32xbf16>, vector<96x32xf32> -> vector<96x32xf32>
    %10 = arith.addf %4, %9 : vector<96x32xf32>
    %c0_11 = arith.constant 0 : index
    %c9 = arith.constant 9 : index
    %c0_12 = arith.constant 0 : index
    %11 = vector.load %arg1[%c0_11, %c9, %c0_12] : memref<1x112x64xbf16, #tpu.memory_space<vmem>>, vector<1x96x64xbf16>
    %12 = vector.shape_cast %11 : vector<1x96x64xbf16> to vector<96x64xbf16>
    %c2 = arith.constant 2 : index
    %c0_13 = arith.constant 0 : index
    %c0_14 = arith.constant 0 : index
    %13 = vector.load %arg2[%c2, %c0_13, %c0_14] : memref<4x64x32xbf16, #tpu.memory_space<vmem>>, vector<1x64x32xbf16>
    %14 = vector.shape_cast %13 : vector<1x64x32xbf16> to vector<64x32xbf16>
    %cst_15 = arith.constant dense<0.000000e+00> : vector<96x32xf32>
    %15 = tpu.matmul %12, %14, %cst_15 {dimension_numbers = #tpu.dot_dimension_numbers<[1], [0], [0], [1], [0, 0, 1, 1], [], []>} : vector<96x64xbf16>, vector<64x32xbf16>, vector<96x32xf32> -> vector<96x32xf32>
    %16 = arith.addf %10, %15 : vector<96x32xf32>
    %c0_16 = arith.constant 0 : index
    %c10 = arith.constant 10 : index
    %c0_17 = arith.constant 0 : index
    %17 = vector.load %arg1[%c0_16, %c10, %c0_17] : memref<1x112x64xbf16, #tpu.memory_space<vmem>>, vector<1x96x64xbf16>
    %18 = vector.shape_cast %17 : vector<1x96x64xbf16> to vector<96x64xbf16>
    %c3 = arith.constant 3 : index
    %c0_18 = arith.constant 0 : index
    %c0_19 = arith.constant 0 : index
    %19 = vector.load %arg2[%c3, %c0_18, %c0_19] : memref<4x64x32xbf16, #tpu.memory_space<vmem>>, vector<1x64x32xbf16>
    %20 = vector.shape_cast %19 : vector<1x64x32xbf16> to vector<64x32xbf16>
    %cst_20 = arith.constant dense<0.000000e+00> : vector<96x32xf32>
    %21 = tpu.matmul %18, %20, %cst_20 {dimension_numbers = #tpu.dot_dimension_numbers<[1], [0], [0], [1], [0, 0, 1, 1], [], []>} : vector<96x64xbf16>, vector<64x32xbf16>, vector<96x32xf32> -> vector<96x32xf32>
    %22 = arith.addf %16, %21 : vector<96x32xf32>
    %c0_21 = arith.constant 0 : index
    %c0_22 = arith.constant 0 : index
    %23 = vector.load %arg3[%c0_21, %c0_22] : memref<1x32xf32, #tpu.memory_space<vmem>>, vector<1x32xf32>
    %24 = vector.broadcast %23 : vector<1x32xf32> to vector<96x32xf32>
    %25 = arith.addf %22, %24 : vector<96x32xf32>
    %cst_23 = arith.constant 0.000000e+00 : f32
    %26 = vector.broadcast %cst_23 : f32 to vector<96x32xf32>
    %27 = arith.maximumf %25, %26 : vector<96x32xf32>
    %28 = arith.truncf %27 : vector<96x32xf32> to vector<96x32xbf16>
    %c0_24 = arith.constant 0 : index
    %c0_25 = arith.constant 0 : index
    %c0_26 = arith.constant 0 : index
    %29 = vector.load %arg4[%c0_24, %c0_25, %c0_26] : memref<1x96x32xbf16, #tpu.memory_space<vmem>>, vector<1x96x32xbf16>
    %30 = vector.shape_cast %29 : vector<1x96x32xbf16> to vector<96x32xbf16>
    %31 = vector.shape_cast %28 : vector<96x32xbf16> to vector<1x96x32xbf16>
    tpu.vector_store %arg4[%c0_24, %c0_25, %c0_26], %31 {strides = array<i32>} : memref<1x96x32xbf16, #tpu.memory_space<vmem>>, vector<1x96x32xbf16>,
    return
  }
  func.func @transform_0(%arg0: i32) -> (i32, i32, i32) {
    %c0_i32 = arith.constant 0 : i32
    %c0_i32_0 = arith.constant 0 : i32
    %c0_i32_1 = arith.constant 0 : i32
    return %arg0, %c0_i32, %c0_i32_0 : i32, i32, i32
  }
  func.func @transform_1(%arg0: i32) -> (i32, i32, i32) {
    %c0_i32 = arith.constant 0 : i32
    %c0_i32_0 = arith.constant 0 : i32
    %c0_i32_1 = arith.constant 0 : i32
    %c0_i32_2 = arith.constant 0 : i32
    return %c0_i32, %c0_i32_0, %c0_i32_1 : i32, i32, i32
  }
  func.func @transform_2(%arg0: i32) -> (i32, i32) {
    %c0_i32 = arith.constant 0 : i32
    %c0_i32_0 = arith.constant 0 : i32
    %c0_i32_1 = arith.constant 0 : i32
    return %c0_i32, %c0_i32_0 : i32, i32
  }
  func.func @transform_3(%arg0: i32) -> (i32, i32, i32) {
    %c0_i32 = arith.constant 0 : i32
    %c0_i32_0 = arith.constant 0 : i32
    %c0_i32_1 = arith.constant 0 : i32
    return %arg0, %c0_i32, %c0_i32_0 : i32, i32, i32
  }
}

module attributes {stable_mosaic.version = 11 : i64} {
  func.func @_conv_tap_gemm_kernel(%arg0: i32, %arg1: memref<1x32x128xbf16, #tpu.memory_space<vmem>>, %arg2: memref<4x128x64xbf16, #tpu.memory_space<vmem>>, %arg3: memref<1x64xf32, #tpu.memory_space<vmem>>, %arg4: memref<1x16x64xbf16, #tpu.memory_space<vmem>>) attributes {dimension_semantics = [#tpu.dimension_semantics<parallel>], iteration_bounds = array<i64: 2>, scalar_prefetch = 0 : i64, scratch_operands = 0 : i64, tpu.core_type = #tpu.core_type<tc>, window_params = [{transform_indices = @transform_0, window_bounds = array<i64: 1, 32, 128>}, {pipeline_mode = #tpu.pipeline_mode<synchronous>, transform_indices = @transform_1, window_bounds = array<i64: 4, 128, 64>}, {pipeline_mode = #tpu.pipeline_mode<synchronous>, transform_indices = @transform_2, window_bounds = array<i64: 1, 64>}, {transform_indices = @transform_3, window_bounds = array<i64: 1, 16, 64>}]} {
    %c0 = arith.constant 0 : index
    %c0_0 = arith.constant 0 : index
    %c0_1 = arith.constant 0 : index
    %0 = vector.load %arg1[%c0, %c0_0, %c0_1] : memref<1x32x128xbf16, #tpu.memory_space<vmem>>, vector<1x16x128xbf16>
    %1 = vector.shape_cast %0 : vector<1x16x128xbf16> to vector<16x128xbf16>
    %c0_2 = arith.constant 0 : index
    %c0_3 = arith.constant 0 : index
    %c0_4 = arith.constant 0 : index
    %2 = vector.load %arg2[%c0_2, %c0_3, %c0_4] : memref<4x128x64xbf16, #tpu.memory_space<vmem>>, vector<1x128x64xbf16>
    %3 = vector.shape_cast %2 : vector<1x128x64xbf16> to vector<128x64xbf16>
    %cst = arith.constant dense<0.000000e+00> : vector<16x64xf32>
    %4 = tpu.matmul %1, %3, %cst {dimension_numbers = #tpu.dot_dimension_numbers<[1], [0], [0], [1], [0, 0, 1, 1], [], []>} : vector<16x128xbf16>, vector<128x64xbf16>, vector<16x64xf32> -> vector<16x64xf32>
    %c0_5 = arith.constant 0 : index
    %c1 = arith.constant 1 : index
    %c0_6 = arith.constant 0 : index
    %5 = vector.load %arg1[%c0_5, %c1, %c0_6] : memref<1x32x128xbf16, #tpu.memory_space<vmem>>, vector<1x16x128xbf16>
    %6 = vector.shape_cast %5 : vector<1x16x128xbf16> to vector<16x128xbf16>
    %c1_7 = arith.constant 1 : index
    %c0_8 = arith.constant 0 : index
    %c0_9 = arith.constant 0 : index
    %7 = vector.load %arg2[%c1_7, %c0_8, %c0_9] : memref<4x128x64xbf16, #tpu.memory_space<vmem>>, vector<1x128x64xbf16>
    %8 = vector.shape_cast %7 : vector<1x128x64xbf16> to vector<128x64xbf16>
    %cst_10 = arith.constant dense<0.000000e+00> : vector<16x64xf32>
    %9 = tpu.matmul %6, %8, %cst_10 {dimension_numbers = #tpu.dot_dimension_numbers<[1], [0], [0], [1], [0, 0, 1, 1], [], []>} : vector<16x128xbf16>, vector<128x64xbf16>, vector<16x64xf32> -> vector<16x64xf32>
    %10 = arith.addf %4, %9 : vector<16x64xf32>
    %c0_11 = arith.constant 0 : index
    %c4 = arith.constant 4 : index
    %c0_12 = arith.constant 0 : index
    %11 = vector.load %arg1[%c0_11, %c4, %c0_12] : memref<1x32x128xbf16, #tpu.memory_space<vmem>>, vector<1x16x128xbf16>
    %12 = vector.shape_cast %11 : vector<1x16x128xbf16> to vector<16x128xbf16>
    %c2 = arith.constant 2 : index
    %c0_13 = arith.constant 0 : index
    %c0_14 = arith.constant 0 : index
    %13 = vector.load %arg2[%c2, %c0_13, %c0_14] : memref<4x128x64xbf16, #tpu.memory_space<vmem>>, vector<1x128x64xbf16>
    %14 = vector.shape_cast %13 : vector<1x128x64xbf16> to vector<128x64xbf16>
    %cst_15 = arith.constant dense<0.000000e+00> : vector<16x64xf32>
    %15 = tpu.matmul %12, %14, %cst_15 {dimension_numbers = #tpu.dot_dimension_numbers<[1], [0], [0], [1], [0, 0, 1, 1], [], []>} : vector<16x128xbf16>, vector<128x64xbf16>, vector<16x64xf32> -> vector<16x64xf32>
    %16 = arith.addf %10, %15 : vector<16x64xf32>
    %c0_16 = arith.constant 0 : index
    %c5 = arith.constant 5 : index
    %c0_17 = arith.constant 0 : index
    %17 = vector.load %arg1[%c0_16, %c5, %c0_17] : memref<1x32x128xbf16, #tpu.memory_space<vmem>>, vector<1x16x128xbf16>
    %18 = vector.shape_cast %17 : vector<1x16x128xbf16> to vector<16x128xbf16>
    %c3 = arith.constant 3 : index
    %c0_18 = arith.constant 0 : index
    %c0_19 = arith.constant 0 : index
    %19 = vector.load %arg2[%c3, %c0_18, %c0_19] : memref<4x128x64xbf16, #tpu.memory_space<vmem>>, vector<1x128x64xbf16>
    %20 = vector.shape_cast %19 : vector<1x128x64xbf16> to vector<128x64xbf16>
    %cst_20 = arith.constant dense<0.000000e+00> : vector<16x64xf32>
    %21 = tpu.matmul %18, %20, %cst_20 {dimension_numbers = #tpu.dot_dimension_numbers<[1], [0], [0], [1], [0, 0, 1, 1], [], []>} : vector<16x128xbf16>, vector<128x64xbf16>, vector<16x64xf32> -> vector<16x64xf32>
    %22 = arith.addf %16, %21 : vector<16x64xf32>
    %c0_21 = arith.constant 0 : index
    %c0_22 = arith.constant 0 : index
    %23 = vector.load %arg3[%c0_21, %c0_22] : memref<1x64xf32, #tpu.memory_space<vmem>>, vector<1x64xf32>
    %24 = vector.broadcast %23 : vector<1x64xf32> to vector<16x64xf32>
    %25 = arith.addf %22, %24 : vector<16x64xf32>
    %cst_23 = arith.constant 0.000000e+00 : f32
    %26 = vector.broadcast %cst_23 : f32 to vector<16x64xf32>
    %27 = arith.maximumf %25, %26 : vector<16x64xf32>
    %28 = arith.truncf %27 : vector<16x64xf32> to vector<16x64xbf16>
    %c0_24 = arith.constant 0 : index
    %c0_25 = arith.constant 0 : index
    %c0_26 = arith.constant 0 : index
    %29 = vector.load %arg4[%c0_24, %c0_25, %c0_26] : memref<1x16x64xbf16, #tpu.memory_space<vmem>>, vector<1x16x64xbf16>
    %30 = vector.shape_cast %29 : vector<1x16x64xbf16> to vector<16x64xbf16>
    %31 = vector.shape_cast %28 : vector<16x64xbf16> to vector<1x16x64xbf16>
    tpu.vector_store %arg4[%c0_24, %c0_25, %c0_26], %31 {strides = array<i32>} : memref<1x16x64xbf16, #tpu.memory_space<vmem>>, vector<1x16x64xbf16>,
    return
  }
  func.func @transform_0(%arg0: i32) -> (i32, i32, i32) {
    %c0_i32 = arith.constant 0 : i32
    %c0_i32_0 = arith.constant 0 : i32
    %c0_i32_1 = arith.constant 0 : i32
    return %arg0, %c0_i32, %c0_i32_0 : i32, i32, i32
  }
  func.func @transform_1(%arg0: i32) -> (i32, i32, i32) {
    %c0_i32 = arith.constant 0 : i32
    %c0_i32_0 = arith.constant 0 : i32
    %c0_i32_1 = arith.constant 0 : i32
    %c0_i32_2 = arith.constant 0 : i32
    return %c0_i32, %c0_i32_0, %c0_i32_1 : i32, i32, i32
  }
  func.func @transform_2(%arg0: i32) -> (i32, i32) {
    %c0_i32 = arith.constant 0 : i32
    %c0_i32_0 = arith.constant 0 : i32
    %c0_i32_1 = arith.constant 0 : i32
    return %c0_i32, %c0_i32_0 : i32, i32
  }
  func.func @transform_3(%arg0: i32) -> (i32, i32, i32) {
    %c0_i32 = arith.constant 0 : i32
    %c0_i32_0 = arith.constant 0 : i32
    %c0_i32_1 = arith.constant 0 : i32
    return %arg0, %c0_i32, %c0_i32_0 : i32, i32, i32
  }
}

module attributes {stable_mosaic.version = 11 : i64} {
  func.func @_conv_tap_gemm_kernel(%arg0: i32, %arg1: memref<1x32x64xbf16, #tpu.memory_space<vmem>>, %arg2: memref<9x64x64xbf16, #tpu.memory_space<vmem>>, %arg3: memref<1x64xf32, #tpu.memory_space<vmem>>, %arg4: memref<1x16x64xbf16, #tpu.memory_space<vmem>>) attributes {dimension_semantics = [#tpu.dimension_semantics<parallel>], iteration_bounds = array<i64: 2>, scalar_prefetch = 0 : i64, scratch_operands = 0 : i64, tpu.core_type = #tpu.core_type<tc>, window_params = [{transform_indices = @transform_0, window_bounds = array<i64: 1, 32, 64>}, {pipeline_mode = #tpu.pipeline_mode<synchronous>, transform_indices = @transform_1, window_bounds = array<i64: 9, 64, 64>}, {pipeline_mode = #tpu.pipeline_mode<synchronous>, transform_indices = @transform_2, window_bounds = array<i64: 1, 64>}, {transform_indices = @transform_3, window_bounds = array<i64: 1, 16, 64>}]} {
    %c0 = arith.constant 0 : index
    %c0_0 = arith.constant 0 : index
    %c0_1 = arith.constant 0 : index
    %0 = vector.load %arg1[%c0, %c0_0, %c0_1] : memref<1x32x64xbf16, #tpu.memory_space<vmem>>, vector<1x16x64xbf16>
    %1 = vector.shape_cast %0 : vector<1x16x64xbf16> to vector<16x64xbf16>
    %c0_2 = arith.constant 0 : index
    %c0_3 = arith.constant 0 : index
    %c0_4 = arith.constant 0 : index
    %2 = vector.load %arg2[%c0_2, %c0_3, %c0_4] : memref<9x64x64xbf16, #tpu.memory_space<vmem>>, vector<1x64x64xbf16>
    %3 = vector.shape_cast %2 : vector<1x64x64xbf16> to vector<64x64xbf16>
    %cst = arith.constant dense<0.000000e+00> : vector<16x64xf32>
    %4 = tpu.matmul %1, %3, %cst {dimension_numbers = #tpu.dot_dimension_numbers<[1], [0], [0], [1], [0, 0, 1, 1], [], []>} : vector<16x64xbf16>, vector<64x64xbf16>, vector<16x64xf32> -> vector<16x64xf32>
    %c0_5 = arith.constant 0 : index
    %c1 = arith.constant 1 : index
    %c0_6 = arith.constant 0 : index
    %5 = vector.load %arg1[%c0_5, %c1, %c0_6] : memref<1x32x64xbf16, #tpu.memory_space<vmem>>, vector<1x16x64xbf16>
    %6 = vector.shape_cast %5 : vector<1x16x64xbf16> to vector<16x64xbf16>
    %c1_7 = arith.constant 1 : index
    %c0_8 = arith.constant 0 : index
    %c0_9 = arith.constant 0 : index
    %7 = vector.load %arg2[%c1_7, %c0_8, %c0_9] : memref<9x64x64xbf16, #tpu.memory_space<vmem>>, vector<1x64x64xbf16>
    %8 = vector.shape_cast %7 : vector<1x64x64xbf16> to vector<64x64xbf16>
    %cst_10 = arith.constant dense<0.000000e+00> : vector<16x64xf32>
    %9 = tpu.matmul %6, %8, %cst_10 {dimension_numbers = #tpu.dot_dimension_numbers<[1], [0], [0], [1], [0, 0, 1, 1], [], []>} : vector<16x64xbf16>, vector<64x64xbf16>, vector<16x64xf32> -> vector<16x64xf32>
    %10 = arith.addf %4, %9 : vector<16x64xf32>
    %c0_11 = arith.constant 0 : index
    %c2 = arith.constant 2 : index
    %c0_12 = arith.constant 0 : index
    %11 = vector.load %arg1[%c0_11, %c2, %c0_12] : memref<1x32x64xbf16, #tpu.memory_space<vmem>>, vector<1x16x64xbf16>
    %12 = vector.shape_cast %11 : vector<1x16x64xbf16> to vector<16x64xbf16>
    %c2_13 = arith.constant 2 : index
    %c0_14 = arith.constant 0 : index
    %c0_15 = arith.constant 0 : index
    %13 = vector.load %arg2[%c2_13, %c0_14, %c0_15] : memref<9x64x64xbf16, #tpu.memory_space<vmem>>, vector<1x64x64xbf16>
    %14 = vector.shape_cast %13 : vector<1x64x64xbf16> to vector<64x64xbf16>
    %cst_16 = arith.constant dense<0.000000e+00> : vector<16x64xf32>
    %15 = tpu.matmul %12, %14, %cst_16 {dimension_numbers = #tpu.dot_dimension_numbers<[1], [0], [0], [1], [0, 0, 1, 1], [], []>} : vector<16x64xbf16>, vector<64x64xbf16>, vector<16x64xf32> -> vector<16x64xf32>
    %16 = arith.addf %10, %15 : vector<16x64xf32>
    %c0_17 = arith.constant 0 : index
    %c3 = arith.constant 3 : index
    %c0_18 = arith.constant 0 : index
    %17 = vector.load %arg1[%c0_17, %c3, %c0_18] : memref<1x32x64xbf16, #tpu.memory_space<vmem>>, vector<1x16x64xbf16>
    %18 = vector.shape_cast %17 : vector<1x16x64xbf16> to vector<16x64xbf16>
    %c3_19 = arith.constant 3 : index
    %c0_20 = arith.constant 0 : index
    %c0_21 = arith.constant 0 : index
    %19 = vector.load %arg2[%c3_19, %c0_20, %c0_21] : memref<9x64x64xbf16, #tpu.memory_space<vmem>>, vector<1x64x64xbf16>
    %20 = vector.shape_cast %19 : vector<1x64x64xbf16> to vector<64x64xbf16>
    %cst_22 = arith.constant dense<0.000000e+00> : vector<16x64xf32>
    %21 = tpu.matmul %18, %20, %cst_22 {dimension_numbers = #tpu.dot_dimension_numbers<[1], [0], [0], [1], [0, 0, 1, 1], [], []>} : vector<16x64xbf16>, vector<64x64xbf16>, vector<16x64xf32> -> vector<16x64xf32>
    %22 = arith.addf %16, %21 : vector<16x64xf32>
    %c0_23 = arith.constant 0 : index
    %c4 = arith.constant 4 : index
    %c0_24 = arith.constant 0 : index
    %23 = vector.load %arg1[%c0_23, %c4, %c0_24] : memref<1x32x64xbf16, #tpu.memory_space<vmem>>, vector<1x16x64xbf16>
    %24 = vector.shape_cast %23 : vector<1x16x64xbf16> to vector<16x64xbf16>
    %c4_25 = arith.constant 4 : index
    %c0_26 = arith.constant 0 : index
    %c0_27 = arith.constant 0 : index
    %25 = vector.load %arg2[%c4_25, %c0_26, %c0_27] : memref<9x64x64xbf16, #tpu.memory_space<vmem>>, vector<1x64x64xbf16>
    %26 = vector.shape_cast %25 : vector<1x64x64xbf16> to vector<64x64xbf16>
    %cst_28 = arith.constant dense<0.000000e+00> : vector<16x64xf32>
    %27 = tpu.matmul %24, %26, %cst_28 {dimension_numbers = #tpu.dot_dimension_numbers<[1], [0], [0], [1], [0, 0, 1, 1], [], []>} : vector<16x64xbf16>, vector<64x64xbf16>, vector<16x64xf32> -> vector<16x64xf32>
    %28 = arith.addf %22, %27 : vector<16x64xf32>
    %c0_29 = arith.constant 0 : index
    %c5 = arith.constant 5 : index
    %c0_30 = arith.constant 0 : index
    %29 = vector.load %arg1[%c0_29, %c5, %c0_30] : memref<1x32x64xbf16, #tpu.memory_space<vmem>>, vector<1x16x64xbf16>
    %30 = vector.shape_cast %29 : vector<1x16x64xbf16> to vector<16x64xbf16>
    %c5_31 = arith.constant 5 : index
    %c0_32 = arith.constant 0 : index
    %c0_33 = arith.constant 0 : index
    %31 = vector.load %arg2[%c5_31, %c0_32, %c0_33] : memref<9x64x64xbf16, #tpu.memory_space<vmem>>, vector<1x64x64xbf16>
    %32 = vector.shape_cast %31 : vector<1x64x64xbf16> to vector<64x64xbf16>
    %cst_34 = arith.constant dense<0.000000e+00> : vector<16x64xf32>
    %33 = tpu.matmul %30, %32, %cst_34 {dimension_numbers = #tpu.dot_dimension_numbers<[1], [0], [0], [1], [0, 0, 1, 1], [], []>} : vector<16x64xbf16>, vector<64x64xbf16>, vector<16x64xf32> -> vector<16x64xf32>
    %34 = arith.addf %28, %33 : vector<16x64xf32>
    %c0_35 = arith.constant 0 : index
    %c6 = arith.constant 6 : index
    %c0_36 = arith.constant 0 : index
    %35 = vector.load %arg1[%c0_35, %c6, %c0_36] : memref<1x32x64xbf16, #tpu.memory_space<vmem>>, vector<1x16x64xbf16>
    %36 = vector.shape_cast %35 : vector<1x16x64xbf16> to vector<16x64xbf16>
    %c6_37 = arith.constant 6 : index
    %c0_38 = arith.constant 0 : index
    %c0_39 = arith.constant 0 : index
    %37 = vector.load %arg2[%c6_37, %c0_38, %c0_39] : memref<9x64x64xbf16, #tpu.memory_space<vmem>>, vector<1x64x64xbf16>
    %38 = vector.shape_cast %37 : vector<1x64x64xbf16> to vector<64x64xbf16>
    %cst_40 = arith.constant dense<0.000000e+00> : vector<16x64xf32>
    %39 = tpu.matmul %36, %38, %cst_40 {dimension_numbers = #tpu.dot_dimension_numbers<[1], [0], [0], [1], [0, 0, 1, 1], [], []>} : vector<16x64xbf16>, vector<64x64xbf16>, vector<16x64xf32> -> vector<16x64xf32>
    %40 = arith.addf %34, %39 : vector<16x64xf32>
    %c0_41 = arith.constant 0 : index
    %c7 = arith.constant 7 : index
    %c0_42 = arith.constant 0 : index
    %41 = vector.load %arg1[%c0_41, %c7, %c0_42] : memref<1x32x64xbf16, #tpu.memory_space<vmem>>, vector<1x16x64xbf16>
    %42 = vector.shape_cast %41 : vector<1x16x64xbf16> to vector<16x64xbf16>
    %c7_43 = arith.constant 7 : index
    %c0_44 = arith.constant 0 : index
    %c0_45 = arith.constant 0 : index
    %43 = vector.load %arg2[%c7_43, %c0_44, %c0_45] : memref<9x64x64xbf16, #tpu.memory_space<vmem>>, vector<1x64x64xbf16>
    %44 = vector.shape_cast %43 : vector<1x64x64xbf16> to vector<64x64xbf16>
    %cst_46 = arith.constant dense<0.000000e+00> : vector<16x64xf32>
    %45 = tpu.matmul %42, %44, %cst_46 {dimension_numbers = #tpu.dot_dimension_numbers<[1], [0], [0], [1], [0, 0, 1, 1], [], []>} : vector<16x64xbf16>, vector<64x64xbf16>, vector<16x64xf32> -> vector<16x64xf32>
    %46 = arith.addf %40, %45 : vector<16x64xf32>
    %c0_47 = arith.constant 0 : index
    %c8 = arith.constant 8 : index
    %c0_48 = arith.constant 0 : index
    %47 = vector.load %arg1[%c0_47, %c8, %c0_48] : memref<1x32x64xbf16, #tpu.memory_space<vmem>>, vector<1x16x64xbf16>
    %48 = vector.shape_cast %47 : vector<1x16x64xbf16> to vector<16x64xbf16>
    %c8_49 = arith.constant 8 : index
    %c0_50 = arith.constant 0 : index
    %c0_51 = arith.constant 0 : index
    %49 = vector.load %arg2[%c8_49, %c0_50, %c0_51] : memref<9x64x64xbf16, #tpu.memory_space<vmem>>, vector<1x64x64xbf16>
    %50 = vector.shape_cast %49 : vector<1x64x64xbf16> to vector<64x64xbf16>
    %cst_52 = arith.constant dense<0.000000e+00> : vector<16x64xf32>
    %51 = tpu.matmul %48, %50, %cst_52 {dimension_numbers = #tpu.dot_dimension_numbers<[1], [0], [0], [1], [0, 0, 1, 1], [], []>} : vector<16x64xbf16>, vector<64x64xbf16>, vector<16x64xf32> -> vector<16x64xf32>
    %52 = arith.addf %46, %51 : vector<16x64xf32>
    %c0_53 = arith.constant 0 : index
    %c0_54 = arith.constant 0 : index
    %53 = vector.load %arg3[%c0_53, %c0_54] : memref<1x64xf32, #tpu.memory_space<vmem>>, vector<1x64xf32>
    %54 = vector.broadcast %53 : vector<1x64xf32> to vector<16x64xf32>
    %55 = arith.addf %52, %54 : vector<16x64xf32>
    %cst_55 = arith.constant 0.000000e+00 : f32
    %56 = vector.broadcast %cst_55 : f32 to vector<16x64xf32>
    %57 = arith.maximumf %55, %56 : vector<16x64xf32>
    %58 = arith.truncf %57 : vector<16x64xf32> to vector<16x64xbf16>
    %c0_56 = arith.constant 0 : index
    %c0_57 = arith.constant 0 : index
    %c0_58 = arith.constant 0 : index
    %59 = vector.load %arg4[%c0_56, %c0_57, %c0_58] : memref<1x16x64xbf16, #tpu.memory_space<vmem>>, vector<1x16x64xbf16>
    %60 = vector.shape_cast %59 : vector<1x16x64xbf16> to vector<16x64xbf16>
    %61 = vector.shape_cast %58 : vector<16x64xbf16> to vector<1x16x64xbf16>
    tpu.vector_store %arg4[%c0_56, %c0_57, %c0_58], %61 {strides = array<i32>} : memref<1x16x64xbf16, #tpu.memory_space<vmem>>, vector<1x16x64xbf16>,
    return
  }
  func.func @transform_0(%arg0: i32) -> (i32, i32, i32) {
    %c0_i32 = arith.constant 0 : i32
    %c0_i32_0 = arith.constant 0 : i32
    %c0_i32_1 = arith.constant 0 : i32
    return %arg0, %c0_i32, %c0_i32_0 : i32, i32, i32
  }
  func.func @transform_1(%arg0: i32) -> (i32, i32, i32) {
    %c0_i32 = arith.constant 0 : i32
    %c0_i32_0 = arith.constant 0 : i32
    %c0_i32_1 = arith.constant 0 : i32
    %c0_i32_2 = arith.constant 0 : i32
    return %c0_i32, %c0_i32_0, %c0_i32_1 : i32, i32, i32
  }
  func.func @transform_2(%arg0: i32) -> (i32, i32) {
    %c0_i32 = arith.constant 0 : i32
    %c0_i32_0 = arith.constant 0 : i32
    %c0_i32_1 = arith.constant 0 : i32
    return %c0_i32, %c0_i32_0 : i32, i32
  }
  func.func @transform_3(%arg0: i32) -> (i32, i32, i32) {
    %c0_i32 = arith.constant 0 : i32
    %c0_i32_0 = arith.constant 0 : i32
    %c0_i32_1 = arith.constant 0 : i32
    return %arg0, %c0_i32, %c0_i32_0 : i32, i32, i32
  }
}

module attributes {stable_mosaic.version = 11 : i64} {
  func.func @_mlp_head_kernel(%arg0: i32, %arg1: memref<16x64xbf16, #tpu.memory_space<vmem>>, %arg2: memref<64x512xbf16, #tpu.memory_space<vmem>>, %arg3: memref<1x512xf32, #tpu.memory_space<vmem>>, %arg4: memref<512x6xbf16, #tpu.memory_space<vmem>>, %arg5: memref<1x6xf32, #tpu.memory_space<vmem>>, %arg6: memref<16x6xf32, #tpu.memory_space<vmem>>) attributes {dimension_semantics = [#tpu.dimension_semantics<parallel>], iteration_bounds = array<i64: 1>, scalar_prefetch = 0 : i64, scratch_operands = 0 : i64, tpu.core_type = #tpu.core_type<tc>, window_params = [{transform_indices = @transform_0, window_bounds = array<i64: 16, 64>}, {pipeline_mode = #tpu.pipeline_mode<synchronous>, transform_indices = @transform_1, window_bounds = array<i64: 64, 512>}, {pipeline_mode = #tpu.pipeline_mode<synchronous>, transform_indices = @transform_2, window_bounds = array<i64: 1, 512>}, {pipeline_mode = #tpu.pipeline_mode<synchronous>, transform_indices = @transform_3, window_bounds = array<i64: 512, 6>}, {pipeline_mode = #tpu.pipeline_mode<synchronous>, transform_indices = @transform_4, window_bounds = array<i64: 1, 6>}, {transform_indices = @transform_5, window_bounds = array<i64: 16, 6>}]} {
    %c0 = arith.constant 0 : index
    %c0_0 = arith.constant 0 : index
    %0 = vector.load %arg1[%c0, %c0_0] : memref<16x64xbf16, #tpu.memory_space<vmem>>, vector<16x64xbf16>
    %c0_1 = arith.constant 0 : index
    %c0_2 = arith.constant 0 : index
    %1 = vector.load %arg2[%c0_1, %c0_2] : memref<64x512xbf16, #tpu.memory_space<vmem>>, vector<64x512xbf16>
    %cst = arith.constant dense<0.000000e+00> : vector<16x512xf32>
    %2 = tpu.matmul %0, %1, %cst {dimension_numbers = #tpu.dot_dimension_numbers<[1], [0], [0], [1], [0, 0, 1, 1], [], []>} : vector<16x64xbf16>, vector<64x512xbf16>, vector<16x512xf32> -> vector<16x512xf32>
    %c0_3 = arith.constant 0 : index
    %c0_4 = arith.constant 0 : index
    %3 = vector.load %arg3[%c0_3, %c0_4] : memref<1x512xf32, #tpu.memory_space<vmem>>, vector<1x512xf32>
    %4 = vector.broadcast %3 : vector<1x512xf32> to vector<16x512xf32>
    %5 = arith.addf %2, %4 : vector<16x512xf32>
    %cst_5 = arith.constant 0.000000e+00 : f32
    %6 = vector.broadcast %cst_5 : f32 to vector<16x512xf32>
    %7 = arith.maximumf %5, %6 : vector<16x512xf32>
    %8 = arith.truncf %7 : vector<16x512xf32> to vector<16x512xbf16>
    %c0_6 = arith.constant 0 : index
    %c0_7 = arith.constant 0 : index
    %9 = vector.load %arg4[%c0_6, %c0_7] : memref<512x6xbf16, #tpu.memory_space<vmem>>, vector<512x6xbf16>
    %cst_8 = arith.constant dense<0.000000e+00> : vector<16x6xf32>
    %10 = tpu.matmul %8, %9, %cst_8 {dimension_numbers = #tpu.dot_dimension_numbers<[1], [0], [0], [1], [0, 0, 1, 1], [], []>} : vector<16x512xbf16>, vector<512x6xbf16>, vector<16x6xf32> -> vector<16x6xf32>
    %c0_9 = arith.constant 0 : index
    %c0_10 = arith.constant 0 : index
    %11 = vector.load %arg5[%c0_9, %c0_10] : memref<1x6xf32, #tpu.memory_space<vmem>>, vector<1x6xf32>
    %12 = vector.broadcast %11 : vector<1x6xf32> to vector<16x6xf32>
    %13 = arith.addf %10, %12 : vector<16x6xf32>
    %c0_11 = arith.constant 0 : index
    %c0_12 = arith.constant 0 : index
    %14 = vector.load %arg6[%c0_11, %c0_12] : memref<16x6xf32, #tpu.memory_space<vmem>>, vector<16x6xf32>
    tpu.vector_store %arg6[%c0_11, %c0_12], %13 {strides = array<i32>} : memref<16x6xf32, #tpu.memory_space<vmem>>, vector<16x6xf32>,
    return
  }
  func.func @transform_0(%arg0: i32) -> (i32, i32) {
    %c0_i32 = arith.constant 0 : i32
    %c0_i32_0 = arith.constant 0 : i32
    return %arg0, %c0_i32 : i32, i32
  }
  func.func @transform_1(%arg0: i32) -> (i32, i32) {
    %c0_i32 = arith.constant 0 : i32
    %c0_i32_0 = arith.constant 0 : i32
    %c0_i32_1 = arith.constant 0 : i32
    return %c0_i32, %c0_i32_0 : i32, i32
  }
  func.func @transform_2(%arg0: i32) -> (i32, i32) {
    %c0_i32 = arith.constant 0 : i32
    %c0_i32_0 = arith.constant 0 : i32
    %c0_i32_1 = arith.constant 0 : i32
    return %c0_i32, %c0_i32_0 : i32, i32
  }
  func.func @transform_3(%arg0: i32) -> (i32, i32) {
    %c0_i32 = arith.constant 0 : i32
    %c0_i32_0 = arith.constant 0 : i32
    %c0_i32_1 = arith.constant 0 : i32
    return %c0_i32, %c0_i32_0 : i32, i32
  }
  func.func @transform_4(%arg0: i32) -> (i32, i32) {
    %c0_i32 = arith.constant 0 : i32
    %c0_i32_0 = arith.constant 0 : i32
    %c0_i32_1 = arith.constant 0 : i32
    return %c0_i32, %c0_i32_0 : i32, i32
  }
  func.func @transform_5(%arg0: i32) -> (i32, i32) {
    %c0_i32 = arith.constant 0 : i32
    %c0_i32_0 = arith.constant 0 : i32
    return %arg0, %c0_i32 : i32, i32
  }
}

</mosaic_0001>

<llo_original>
// kernel: nature_paper_conv_forward.4
$region0: #{nature_paper_conv_forward.4}
  #allocation0 [shape = 'u32[]', space=smem, size = 0x4, offset = 0x4, fixed_abs, tag = 'smem constant byte address 0x4 - core index']
  #allocation1 [shape = 'u32[144,128]{1,0:T(1,128)}', space=vmem, size = 0x12000, scoped, tag = 'internal scratch']
  %s0 = inlined_call_operand.vmem [shape: bf16[2,112,64], index: 0, kind: input, shape index: {}]
  %s1 = inlined_call_operand.vmem [shape: bf16[4,64,32], index: 1, kind: input, shape index: {}]
  %s2 = inlined_call_operand.vmem [shape: f32[1,32], index: 2, kind: input, shape index: {}]
  %s3 = inlined_call_operand.vmem [shape: bf16[2,96,32], index: 3, kind: output, shape index: {}]
  %s4 = sld [smem:[#allocation0]]
  $region45: #{nature_paper_conv_forward.4} parent=0
    _
  %s6 = ssub.s32 1, %s4
  %s7 = scalar_select 0, %s6, %s4
  loop: start=0, step=1, limit=4
  $region2: #{nature_paper_conv_forward.4} parent=0 // loop_pre_header
    _
  $region3: #{nature_paper_conv_forward.4} parent=0 // loop_header
    %s9 = sphi 0, %s13
    %p10 = scmp.ge.s32.totalorder %s9, 4
    %s19 = sphi 0, %s21
    %s22 = sphi 0, %s19
    %s23 = sphi 0, %s22
    %s39 = sphi 0, %s23
    %s43 = sphi 0, %s43
    %s45 = sphi 0, %s43
    %s46 = sphi 0, %s45
    %s60 = sphi 0, %s46
    %s64 = sphi 0, %s64
    %s66 = sphi 0, %s64
    %s67 = sphi 0, %s66
    %s81 = sphi 0, %s67
    %s87 = sphi 0, %s89
    %s90 = sphi 0, %s87
    %s91 = sphi 0, %s90
    %s107 = sphi 0, %s91
  $region4: #{nature_paper_conv_forward.4} parent=0 // loop_header_branch
    %12 = sbr.rel (%p10) target = $region8
  $region5: #{nature_paper_conv_forward.4} parent=0 // loop_body
    %s14 = ssub.s32 %s9, 1
    %s15 = ssub.s32 %s9, 2
    %s16 = sadd.s32 %s9, 1
    %s17 = ssub.s32 %s9, %s16
    %p18 = scmp.eq.s32.totalorder %s17, 0
    %s20 = sadd.s32 %s19, 1
    %s21 = scalar_select %p18, %s19, %s20
    %p24 = pneg %p18
    %p25 = scmp.eq.s32.totalorder %s9, 1
    %p26 = por %p24, %p25
    %p27 = scmp.ne.s32.totalorder %s19, %s22
    %p28 = scmp.eq.s32.totalorder %s9, 0
    %p29 = por %p27, %p28
    %p30 = scmp.ne.s32.totalorder %s19, %s22
    %p31 = scmp.eq.s32.totalorder %s14, 1
    %p32 = por %p30, %p31
    %p33 = scmp.ne.s32.totalorder %s22, %s23
    %p34 = scmp.eq.s32.totalorder %s14, 0
    %p35 = por %p33, %p34
    %p36 = scmp.ne.s32.totalorder %s22, %s23
    %p37 = scmp.eq.s32.totalorder %s15, 1
    %p38 = por %p36, %p37
    %p40 = scmp.ne.s32.totalorder %s23, %s39
    %p41 = scmp.eq.s32.totalorder %s15, 0
    %p42 = por %p40, %p41
    %s44 = sadd.s32 %s43, 1
    %p47 = scmp.eq.s32.totalorder %s9, 1
    %p48 = scmp.ne.s32.totalorder %s43, %s45
    %p49 = scmp.eq.s32.totalorder %s9, 0
    %p50 = por %p48, %p49
    %p51 = scmp.ne.s32.totalorder %s43, %s45
    %p52 = scmp.eq.s32.totalorder %s14, 1
    %p53 = por %p51, %p52
    %p54 = scmp.ne.s32.totalorder %s45, %s46
    %p55 = scmp.eq.s32.totalorder %s14, 0
    %p56 = por %p54, %p55
    %p57 = scmp.ne.s32.totalorder %s45, %s46
    %p58 = scmp.eq.s32.totalorder %s15, 1
    %p59 = por %p57, %p58
    %p61 = scmp.ne.s32.totalorder %s46, %s60
    %p62 = scmp.eq.s32.totalorder %s15, 0
    %p63 = por %p61, %p62
    %s65 = sadd.s32 %s64, 1
    %p68 = scmp.eq.s32.totalorder %s9, 1
    %p69 = scmp.ne.s32.totalorder %s64, %s66
    %p70 = scmp.eq.s32.totalorder %s9, 0
    %p71 = por %p69, %p70
    %p72 = scmp.ne.s32.totalorder %s64, %s66
    %p73 = scmp.eq.s32.totalorder %s14, 1
    %p74 = por %p72, %p73
    %p75 = scmp.ne.s32.totalorder %s66, %s67
    %p76 = scmp.eq.s32.totalorder %s14, 0
    %p77 = por %p75, %p76
    %p78 = scmp.ne.s32.totalorder %s66, %s67
    %p79 = scmp.eq.s32.totalorder %s15, 1
    %p80 = por %p78, %p79
    %p82 = scmp.ne.s32.totalorder %s67, %s81
    %p83 = scmp.eq.s32.totalorder %s15, 0
    %p84 = por %p82, %p83
    %s85 = ssub.s32 %s9, %s16
    %p86 = scmp.eq.s32.totalorder %s85, 0
    %s88 = sadd.s32 %s87, 1
    %s89 = scalar_select %p86, %s87, %s88
    %p92 = pneg %p86
    %p93 = scmp.eq.s32.totalorder %s9, 1
    %p94 = por %p92, %p93
    %p95 = scmp.ne.s32.totalorder %s87, %s90
    %p96 = scmp.eq.s32.totalorder %s9, 0
    %p97 = por %p95, %p96
    %p98 = scmp.ne.s32.totalorder %s87, %s90
    %p99 = scmp.eq.s32.totalorder %s14, 1
    %p100 = por %p98, %p99
    %p101 = scmp.ne.s32.totalorder %s90, %s91
    %p102 = scmp.eq.s32.totalorder %s14, 0
    %p103 = por %p101, %p102
    %p104 = scmp.ne.s32.totalorder %s90, %s91
    %p105 = scmp.eq.s32.totalorder %s15, 1
    %p106 = por %p104, %p105
    %p108 = scmp.ne.s32.totalorder %s91, %s107
    %p109 = scmp.eq.s32.totalorder %s15, 0
    %p110 = por %p108, %p109
    %p111 = scmp.le.s32.totalorder 1, %s9
    %p112 = scmp.lt.s32.totalorder %s9, 3
    %p113 = pnand %p111, %p112
    %p114 = pneg %p113
    // Predicated region
    $region9: #{nature_paper_conv_forward.4} parent=5 // pred_check
      _
    $region10: #{nature_paper_conv_forward.4} parent=5 // pred_check_branch
      %116 = sbr.rel (%p113) target = $region12
    $region11: #{nature_paper_conv_forward.4} parent=5 // pred_region
      %s117 = ssub.s32 %s9, 1
      // Predicated region
      $region13: #{nature_paper_conv_forward.4} parent=11 // pred_check
        %p118 = pneg %p56
      $region14: #{nature_paper_conv_forward.4} parent=11 // pred_check_branch
        %120 = sbr.rel (%p118) target = $region16
      $region15: #{nature_paper_conv_forward.4} parent=11 // pred_region
        _
      $region16: #{nature_paper_conv_forward.4} parent=11 // pred_fallthru
        _
      // Predicated region
      $region17: #{nature_paper_conv_forward.4} parent=11 // pred_check
        %p121 = pneg %p77
      $region18: #{nature_paper_conv_forward.4} parent=11 // pred_check_branch
        %123 = sbr.rel (%p121) target = $region20
      $region19: #{nature_paper_conv_forward.4} parent=11 // pred_region
        _
      $region20: #{nature_paper_conv_forward.4} parent=11 // pred_fallthru
        _
    $region12: #{nature_paper_conv_forward.4} parent=5 // pred_fallthru
      _
    %p124 = scmp.lt.s32.totalorder %s9, 2
    // Predicated region
    $region21: #{nature_paper_conv_forward.4} parent=5 // pred_check
      %p125 = pneg %p124
    $region22: #{nature_paper_conv_forward.4} parent=5 // pred_check_branch
      %127 = sbr.rel (%p125) target = $region24
    $region23: #{nature_paper_conv_forward.4} parent=5 // pred_region
      // Predicated region
      $region25: #{nature_paper_conv_forward.4} parent=23 // pred_check
        %p128 = pneg %p29
      $region26: #{nature_paper_conv_forward.4} parent=23 // pred_check_branch
        %130 = sbr.rel (%p128) target = $region28
      $region27: #{nature_paper_conv_forward.4} parent=23 // pred_region
        %p131 = scmp.lt.s32.totalorder %s9, 1
        %s132 = scalar_select %p131, %s9, 1
        %s133 = smul.addr %s132, 14
        %s134 = smul.addr %s133, 4
        %s135 = scalar_lea.vmem %s0, %s134
      $region28: #{nature_paper_conv_forward.4} parent=23 // pred_fallthru
        _
    $region24: #{nature_paper_conv_forward.4} parent=5 // pred_fallthru
      _
    %p136 = scmp.le.s32.totalorder 1, %s9
    %p137 = scmp.lt.s32.totalorder %s9, 3
    %p138 = pnand %p136, %p137
    %p139 = pneg %p138
    // Predicated region
    $region29: #{nature_paper_conv_forward.4} parent=5 // pred_check
      _
    $region30: #{nature_paper_conv_forward.4} parent=5 // pred_check_branch
      %141 = sbr.rel (%p138) target = $region32
    $region31: #{nature_paper_conv_forward.4} parent=5 // pred_region
      %s142 = ssub.s32 %s9, 1
      %p143 = scmp.lt.s32.totalorder %s14, 1
      %s144 = scalar_select %p143, %s14, 1
      %s145 = smul.addr %s144, 14
      %s146 = smul.addr %s145, 4
      %s147 = scalar_lea.vmem %s0, %s146
      %p148 = pneg %p35
      %p149 = pneg %p32
      %p150 = pneg %p56
      %p151 = pneg %p53
      %p152 = pneg %p77
      %p153 = pneg %p74
      %p154 = pneg %p103
      %p155 = pneg %p100
      %p156 = scmp.lt.s32.totalorder %s14, 1
      %s157 = scalar_select %p156, %s14, 1
      %s158 = smul.addr %s157, 12
      %s159 = smul.addr %s158, 4
      %s160 = scalar_lea.vmem %s3, %s159
      %p161 = scmp.lt.s32.totalorder %s14, 1
      %s162 = scalar_select %p161, %s14, 1
      %s163 = smul.addr %s162, 14
      %s164 = smul.addr %s163, 4
      %s165 = scalar_lea.vmem %s0, %s164
      %p166 = scmp.lt.s32.totalorder %s14, 1
      %s167 = scalar_select %p166, %s14, 1
      %s168 = smul.addr %s167, 12
      %s169 = smul.addr %s168, 4
      %s170 = scalar_lea.vmem %s3, %s169
      %v172 = vld [vmem:[%s165] sm:$0xf]
      %v173 = vld [vmem:[%s165 + $0x4] sm:$0xf]
      %v174 = vld [vmem:[%s165 + $0x8] sm:$0xf]
      %v175 = vld [vmem:[%s165 + $0xc] sm:$0xf]
      %v176 = vld [vmem:[%s165 + $0x10] sm:$0xf]
      %v177 = vld [vmem:[%s165 + $0x14] sm:$0xf]
      %v178 = vld [vmem:[%s165 + $0x18] sm:$0xf]
      %v179 = vld [vmem:[%s165 + $0x1c] sm:$0xf]
      %v180 = vld [vmem:[%s165 + $0x20] sm:$0xf]
      %v181 = vld [vmem:[%s165 + $0x24] sm:$0xf]
      %v182 = vld [vmem:[%s165 + $0x28] sm:$0xf]
      %v183 = vld [vmem:[%s165 + $0x2c] sm:$0xf]
      %v184 = vld [vmem:[%s1] sm:$0xf]
      %v185 = vld [vmem:[%s1 + $0x4] sm:$0xf]
      %v186 = vld [vmem:[%s1 + $0x8] sm:$0xf]
      %v187 = vld [vmem:[%s1 + $0xc] sm:$0xf]
      %v188 = vld [vmem:[%s1 + $0x10] sm:$0xf]
      %v189 = vld [vmem:[%s1 + $0x14] sm:$0xf]
      %v190 = vld [vmem:[%s1 + $0x18] sm:$0xf]
      %v191 = vld [vmem:[%s1 + $0x1c] sm:$0xf]
      %v192 = vld [vmem:[%s165 + $0x30] sm:$0x1]
      %s193 = scalar_lea.vmem %s1, 32
      %v194 = vld [vmem:[%s193] sm:$0xf]
      %v195 = vld [vmem:[%s193 + $0x4] sm:$0xf]
      %v196 = vld [vmem:[%s193 + $0x8] sm:$0xf]
      %v197 = vld [vmem:[%s193 + $0xc] sm:$0xf]
      %v198 = vld [vmem:[%s193 + $0x10] sm:$0xf]
      %v199 = vld [vmem:[%s193 + $0x14] sm:$0xf]
      %v200 = vld [vmem:[%s193 + $0x18] sm:$0xf]
      %v201 = vld [vmem:[%s193 + $0x1c] sm:$0xf]
      %v215 = vunpack.c.l.b16 %v172
      %v216 = vunpack.c.l.b16 %v173
      %v217 = vunpack.c.l.b16 %v174
      %v218 = vunpack.c.l.b16 %v175
      %v219 = vunpack.c.l.b16 %v176
      %v220 = vunpack.c.l.b16 %v177
      %v221 = vunpack.c.l.b16 %v178
      %v222 = vunpack.c.l.b16 %v179
      %v223 = vunpack.c.l.b16 %v180
      %v224 = vunpack.c.l.b16 %v181
      %v225 = vunpack.c.l.b16 %v182
      %v226 = vunpack.c.l.b16 %v183
      %v227 = vunpack.c.l.b16 %v192
      %v228 = vpack.c.b16 %v216, %v215
      %v229 = vpack.c.b16 %v218, %v217
      %v230 = vpack.c.b16 %v220, %v219
      %v231 = vpack.c.b16 %v222, %v221
      %v232 = vpack.c.b16 %v224, %v223
      %v233 = vpack.c.b16 %v226, %v225
      %v234 = vpack.c.b16 %v227, %v227
      %vm235 = vsmask.f32 7424
      %v237 = vshrl.u32 %v228, 16
      %v239 = vshll.u32 %v228, 16
      %v241 = vrot.slane %v239, 1
      %v242 = vor.u32 %v237, %v241
      %v244 = vshll.u32 %v229, 16
      %v246 = vrot.slane %v244, 1
      %v247 = vsel %vm235, %v242, %v246
      %v248 = vshrl.u32 %v229, 16
      %v250 = vor.u32 %v248, %v246
      %v252 = vshll.u32 %v230, 16
      %v254 = vrot.slane %v252, 1
      %v255 = vsel %vm235, %v250, %v254
      %v256 = vshrl.u32 %v230, 16
      %v258 = vor.u32 %v256, %v254
      %v260 = vshll.u32 %v231, 16
      %v262 = vrot.slane %v260, 1
      %v263 = vsel %vm235, %v258, %v262
      %v264 = vshrl.u32 %v231, 16
      %v266 = vor.u32 %v264, %v262
      %v268 = vshll.u32 %v232, 16
      %v270 = vrot.slane %v268, 1
      %v271 = vsel %vm235, %v266, %v270
      %v272 = vshrl.u32 %v232, 16
      %v274 = vor.u32 %v272, %v270
      %v276 = vshll.u32 %v233, 16
      %v278 = vrot.slane %v276, 1
      %v279 = vsel %vm235, %v274, %v278
      %v280 = vshrl.u32 %v233, 16
      %v282 = vor.u32 %v280, %v278
      %v284 = vshll.u32 %v234, 16
      %v286 = vrot.slane %v284, 1
      %v287 = vsel %vm235, %v282, %v286
      %v296 = vunpack.c.l.b16 %v194
      %v297 = vunpack.c.l.b16 %v195
      %v298 = vunpack.c.l.b16 %v196
      %v299 = vunpack.c.l.b16 %v197
      %v300 = vunpack.c.l.b16 %v198
      %v301 = vunpack.c.l.b16 %v199
      %v302 = vunpack.c.l.b16 %v200
      %v303 = vunpack.c.l.b16 %v201
      %v304 = vpack.c.b16 %v297, %v296
      %v305 = vpack.c.b16 %v299, %v298
      %v306 = vpack.c.b16 %v301, %v300
      %v307 = vpack.c.b16 %v303, %v302
      %vm312 = vcmask 523264
      %v314 = vsel %vm312, %v247, 0
      %v317 = vsel %vm312, %v255, 0
      %v320 = vsel %vm312, %v263, 0
      %v323 = vsel %vm312, %v271, 0
      %v326 = vsel %vm312, %v279, 0
      %v329 = vsel %vm312, %v287, 0
      %331 = vmatprep.subr.bf16.mxu0 0
      %332 = vmatpush1.bf16.msra.mxu0 0
      %333 = vmatprep.subr.bf16.mxu0 0
      %334 = vmatpush1.bf16.msra.mxu0 0
      %335 = vmatprep.subr.bf16.mxu0 0
      %336 = vmatpush1.bf16.msra.mxu0 0
      %337 = vmatprep.subr.bf16.mxu0 0
      %338 = vmatpush1.bf16.msra.mxu0 0
      %339 = vmatprep.subr.bf16.mxu0 0
      %340 = vmatpush1.bf16.msra.mxu0 %v307
      %341 = vmatprep.subr.bf16.mxu0 0
      %342 = vmatpush1.bf16.msra.mxu0 %v306
      %343 = vmatprep.subr.bf16.mxu0 0
      %344 = vmatpush1.bf16.msra.mxu0 %v305
      %345 = vmatprep.subr.bf16.mxu0 0
      %346 = vmatpush1.bf16.msra.mxu0 %v304
      %347 = vmatprep.subr.bf16.mxu0 0
      %348 = vmatpush2.bf16.msra.mxu0 0
      %349 = vmatprep.subr.bf16.mxu0 0
      %350 = vmatpush2.bf16.msra.mxu0 0
      %351 = vmatprep.subr.bf16.mxu0 0
      %352 = vmatpush2.bf16.msra.mxu0 0
      %353 = vmatprep.subr.bf16.mxu0 0
      %354 = vmatpush2.bf16.msra.mxu0 0
      %355 = vmatprep.subr.bf16.mxu0 0
      %356 = vmatpush2.bf16.msra.mxu0 0
      %357 = vmatprep.subr.bf16.mxu0 0
      %358 = vmatpush2.bf16.msra.mxu0 0
      %359 = vmatprep.subr.bf16.mxu0 0
      %360 = vmatpush2.bf16.msra.mxu0 0
      %361 = vmatprep.subr.bf16.mxu0 0
      %362 = vmatpush2.bf16.msra.mxu0 0
      %363 = vmatprep.mubr.bf16.mxu0 0
      %364 = vmatmul.mubr.bf16.gmra.mxu0 %v314
      %v365 = vpop.f32.mrf.mxu0
      %v366 = vadd.f32 0.0, %v365
      %v367 = vpop.f32.mrf.mxu0
      %v368 = vpop.f32.mrf.mxu0
      %v369 = vadd.f32 0.0, %v368
      %v370 = vpop.f32.mrf.mxu0
      %371 = vmatprep.mubr.bf16.mxu0 0
      %372 = vmatmul.mubr.bf16.gmra.mxu0 %v317
      %v373 = vpop.f32.mrf.mxu0
      %v374 = vadd.f32 0.0, %v373
      %v375 = vpop.f32.mrf.mxu0
      %v376 = vpop.f32.mrf.mxu0
      %v377 = vadd.f32 0.0, %v376
      %v378 = vpop.f32.mrf.mxu0
      %379 = vmatprep.mubr.bf16.mxu0 0
      %380 = vmatmul.mubr.bf16.gmra.mxu0 %v320
      %v381 = vpop.f32.mrf.mxu0
      %v382 = vadd.f32 0.0, %v381
      %v383 = vpop.f32.mrf.mxu0
      %v384 = vpop.f32.mrf.mxu0
      %v385 = vadd.f32 0.0, %v384
      %v386 = vpop.f32.mrf.mxu0
      %387 = vmatprep.mubr.bf16.mxu0 0
      %388 = vmatmul.mubr.bf16.gmra.mxu0 %v323
      %v389 = vpop.f32.mrf.mxu0
      %v390 = vadd.f32 0.0, %v389
      %v391 = vpop.f32.mrf.mxu0
      %v392 = vpop.f32.mrf.mxu0
      %v393 = vadd.f32 0.0, %v392
      %v394 = vpop.f32.mrf.mxu0
      %395 = vmatprep.mubr.bf16.mxu0 0
      %396 = vmatmul.mubr.bf16.gmra.mxu0 %v326
      %v397 = vpop.f32.mrf.mxu0
      %v398 = vadd.f32 0.0, %v397
      %v399 = vpop.f32.mrf.mxu0
      %v400 = vpop.f32.mrf.mxu0
      %v401 = vadd.f32 0.0, %v400
      %v402 = vpop.f32.mrf.mxu0
      %403 = vmatprep.mubr.bf16.mxu0 0
      %404 = vmatmul.mubr.bf16.gmra.mxu0 %v329
      %v405 = vpop.f32.mrf.mxu0
      %v406 = vadd.f32 0.0, %v405
      %v407 = vpop.f32.mrf.mxu0
      %v408 = vpop.f32.mrf.mxu0
      %v409 = vadd.f32 0.0, %v408
      %v410 = vpop.f32.mrf.mxu0
      %411 = vdwg.mxu0
      %v420 = vunpack.c.l.b16 %v184
      %v421 = vunpack.c.l.b16 %v185
      %v422 = vunpack.c.l.b16 %v186
      %v423 = vunpack.c.l.b16 %v187
      %v424 = vunpack.c.l.b16 %v188
      %v425 = vunpack.c.l.b16 %v189
      %v426 = vunpack.c.l.b16 %v190
      %v427 = vunpack.c.l.b16 %v191
      %v428 = vpack.c.b16 %v421, %v420
      %v429 = vpack.c.b16 %v423, %v422
      %v430 = vpack.c.b16 %v425, %v424
      %v431 = vpack.c.b16 %v427, %v426
      %v436 = vsel %vm312, %v228, 0
      %v438 = vsel %vm312, %v229, 0
      %v440 = vsel %vm312, %v230, 0
      %v442 = vsel %vm312, %v231, 0
      %v444 = vsel %vm312, %v232, 0
      %v446 = vsel %vm312, %v233, 0
      %448 = vmatprep.subr.bf16.mxu0 0
      %449 = vmatpush1.bf16.msra.mxu0 0
      %450 = vmatprep.subr.bf16.mxu0 0
      %451 = vmatpush1.bf16.msra.mxu0 0
      %452 = vmatprep.subr.bf16.mxu0 0
      %453 = vmatpush1.bf16.msra.mxu0 0
      %454 = vmatprep.subr.bf16.mxu0 0
      %455 = vmatpush1.bf16.msra.mxu0 0
      %456 = vmatprep.subr.bf16.mxu0 0
      %457 = vmatpush1.bf16.msra.mxu0 %v431
      %458 = vmatprep.subr.bf16.mxu0 0
      %459 = vmatpush1.bf16.msra.mxu0 %v430
      %460 = vmatprep.subr.bf16.mxu0 0
      %461 = vmatpush1.bf16.msra.mxu0 %v429
      %462 = vmatprep.subr.bf16.mxu0 0
      %463 = vmatpush1.bf16.msra.mxu0 %v428
      %464 = vmatprep.subr.bf16.mxu0 0
      %465 = vmatpush2.bf16.msra.mxu0 0
      %466 = vmatprep.subr.bf16.mxu0 0
      %467 = vmatpush2.bf16.msra.mxu0 0
      %468 = vmatprep.subr.bf16.mxu0 0
      %469 = vmatpush2.bf16.msra.mxu0 0
      %470 = vmatprep.subr.bf16.mxu0 0
      %471 = vmatpush2.bf16.msra.mxu0 0
      %472 = vmatprep.subr.bf16.mxu0 0
      %473 = vmatpush2.bf16.msra.mxu0 0
      %474 = vmatprep.subr.bf16.mxu0 0
      %475 = vmatpush2.bf16.msra.mxu0 0
      %476 = vmatprep.subr.bf16.mxu0 0
      %477 = vmatpush2.bf16.msra.mxu0 0
      %478 = vmatprep.subr.bf16.mxu0 0
      %479 = vmatpush2.bf16.msra.mxu0 0
      %480 = vmatprep.mubr.bf16.mxu0 0
      %481 = vmatmul.mubr.bf16.gmra.mxu0 %v436
      %v482 = vpop.f32.mrf.mxu0
      %v483 = vadd.f32 %v366, %v482
      %v484 = vpop.f32.mrf.mxu0
      %v485 = vpop.f32.mrf.mxu0
      %v486 = vadd.f32 %v369, %v485
      %v487 = vpop.f32.mrf.mxu0
      %488 = vmatprep.mubr.bf16.mxu0 0
      %489 = vmatmul.mubr.bf16.gmra.mxu0 %v438
      %v490 = vpop.f32.mrf.mxu0
      %v491 = vadd.f32 %v374, %v490
      %v492 = vpop.f32.mrf.mxu0
      %v493 = vpop.f32.mrf.mxu0
      %v494 = vadd.f32 %v377, %v493
      %v495 = vpop.f32.mrf.mxu0
      %496 = vmatprep.mubr.bf16.mxu0 0
      %497 = vmatmul.mubr.bf16.gmra.mxu0 %v440
      %v498 = vpop.f32.mrf.mxu0
      %v499 = vadd.f32 %v382, %v498
      %v500 = vpop.f32.mrf.mxu0
      %v501 = vpop.f32.mrf.mxu0
      %v502 = vadd.f32 %v385, %v501
      %v503 = vpop.f32.mrf.mxu0
      %504 = vmatprep.mubr.bf16.mxu0 0
      %505 = vmatmul.mubr.bf16.gmra.mxu0 %v442
      %v506 = vpop.f32.mrf.mxu0
      %v507 = vadd.f32 %v390, %v506
      %v508 = vpop.f32.mrf.mxu0
      %v509 = vpop.f32.mrf.mxu0
      %v510 = vadd.f32 %v393, %v509
      %v511 = vpop.f32.mrf.mxu0
      %512 = vmatprep.mubr.bf16.mxu0 0
      %513 = vmatmul.mubr.bf16.gmra.mxu0 %v444
      %v514 = vpop.f32.mrf.mxu0
      %v515 = vadd.f32 %v398, %v514
      %v516 = vpop.f32.mrf.mxu0
      %v517 = vpop.f32.mrf.mxu0
      %v518 = vadd.f32 %v401, %v517
      %v519 = vpop.f32.mrf.mxu0
      %520 = vmatprep.mubr.bf16.mxu0 0
      %521 = vmatmul.mubr.bf16.gmra.mxu0 %v446
      %v522 = vpop.f32.mrf.mxu0
      %v523 = vadd.f32 %v406, %v522
      %v524 = vpop.f32.mrf.mxu0
      %v525 = vpop.f32.mrf.mxu0
      %v526 = vadd.f32 %v409, %v525
      %v527 = vpop.f32.mrf.mxu0
      %528 = vdwg.mxu0
      %v529 = vld [vmem:[%s165 + $0x4] sm:$0xf]
      %v530 = vld [vmem:[%s165 + $0x8] sm:$0xf]
      %v531 = vld [vmem:[%s165 + $0xc] sm:$0xf]
      %v532 = vld [vmem:[%s165 + $0x10] sm:$0xf]
      %v533 = vld [vmem:[%s165 + $0x14] sm:$0xf]
      %v534 = vld [vmem:[%s165 + $0x18] sm:$0xf]
      %v535 = vld [vmem:[%s165 + $0x1c] sm:$0xf]
      %v536 = vld [vmem:[%s165 + $0x20] sm:$0xf]
      %v537 = vld [vmem:[%s165 + $0x24] sm:$0xf]
      %v538 = vld [vmem:[%s165 + $0x28] sm:$0xf]
      %v539 = vld [vmem:[%s165 + $0x2c] sm:$0xf]
      %v540 = vld [vmem:[%s165 + $0x30] sm:$0xf]
      %v541 = vld [vmem:[%s165 + $0x34] sm:$0x1]
      %s542 = scalar_lea.vmem %s1, 64
      %v543 = vld [vmem:[%s542] sm:$0xf]
      %v544 = vld [vmem:[%s542 + $0x4] sm:$0xf]
      %v545 = vld [vmem:[%s542 + $0x8] sm:$0xf]
      %v546 = vld [vmem:[%s542 + $0xc] sm:$0xf]
      %v547 = vld [vmem:[%s542 + $0x10] sm:$0xf]
      %v548 = vld [vmem:[%s542 + $0x14] sm:$0xf]
      %v549 = vld [vmem:[%s542 + $0x18] sm:$0xf]
      %v550 = vld [vmem:[%s542 + $0x1c] sm:$0xf]
      %v564 = vunpack.c.l.b16 %v529
      %v565 = vunpack.c.l.b16 %v530
      %v566 = vunpack.c.l.b16 %v531
      %v567 = vunpack.c.l.b16 %v532
      %v568 = vunpack.c.l.b16 %v533
      %v569 = vunpack.c.l.b16 %v534
      %v570 = vunpack.c.l.b16 %v535
      %v571 = vunpack.c.l.b16 %v536
      %v572 = vunpack.c.l.b16 %v537
      %v573 = vunpack.c.l.b16 %v538
      %v574 = vunpack.c.l.b16 %v539
      %v575 = vunpack.c.l.b16 %v540
      %v576 = vunpack.c.l.b16 %v541
      %v577 = vpack.c.b16 %v565, %v564
      %v578 = vpack.c.b16 %v567, %v566
      %v579 = vpack.c.b16 %v569, %v568
      %v580 = vpack.c.b16 %v571, %v570
      %v581 = vpack.c.b16 %v573, %v572
      %v582 = vpack.c.b16 %v575, %v574
      %v583 = vpack.c.b16 %v576, %v576
      %v585 = vshrl.u32 %v577, 16
      %v587 = vshll.u32 %v577, 16
      %v589 = vrot.slane %v587, 1
      %v590 = vor.u32 %v585, %v589
      %v592 = vshll.u32 %v578, 16
      %v594 = vrot.slane %v592, 1
      %v595 = vsel %vm235, %v590, %v594
      %v596 = vshrl.u32 %v578, 16
      %v598 = vor.u32 %v596, %v594
      %v600 = vshll.u32 %v579, 16
      %v602 = vrot.slane %v600, 1
      %v603 = vsel %vm235, %v598, %v602
      %v604 = vshrl.u32 %v579, 16
      %v606 = vor.u32 %v604, %v602
      %v608 = vshll.u32 %v580, 16
      %v610 = vrot.slane %v608, 1
      %v611 = vsel %vm235, %v606, %v610
      %v612 = vshrl.u32 %v580, 16
      %v614 = vor.u32 %v612, %v610
      %v616 = vshll.u32 %v581, 16
      %v618 = vrot.slane %v616, 1
      %v619 = vsel %vm235, %v614, %v618
      %v620 = vshrl.u32 %v581, 16
      %v622 = vor.u32 %v620, %v618
      %v624 = vshll.u32 %v582, 16
      %v626 = vrot.slane %v624, 1
      %v627 = vsel %vm235, %v622, %v626
      %v628 = vshrl.u32 %v582, 16
      %v630 = vor.u32 %v628, %v626
      %v632 = vshll.u32 %v583, 16
      %v634 = vrot.slane %v632, 1
      %v635 = vsel %vm235, %v630, %v634
      %v644 = vunpack.c.l.b16 %v543
      %v645 = vunpack.c.l.b16 %v544
      %v646 = vunpack.c.l.b16 %v545
      %v647 = vunpack.c.l.b16 %v546
      %v648 = vunpack.c.l.b16 %v547
      %v649 = vunpack.c.l.b16 %v548
      %v650 = vunpack.c.l.b16 %v549
      %v651 = vunpack.c.l.b16 %v550
      %v652 = vpack.c.b16 %v645, %v644
      %v653 = vpack.c.b16 %v647, %v646
      %v654 = vpack.c.b16 %v649, %v648
      %v655 = vpack.c.b16 %v651, %v650
      %v661 = vsel %vm312, %v595, 0
      %v664 = vsel %vm312, %v603, 0
      %v667 = vsel %vm312, %v611, 0
      %v670 = vsel %vm312, %v619, 0
      %v673 = vsel %vm312, %v627, 0
      %v676 = vsel %vm312, %v635, 0
      %678 = vmatprep.subr.bf16.mxu0 0
      %679 = vmatpush1.bf16.msra.mxu0 0
      %680 = vmatprep.subr.bf16.mxu0 0
      %681 = vmatpush1.bf16.msra.mxu0 0
      %682 = vmatprep.subr.bf16.mxu0 0
      %683 = vmatpush1.bf16.msra.mxu0 0
      %684 = vmatprep.subr.bf16.mxu0 0
      %685 = vmatpush1.bf16.msra.mxu0 0
      %686 = vmatprep.subr.bf16.mxu0 0
      %687 = vmatpush1.bf16.msra.mxu0 %v655
      %688 = vmatprep.subr.bf16.mxu0 0
      %689 = vmatpush1.bf16.msra.mxu0 %v654
      %690 = vmatprep.subr.bf16.mxu0 0
      %691 = vmatpush1.bf16.msra.mxu0 %v653
      %692 = vmatprep.subr.bf16.mxu0 0
      %693 = vmatpush1.bf16.msra.mxu0 %v652
      %694 = vmatprep.subr.bf16.mxu0 0
      %695 = vmatpush2.bf16.msra.mxu0 0
      %696 = vmatprep.subr.bf16.mxu0 0
      %697 = vmatpush2.bf16.msra.mxu0 0
      %698 = vmatprep.subr.bf16.mxu0 0
      %699 = vmatpush2.bf16.msra.mxu0 0
      %700 = vmatprep.subr.bf16.mxu0 0
      %701 = vmatpush2.bf16.msra.mxu0 0
      %702 = vmatprep.subr.bf16.mxu0 0
      %703 = vmatpush2.bf16.msra.mxu0 0
      %704 = vmatprep.subr.bf16.mxu0 0
      %705 = vmatpush2.bf16.msra.mxu0 0
      %706 = vmatprep.subr.bf16.mxu0 0
      %707 = vmatpush2.bf16.msra.mxu0 0
      %708 = vmatprep.subr.bf16.mxu0 0
      %709 = vmatpush2.bf16.msra.mxu0 0
      %710 = vmatprep.mubr.bf16.mxu0 0
      %711 = vmatmul.mubr.bf16.gmra.mxu0 %v661
      %v712 = vpop.f32.mrf.mxu0
      %v713 = vadd.f32 0.0, %v712
      %v714 = vpop.f32.mrf.mxu0
      %v715 = vpop.f32.mrf.mxu0
      %v716 = vadd.f32 0.0, %v715
      %v717 = vpop.f32.mrf.mxu0
      %718 = vmatprep.mubr.bf16.mxu0 0
      %719 = vmatmul.mubr.bf16.gmra.mxu0 %v664
      %v720 = vpop.f32.mrf.mxu0
      %v721 = vadd.f32 0.0, %v720
      %v722 = vpop.f32.mrf.mxu0
      %v723 = vpop.f32.mrf.mxu0
      %v724 = vadd.f32 0.0, %v723
      %v725 = vpop.f32.mrf.mxu0
      %726 = vmatprep.mubr.bf16.mxu0 0
      %727 = vmatmul.mubr.bf16.gmra.mxu0 %v667
      %v728 = vpop.f32.mrf.mxu0
      %v729 = vadd.f32 0.0, %v728
      %v730 = vpop.f32.mrf.mxu0
      %v731 = vpop.f32.mrf.mxu0
      %v732 = vadd.f32 0.0, %v731
      %v733 = vpop.f32.mrf.mxu0
      %734 = vmatprep.mubr.bf16.mxu0 0
      %735 = vmatmul.mubr.bf16.gmra.mxu0 %v670
      %v736 = vpop.f32.mrf.mxu0
      %v737 = vadd.f32 0.0, %v736
      %v738 = vpop.f32.mrf.mxu0
      %v739 = vpop.f32.mrf.mxu0
      %v740 = vadd.f32 0.0, %v739
      %v741 = vpop.f32.mrf.mxu0
      %742 = vmatprep.mubr.bf16.mxu0 0
      %743 = vmatmul.mubr.bf16.gmra.mxu0 %v673
      %v744 = vpop.f32.mrf.mxu0
      %v745 = vadd.f32 0.0, %v744
      %v746 = vpop.f32.mrf.mxu0
      %v747 = vpop.f32.mrf.mxu0
      %v748 = vadd.f32 0.0, %v747
      %v749 = vpop.f32.mrf.mxu0
      %750 = vmatprep.mubr.bf16.mxu0 0
      %751 = vmatmul.mubr.bf16.gmra.mxu0 %v676
      %v752 = vpop.f32.mrf.mxu0
      %v753 = vadd.f32 0.0, %v752
      %v754 = vpop.f32.mrf.mxu0
      %v755 = vpop.f32.mrf.mxu0
      %v756 = vadd.f32 0.0, %v755
      %v757 = vpop.f32.mrf.mxu0
      %758 = vdwg.mxu0
      %v759 = vadd.f32 %v483, %v713
      %v760 = vadd.f32 %v486, %v716
      %v761 = vadd.f32 %v491, %v721
      %v762 = vadd.f32 %v494, %v724
      %v763 = vadd.f32 %v499, %v729
      %v764 = vadd.f32 %v502, %v732
      %v765 = vadd.f32 %v507, %v737
      %v766 = vadd.f32 %v510, %v740
      %v767 = vadd.f32 %v515, %v745
      %v768 = vadd.f32 %v518, %v748
      %v769 = vadd.f32 %v523, %v753
      %v770 = vadd.f32 %v526, %v756
      %v771 = vld [vmem:[%s165 + $0x4] sm:$0xe]
      %s772 = scalar_lea.vmem %s1, 96
      %v773 = vld [vmem:[%s772] sm:$0xf]
      %v774 = vld [vmem:[%s772 + $0x4] sm:$0xf]
      %v775 = vld [vmem:[%s772 + $0x8] sm:$0xf]
      %v776 = vld [vmem:[%s772 + $0xc] sm:$0xf]
      %v777 = vld [vmem:[%s772 + $0x10] sm:$0xf]
      %v778 = vld [vmem:[%s772 + $0x14] sm:$0xf]
      %v779 = vld [vmem:[%s772 + $0x18] sm:$0xf]
      %v780 = vld [vmem:[%s772 + $0x1c] sm:$0xf]
      %v782 = vunpack.c.l.b16 %v771
      %v783 = vpack.c.b16 %v565, %v782
      %vm784 = vcmask 1046528
      %v785 = vrot.slane %v783, 1
      %v786 = vrot.slane %v578, 1
      %v787 = vsel %vm784, %v785, %v786
      %v788 = vrot.slane %v579, 1
      %v789 = vsel %vm784, %v786, %v788
      %v790 = vrot.slane %v580, 1
      %v791 = vsel %vm784, %v788, %v790
      %v792 = vrot.slane %v581, 1
      %v793 = vsel %vm784, %v790, %v792
      %v794 = vrot.slane %v582, 1
      %v795 = vsel %vm784, %v792, %v794
      %v796 = vrot.slane %v583, 1
      %v797 = vsel %vm784, %v794, %v796
      %v806 = vunpack.c.l.b16 %v773
      %v807 = vunpack.c.l.b16 %v774
      %v808 = vunpack.c.l.b16 %v775
      %v809 = vunpack.c.l.b16 %v776
      %v810 = vunpack.c.l.b16 %v777
      %v811 = vunpack.c.l.b16 %v778
      %v812 = vunpack.c.l.b16 %v779
      %v813 = vunpack.c.l.b16 %v780
      %v814 = vpack.c.b16 %v807, %v806
      %v815 = vpack.c.b16 %v809, %v808
      %v816 = vpack.c.b16 %v811, %v810
      %v817 = vpack.c.b16 %v813, %v812
      %v823 = vsel %vm312, %v787, 0
      %v826 = vsel %vm312, %v789, 0
      %v829 = vsel %vm312, %v791, 0
      %v832 = vsel %vm312, %v793, 0
      %v835 = vsel %vm312, %v795, 0
      %v838 = vsel %vm312, %v797, 0
      %840 = vmatprep.subr.bf16.mxu0 0
      %841 = vmatpush1.bf16.msra.mxu0 0
      %842 = vmatprep.subr.bf16.mxu0 0
      %843 = vmatpush1.bf16.msra.mxu0 0
      %844 = vmatprep.subr.bf16.mxu0 0
      %845 = vmatpush1.bf16.msra.mxu0 0
      %846 = vmatprep.subr.bf16.mxu0 0
      %847 = vmatpush1.bf16.msra.mxu0 0
      %848 = vmatprep.subr.bf16.mxu0 0
      %849 = vmatpush1.bf16.msra.mxu0 %v817
      %850 = vmatprep.subr.bf16.mxu0 0
      %851 = vmatpush1.bf16.msra.mxu0 %v816
      %852 = vmatprep.subr.bf16.mxu0 0
      %853 = vmatpush1.bf16.msra.mxu0 %v815
      %854 = vmatprep.subr.bf16.mxu0 0
      %855 = vmatpush1.bf16.msra.mxu0 %v814
      %856 = vmatprep.subr.bf16.mxu0 0
      %857 = vmatpush2.bf16.msra.mxu0 0
      %858 = vmatprep.subr.bf16.mxu0 0
      %859 = vmatpush2.bf16.msra.mxu0 0
      %860 = vmatprep.subr.bf16.mxu0 0
      %861 = vmatpush2.bf16.msra.mxu0 0
      %862 = vmatprep.subr.bf16.mxu0 0
      %863 = vmatpush2.bf16.msra.mxu0 0
      %864 = vmatprep.subr.bf16.mxu0 0
      %865 = vmatpush2.bf16.msra.mxu0 0
      %866 = vmatprep.subr.bf16.mxu0 0
      %867 = vmatpush2.bf16.msra.mxu0 0
      %868 = vmatprep.subr.bf16.mxu0 0
      %869 = vmatpush2.bf16.msra.mxu0 0
      %870 = vmatprep.subr.bf16.mxu0 0
      %871 = vmatpush2.bf16.msra.mxu0 0
      %872 = vmatprep.mubr.bf16.mxu0 0
      %873 = vmatmul.mubr.bf16.gmra.mxu0 %v823
      %v874 = vpop.f32.mrf.mxu0
      %v875 = vadd.f32 0.0, %v874
      %v876 = vpop.f32.mrf.mxu0
      %v877 = vpop.f32.mrf.mxu0
      %v878 = vadd.f32 0.0, %v877
      %v879 = vpop.f32.mrf.mxu0
      %880 = vmatprep.mubr.bf16.mxu0 0
      %881 = vmatmul.mubr.bf16.gmra.mxu0 %v826
      %v882 = vpop.f32.mrf.mxu0
      %v883 = vadd.f32 0.0, %v882
      %v884 = vpop.f32.mrf.mxu0
      %v885 = vpop.f32.mrf.mxu0
      %v886 = vadd.f32 0.0, %v885
      %v887 = vpop.f32.mrf.mxu0
      %888 = vmatprep.mubr.bf16.mxu0 0
      %889 = vmatmul.mubr.bf16.gmra.mxu0 %v829
      %v890 = vpop.f32.mrf.mxu0
      %v891 = vadd.f32 0.0, %v890
      %v892 = vpop.f32.mrf.mxu0
      %v893 = vpop.f32.mrf.mxu0
      %v894 = vadd.f32 0.0, %v893
      %v895 = vpop.f32.mrf.mxu0
      %896 = vmatprep.mubr.bf16.mxu0 0
      %897 = vmatmul.mubr.bf16.gmra.mxu0 %v832
      %v898 = vpop.f32.mrf.mxu0
      %v899 = vadd.f32 0.0, %v898
      %v900 = vpop.f32.mrf.mxu0
      %v901 = vpop.f32.mrf.mxu0
      %v902 = vadd.f32 0.0, %v901
      %v903 = vpop.f32.mrf.mxu0
      %904 = vmatprep.mubr.bf16.mxu0 0
      %905 = vmatmul.mubr.bf16.gmra.mxu0 %v835
      %v906 = vpop.f32.mrf.mxu0
      %v907 = vadd.f32 0.0, %v906
      %v908 = vpop.f32.mrf.mxu0
      %v909 = vpop.f32.mrf.mxu0
      %v910 = vadd.f32 0.0, %v909
      %v911 = vpop.f32.mrf.mxu0
      %912 = vmatprep.mubr.bf16.mxu0 0
      %913 = vmatmul.mubr.bf16.gmra.mxu0 %v838
      %v914 = vpop.f32.mrf.mxu0
      %v915 = vadd.f32 0.0, %v914
      %v916 = vpop.f32.mrf.mxu0
      %v917 = vpop.f32.mrf.mxu0
      %v918 = vadd.f32 0.0, %v917
      %v919 = vpop.f32.mrf.mxu0
      %920 = vdwg.mxu0
      %v921 = vadd.f32 %v759, %v875
      %v922 = vadd.f32 %v760, %v878
      %v923 = vadd.f32 %v761, %v883
      %v924 = vadd.f32 %v762, %v886
      %v925 = vadd.f32 %v763, %v891
      %v926 = vadd.f32 %v764, %v894
      %v927 = vadd.f32 %v765, %v899
      %v928 = vadd.f32 %v766, %v902
      %v929 = vadd.f32 %v767, %v907
      %v930 = vadd.f32 %v768, %v910
      %v931 = vadd.f32 %v769, %v915
      %v932 = vadd.f32 %v770, %v918
      %v933 = vld [vmem:[%s2] sm:$0x1]
      %v935 = vlaneseq
      %v936 = vshrl.u32 %v935, 7
      %v937 = vsub.s32 0, %v936
      %v938 = vrot.slane %v933, %v937
      %v940 = vadd.f32 %v921, %v938
      %v941 = vadd.f32 %v922, %v938
      %v942 = vadd.f32 %v923, %v938
      %v943 = vadd.f32 %v924, %v938
      %v944 = vadd.f32 %v925, %v938
      %v945 = vadd.f32 %v926, %v938
      %v946 = vadd.f32 %v927, %v938
      %v947 = vadd.f32 %v928, %v938
      %v948 = vadd.f32 %v929, %v938
      %v949 = vadd.f32 %v930, %v938
      %v950 = vadd.f32 %v931, %v938
      %v951 = vadd.f32 %v932, %v938
      %v952 = vmax.f32 %v940, 0.0
      %v953 = vmax.f32 %v941, 0.0
      %v954 = vmax.f32 %v942, 0.0
      %v955 = vmax.f32 %v943, 0.0
      %v956 = vmax.f32 %v944, 0.0
      %v957 = vmax.f32 %v945, 0.0
      %v958 = vmax.f32 %v946, 0.0
      %v959 = vmax.f32 %v947, 0.0
      %v960 = vmax.f32 %v948, 0.0
      %v961 = vmax.f32 %v949, 0.0
      %v962 = vmax.f32 %v950, 0.0
      %v963 = vmax.f32 %v951, 0.0
      %v964 = vpack.c.bf16 %v953, %v952
      %v965 = vpack.c.bf16 %v955, %v954
      %v966 = vpack.c.bf16 %v957, %v956
      %v967 = vpack.c.bf16 %v959, %v958
      %v968 = vpack.c.bf16 %v961, %v960
      %v969 = vpack.c.bf16 %v963, %v962
      %v976 = vunpack.c.l.b16 %v964
      %v977 = vunpack.c.h.b16 %v964
      %v978 = vunpack.c.l.b16 %v965
      %v979 = vunpack.c.h.b16 %v965
      %v980 = vunpack.c.l.b16 %v966
      %v981 = vunpack.c.h.b16 %v966
      %v982 = vunpack.c.l.b16 %v967
      %v983 = vunpack.c.h.b16 %v967
      %v984 = vunpack.c.l.b16 %v968
      %v985 = vunpack.c.h.b16 %v968
      %v986 = vunpack.c.l.b16 %v969
      %v987 = vunpack.c.h.b16 %v969
      %v988 = vpack.c.b16 %v976, %v976
      %v989 = vpack.c.b16 %v977, %v977
      %v990 = vpack.c.b16 %v978, %v978
      %v991 = vpack.c.b16 %v979, %v979
      %v992 = vpack.c.b16 %v980, %v980
      %v993 = vpack.c.b16 %v981, %v981
      %v994 = vpack.c.b16 %v982, %v982
      %v995 = vpack.c.b16 %v983, %v983
      %v996 = vpack.c.b16 %v984, %v984
      %v997 = vpack.c.b16 %v985, %v985
      %v998 = vpack.c.b16 %v986, %v986
      %v999 = vpack.c.b16 %v987, %v987
      %vm1012 = vcmask 257024
      %1013 = vst.msk [vmem:[%s170] sm:$0xf] %vm1012, %v988
      %1014 = vst.msk [vmem:[%s170 + $0x4] sm:$0xf] %vm1012, %v989
      %1015 = vst.msk [vmem:[%s170 + $0x8] sm:$0xf] %vm1012, %v990
      %1016 = vst.msk [vmem:[%s170 + $0xc] sm:$0xf] %vm1012, %v991
      %1017 = vst.msk [vmem:[%s170 + $0x10] sm:$0xf] %vm1012, %v992
      %1018 = vst.msk [vmem:[%s170 + $0x14] sm:$0xf] %vm1012, %v993
      %1019 = vst.msk [vmem:[%s170 + $0x18] sm:$0xf] %vm1012, %v994
      %1020 = vst.msk [vmem:[%s170 + $0x1c] sm:$0xf] %vm1012, %v995
      %1021 = vst.msk [vmem:[%s170 + $0x20] sm:$0xf] %vm1012, %v996
      %1022 = vst.msk [vmem:[%s170 + $0x24] sm:$0xf] %vm1012, %v997
      %1023 = vst.msk [vmem:[%s170 + $0x28] sm:$0xf] %vm1012, %v998
      %1024 = vst.msk [vmem:[%s170 + $0x2c] sm:$0xf] %vm1012, %v999
      %p1025 = scmp.lt.s32.totalorder %s14, 1
      %s1026 = scalar_select %p1025, %s14, 1
      %s1027 = smul.addr %s1026, 12
      %s1028 = smul.addr %s1027, 4
      %s1029 = scalar_lea.vmem %s3, %s1028
      // Predicated region
      $region33: #{nature_paper_conv_forward.4} parent=31 // pred_check
        %p1030 = pneg %p100
      $region34: #{nature_paper_conv_forward.4} parent=31 // pred_check_branch
        %1032 = sbr.rel (%p1030) target = $region36
      $region35: #{nature_paper_conv_forward.4} parent=31 // pred_region
        _
      $region36: #{nature_paper_conv_forward.4} parent=31 // pred_fallthru
        _
    $region32: #{nature_paper_conv_forward.4} parent=5 // pred_fallthru
      _
    %p1033 = scmp.le.s32.totalorder 2, %s9
    // Predicated region
    $region37: #{nature_paper_conv_forward.4} parent=5 // pred_check
      %p1034 = pneg %p1033
    $region38: #{nature_paper_conv_forward.4} parent=5 // pred_check_branch
      %1036 = sbr.rel (%p1034) target = $region40
    $region39: #{nature_paper_conv_forward.4} parent=5 // pred_region
      %s1037 = ssub.s32 %s9, 2
      // Predicated region
      $region41: #{nature_paper_conv_forward.4} parent=39 // pred_check
        %p1038 = pneg %p106
      $region42: #{nature_paper_conv_forward.4} parent=39 // pred_check_branch
        %1040 = sbr.rel (%p1038) target = $region44
      $region43: #{nature_paper_conv_forward.4} parent=39 // pred_region
        %p1041 = scmp.lt.s32.totalorder %s15, 1
        %s1042 = scalar_select %p1041, %s15, 1
        %s1043 = smul.addr %s1042, 12
        %s1044 = smul.addr %s1043, 4
        %s1045 = scalar_lea.vmem %s3, %s1044
      $region44: #{nature_paper_conv_forward.4} parent=39 // pred_fallthru
        _
    $region40: #{nature_paper_conv_forward.4} parent=5 // pred_fallthru
      _
  $region6: #{nature_paper_conv_forward.4} parent=0 // loop_footer
    %s13 = sadd.s32 1, %s9
  $region7: #{nature_paper_conv_forward.4} parent=0 // loop_footer_branch
    %8 = sbr.rel target = $region3
  $region8: #{nature_paper_conv_forward.4} parent=0 // loop_exit
    _

// kernel: nature_paper_conv_forward.5
$region0: #{nature_paper_conv_forward.5}
  #allocation0 [shape = 'u32[]', space=smem, size = 0x4, offset = 0x4, fixed_abs, tag = 'smem constant byte address 0x4 - core index']
  #allocation1 [shape = 'u32[144,128]{1,0:T(1,128)}', space=vmem, size = 0x12000, scoped, tag = 'internal scratch']
  %s0 = inlined_call_operand.vmem [shape: bf16[2,32,128], index: 0, kind: input, shape index: {}]
  %s1 = inlined_call_operand.vmem [shape: bf16[4,128,64], index: 1, kind: input, shape index: {}]
  %s2 = inlined_call_operand.vmem [shape: f32[1,64], index: 2, kind: input, shape index: {}]
  %s3 = inlined_call_operand.vmem [shape: bf16[2,16,64], index: 3, kind: output, shape index: {}]
  %s4 = sld [smem:[#allocation0]]
  $region45: #{nature_paper_conv_forward.5} parent=0
    _
  %s6 = ssub.s32 1, %s4
  %s7 = scalar_select 0, %s6, %s4
  loop: start=0, step=1, limit=4
  $region2: #{nature_paper_conv_forward.5} parent=0 // loop_pre_header
    _
  $region3: #{nature_paper_conv_forward.5} parent=0 // loop_header
    %s9 = sphi 0, %s13
    %p10 = scmp.ge.s32.totalorder %s9, 4
    %s19 = sphi 0, %s21
    %s22 = sphi 0, %s19
    %s23 = sphi 0, %s22
    %s39 = sphi 0, %s23
    %s43 = sphi 0, %s43
    %s45 = sphi 0, %s43
    %s46 = sphi 0, %s45
    %s60 = sphi 0, %s46
    %s64 = sphi 0, %s64
    %s66 = sphi 0, %s64
    %s67 = sphi 0, %s66
    %s81 = sphi 0, %s67
    %s87 = sphi 0, %s89
    %s90 = sphi 0, %s87
    %s91 = sphi 0, %s90
    %s107 = sphi 0, %s91
  $region4: #{nature_paper_conv_forward.5} parent=0 // loop_header_branch
    %12 = sbr.rel (%p10) target = $region8
  $region5: #{nature_paper_conv_forward.5} parent=0 // loop_body
    %s14 = ssub.s32 %s9, 1
    %s15 = ssub.s32 %s9, 2
    %s16 = sadd.s32 %s9, 1
    %s17 = ssub.s32 %s9, %s16
    %p18 = scmp.eq.s32.totalorder %s17, 0
    %s20 = sadd.s32 %s19, 1
    %s21 = scalar_select %p18, %s19, %s20
    %p24 = pneg %p18
    %p25 = scmp.eq.s32.totalorder %s9, 1
    %p26 = por %p24, %p25
    %p27 = scmp.ne.s32.totalorder %s19, %s22
    %p28 = scmp.eq.s32.totalorder %s9, 0
    %p29 = por %p27, %p28
    %p30 = scmp.ne.s32.totalorder %s19, %s22
    %p31 = scmp.eq.s32.totalorder %s14, 1
    %p32 = por %p30, %p31
    %p33 = scmp.ne.s32.totalorder %s22, %s23
    %p34 = scmp.eq.s32.totalorder %s14, 0
    %p35 = por %p33, %p34
    %p36 = scmp.ne.s32.totalorder %s22, %s23
    %p37 = scmp.eq.s32.totalorder %s15, 1
    %p38 = por %p36, %p37
    %p40 = scmp.ne.s32.totalorder %s23, %s39
    %p41 = scmp.eq.s32.totalorder %s15, 0
    %p42 = por %p40, %p41
    %s44 = sadd.s32 %s43, 1
    %p47 = scmp.eq.s32.totalorder %s9, 1
    %p48 = scmp.ne.s32.totalorder %s43, %s45
    %p49 = scmp.eq.s32.totalorder %s9, 0
    %p50 = por %p48, %p49
    %p51 = scmp.ne.s32.totalorder %s43, %s45
    %p52 = scmp.eq.s32.totalorder %s14, 1
    %p53 = por %p51, %p52
    %p54 = scmp.ne.s32.totalorder %s45, %s46
    %p55 = scmp.eq.s32.totalorder %s14, 0
    %p56 = por %p54, %p55
    %p57 = scmp.ne.s32.totalorder %s45, %s46
    %p58 = scmp.eq.s32.totalorder %s15, 1
    %p59 = por %p57, %p58
    %p61 = scmp.ne.s32.totalorder %s46, %s60
    %p62 = scmp.eq.s32.totalorder %s15, 0
    %p63 = por %p61, %p62
    %s65 = sadd.s32 %s64, 1
    %p68 = scmp.eq.s32.totalorder %s9, 1
    %p69 = scmp.ne.s32.totalorder %s64, %s66
    %p70 = scmp.eq.s32.totalorder %s9, 0
    %p71 = por %p69, %p70
    %p72 = scmp.ne.s32.totalorder %s64, %s66
    %p73 = scmp.eq.s32.totalorder %s14, 1
    %p74 = por %p72, %p73
    %p75 = scmp.ne.s32.totalorder %s66, %s67
    %p76 = scmp.eq.s32.totalorder %s14, 0
    %p77 = por %p75, %p76
    %p78 = scmp.ne.s32.totalorder %s66, %s67
    %p79 = scmp.eq.s32.totalorder %s15, 1
    %p80 = por %p78, %p79
    %p82 = scmp.ne.s32.totalorder %s67, %s81
    %p83 = scmp.eq.s32.totalorder %s15, 0
    %p84 = por %p82, %p83
    %s85 = ssub.s32 %s9, %s16
    %p86 = scmp.eq.s32.totalorder %s85, 0
    %s88 = sadd.s32 %s87, 1
    %s89 = scalar_select %p86, %s87, %s88
    %p92 = pneg %p86
    %p93 = scmp.eq.s32.totalorder %s9, 1
    %p94 = por %p92, %p93
    %p95 = scmp.ne.s32.totalorder %s87, %s90
    %p96 = scmp.eq.s32.totalorder %s9, 0
    %p97 = por %p95, %p96
    %p98 = scmp.ne.s32.totalorder %s87, %s90
    %p99 = scmp.eq.s32.totalorder %s14, 1
    %p100 = por %p98, %p99
    %p101 = scmp.ne.s32.totalorder %s90, %s91
    %p102 = scmp.eq.s32.totalorder %s14, 0
    %p103 = por %p101, %p102
    %p104 = scmp.ne.s32.totalorder %s90, %s91
    %p105 = scmp.eq.s32.totalorder %s15, 1
    %p106 = por %p104, %p105
    %p108 = scmp.ne.s32.totalorder %s91, %s107
    %p109 = scmp.eq.s32.totalorder %s15, 0
    %p110 = por %p108, %p109
    %p111 = scmp.le.s32.totalorder 1, %s9
    %p112 = scmp.lt.s32.totalorder %s9, 3
    %p113 = pnand %p111, %p112
    %p114 = pneg %p113
    // Predicated region
    $region9: #{nature_paper_conv_forward.5} parent=5 // pred_check
      _
    $region10: #{nature_paper_conv_forward.5} parent=5 // pred_check_branch
      %116 = sbr.rel (%p113) target = $region12
    $region11: #{nature_paper_conv_forward.5} parent=5 // pred_region
      %s117 = ssub.s32 %s9, 1
      // Predicated region
      $region13: #{nature_paper_conv_forward.5} parent=11 // pred_check
        %p118 = pneg %p56
      $region14: #{nature_paper_conv_forward.5} parent=11 // pred_check_branch
        %120 = sbr.rel (%p118) target = $region16
      $region15: #{nature_paper_conv_forward.5} parent=11 // pred_region
        _
      $region16: #{nature_paper_conv_forward.5} parent=11 // pred_fallthru
        _
      // Predicated region
      $region17: #{nature_paper_conv_forward.5} parent=11 // pred_check
        %p121 = pneg %p77
      $region18: #{nature_paper_conv_forward.5} parent=11 // pred_check_branch
        %123 = sbr.rel (%p121) target = $region20
      $region19: #{nature_paper_conv_forward.5} parent=11 // pred_region
        _
      $region20: #{nature_paper_conv_forward.5} parent=11 // pred_fallthru
        _
    $region12: #{nature_paper_conv_forward.5} parent=5 // pred_fallthru
      _
    %p124 = scmp.lt.s32.totalorder %s9, 2
    // Predicated region
    $region21: #{nature_paper_conv_forward.5} parent=5 // pred_check
      %p125 = pneg %p124
    $region22: #{nature_paper_conv_forward.5} parent=5 // pred_check_branch
      %127 = sbr.rel (%p125) target = $region24
    $region23: #{nature_paper_conv_forward.5} parent=5 // pred_region
      // Predicated region
      $region25: #{nature_paper_conv_forward.5} parent=23 // pred_check
        %p128 = pneg %p29
      $region26: #{nature_paper_conv_forward.5} parent=23 // pred_check_branch
        %130 = sbr.rel (%p128) target = $region28
      $region27: #{nature_paper_conv_forward.5} parent=23 // pred_region
        %p131 = scmp.lt.s32.totalorder %s9, 1
        %s132 = scalar_select %p131, %s9, 1
        %s133 = smul.addr %s132, 4
        %s134 = smul.addr %s133, 4
        %s135 = scalar_lea.vmem %s0, %s134
      $region28: #{nature_paper_conv_forward.5} parent=23 // pred_fallthru
        _
    $region24: #{nature_paper_conv_forward.5} parent=5 // pred_fallthru
      _
    %p136 = scmp.le.s32.totalorder 1, %s9
    %p137 = scmp.lt.s32.totalorder %s9, 3
    %p138 = pnand %p136, %p137
    %p139 = pneg %p138
    // Predicated region
    $region29: #{nature_paper_conv_forward.5} parent=5 // pred_check
      _
    $region30: #{nature_paper_conv_forward.5} parent=5 // pred_check_branch
      %141 = sbr.rel (%p138) target = $region32
    $region31: #{nature_paper_conv_forward.5} parent=5 // pred_region
      %s142 = ssub.s32 %s9, 1
      %p143 = scmp.lt.s32.totalorder %s14, 1
      %s144 = scalar_select %p143, %s14, 1
      %s145 = smul.addr %s144, 4
      %s146 = smul.addr %s145, 4
      %s147 = scalar_lea.vmem %s0, %s146
      %p148 = pneg %p35
      %p149 = pneg %p32
      %p150 = pneg %p56
      %p151 = pneg %p53
      %p152 = pneg %p77
      %p153 = pneg %p74
      %p154 = pneg %p103
      %p155 = pneg %p100
      %p156 = scmp.lt.s32.totalorder %s14, 1
      %s157 = scalar_select %p156, %s14, 1
      %s158 = smul.addr %s157, 2
      %s159 = smul.addr %s158, 4
      %s160 = scalar_lea.vmem %s3, %s159
      %p161 = scmp.lt.s32.totalorder %s14, 1
      %s162 = scalar_select %p161, %s14, 1
      %s163 = smul.addr %s162, 4
      %s164 = smul.addr %s163, 4
      %s165 = scalar_lea.vmem %s0, %s164
      %p166 = scmp.lt.s32.totalorder %s14, 1
      %s167 = scalar_select %p166, %s14, 1
      %s168 = smul.addr %s167, 2
      %s169 = smul.addr %s168, 4
      %s170 = scalar_lea.vmem %s3, %s169
      %v172 = vld [vmem:[%s165] sm:$0xf]
      %v173 = vld [vmem:[%s165 + $0x4] sm:$0xf]
      %v174 = vld [vmem:[%s1] sm:$0xf]
      %v175 = vld [vmem:[%s1 + $0x4] sm:$0xf]
      %v176 = vld [vmem:[%s1 + $0x8] sm:$0xf]
      %v177 = vld [vmem:[%s1 + $0xc] sm:$0xf]
      %v178 = vld [vmem:[%s1 + $0x10] sm:$0xf]
      %v179 = vld [vmem:[%s1 + $0x14] sm:$0xf]
      %v180 = vld [vmem:[%s1 + $0x18] sm:$0xf]
      %v181 = vld [vmem:[%s1 + $0x1c] sm:$0xf]
      %v182 = vld [vmem:[%s1 + $0x20] sm:$0xf]
      %v183 = vld [vmem:[%s1 + $0x24] sm:$0xf]
      %v184 = vld [vmem:[%s1 + $0x28] sm:$0xf]
      %v185 = vld [vmem:[%s1 + $0x2c] sm:$0xf]
      %v186 = vld [vmem:[%s1 + $0x30] sm:$0xf]
      %v187 = vld [vmem:[%s1 + $0x34] sm:$0xf]
      %v188 = vld [vmem:[%s1 + $0x38] sm:$0xf]
      %v189 = vld [vmem:[%s1 + $0x3c] sm:$0xf]
      %v190 = vld [vmem:[%s165 + $0x8] sm:$0x1]
      %s191 = scalar_lea.vmem %s1, 64
      %v192 = vld [vmem:[%s191] sm:$0xf]
      %v193 = vld [vmem:[%s191 + $0x4] sm:$0xf]
      %v194 = vld [vmem:[%s191 + $0x8] sm:$0xf]
      %v195 = vld [vmem:[%s191 + $0xc] sm:$0xf]
      %v196 = vld [vmem:[%s191 + $0x10] sm:$0xf]
      %v197 = vld [vmem:[%s191 + $0x14] sm:$0xf]
      %v198 = vld [vmem:[%s191 + $0x18] sm:$0xf]
      %v199 = vld [vmem:[%s191 + $0x1c] sm:$0xf]
      %v200 = vld [vmem:[%s191 + $0x20] sm:$0xf]
      %v201 = vld [vmem:[%s191 + $0x24] sm:$0xf]
      %v202 = vld [vmem:[%s191 + $0x28] sm:$0xf]
      %v203 = vld [vmem:[%s191 + $0x2c] sm:$0xf]
      %v204 = vld [vmem:[%s191 + $0x30] sm:$0xf]
      %v205 = vld [vmem:[%s191 + $0x34] sm:$0xf]
      %v206 = vld [vmem:[%s191 + $0x38] sm:$0xf]
      %v207 = vld [vmem:[%s191 + $0x3c] sm:$0xf]
      %v211 = vunpack.c.l.b16 %v172
      %v212 = vunpack.c.l.b16 %v173
      %v213 = vunpack.c.l.b16 %v190
      %v214 = vpack.c.b16 %v212, %v211
      %v215 = vpack.c.b16 %v213, %v213
      %vm216 = vsmask.f32 7424
      %v218 = vshrl.u32 %v214, 16
      %v220 = vshll.u32 %v214, 16
      %v222 = vrot.slane %v220, 1
      %v223 = vor.u32 %v218, %v222
      %v225 = vshll.u32 %v215, 16
      %v227 = vrot.slane %v225, 1
      %v228 = vsel %vm216, %v223, %v227
      %v246 = vunpack.c.l.b16 %v192
      %v247 = vunpack.c.l.b16 %v193
      %v248 = vunpack.c.l.b16 %v194
      %v249 = vunpack.c.l.b16 %v195
      %v250 = vunpack.c.l.b16 %v196
      %v251 = vunpack.c.l.b16 %v197
      %v252 = vunpack.c.l.b16 %v198
      %v253 = vunpack.c.l.b16 %v199
      %v254 = vunpack.c.l.b16 %v200
      %v255 = vunpack.c.l.b16 %v201
      %v256 = vunpack.c.l.b16 %v202
      %v257 = vunpack.c.l.b16 %v203
      %v258 = vunpack.c.l.b16 %v204
      %v259 = vunpack.c.l.b16 %v205
      %v260 = vunpack.c.l.b16 %v206
      %v261 = vunpack.c.l.b16 %v207
      %v262 = vpack.c.b16 %v247, %v246
      %v263 = vpack.c.b16 %v249, %v248
      %v264 = vpack.c.b16 %v251, %v250
      %v265 = vpack.c.b16 %v253, %v252
      %v266 = vpack.c.b16 %v255, %v254
      %v267 = vpack.c.b16 %v257, %v256
      %v268 = vpack.c.b16 %v259, %v258
      %v269 = vpack.c.b16 %v261, %v260
      %278 = vmatprep.subr.bf16.mxu0 0
      %279 = vmatpush1.bf16.msra.mxu0 %v269
      %280 = vmatprep.subr.bf16.mxu0 0
      %281 = vmatpush1.bf16.msra.mxu0 %v268
      %282 = vmatprep.subr.bf16.mxu0 0
      %283 = vmatpush1.bf16.msra.mxu0 %v267
      %284 = vmatprep.subr.bf16.mxu0 0
      %285 = vmatpush1.bf16.msra.mxu0 %v266
      %286 = vmatprep.subr.bf16.mxu0 0
      %287 = vmatpush1.bf16.msra.mxu0 %v265
      %288 = vmatprep.subr.bf16.mxu0 0
      %289 = vmatpush1.bf16.msra.mxu0 %v264
      %290 = vmatprep.subr.bf16.mxu0 0
      %291 = vmatpush1.bf16.msra.mxu0 %v263
      %292 = vmatprep.subr.bf16.mxu0 0
      %293 = vmatpush1.bf16.msra.mxu0 %v262
      %294 = vmatprep.subr.bf16.mxu0 0
      %295 = vmatpush2.bf16.msra.mxu0 0
      %296 = vmatprep.subr.bf16.mxu0 0
      %297 = vmatpush2.bf16.msra.mxu0 0
      %298 = vmatprep.subr.bf16.mxu0 0
      %299 = vmatpush2.bf16.msra.mxu0 0
      %300 = vmatprep.subr.bf16.mxu0 0
      %301 = vmatpush2.bf16.msra.mxu0 0
      %302 = vmatprep.subr.bf16.mxu0 0
      %303 = vmatpush2.bf16.msra.mxu0 0
      %304 = vmatprep.subr.bf16.mxu0 0
      %305 = vmatpush2.bf16.msra.mxu0 0
      %306 = vmatprep.subr.bf16.mxu0 0
      %307 = vmatpush2.bf16.msra.mxu0 0
      %308 = vmatprep.subr.bf16.mxu0 0
      %309 = vmatpush2.bf16.msra.mxu0 0
      %310 = vmatprep.mubr.bf16.mxu0 0
      %311 = vmatmul.mubr.bf16.gmra.mxu0 %v228
      %v312 = vpop.f32.mrf.mxu0
      %v313 = vadd.f32 0.0, %v312
      %v314 = vpop.f32.mrf.mxu0
      %v315 = vpop.f32.mrf.mxu0
      %v316 = vadd.f32 0.0, %v315
      %v317 = vpop.f32.mrf.mxu0
      %318 = vdwg.mxu0
      %v336 = vunpack.c.l.b16 %v174
      %v337 = vunpack.c.l.b16 %v175
      %v338 = vunpack.c.l.b16 %v176
      %v339 = vunpack.c.l.b16 %v177
      %v340 = vunpack.c.l.b16 %v178
      %v341 = vunpack.c.l.b16 %v179
      %v342 = vunpack.c.l.b16 %v180
      %v343 = vunpack.c.l.b16 %v181
      %v344 = vunpack.c.l.b16 %v182
      %v345 = vunpack.c.l.b16 %v183
      %v346 = vunpack.c.l.b16 %v184
      %v347 = vunpack.c.l.b16 %v185
      %v348 = vunpack.c.l.b16 %v186
      %v349 = vunpack.c.l.b16 %v187
      %v350 = vunpack.c.l.b16 %v188
      %v351 = vunpack.c.l.b16 %v189
      %v352 = vpack.c.b16 %v337, %v336
      %v353 = vpack.c.b16 %v339, %v338
      %v354 = vpack.c.b16 %v341, %v340
      %v355 = vpack.c.b16 %v343, %v342
      %v356 = vpack.c.b16 %v345, %v344
      %v357 = vpack.c.b16 %v347, %v346
      %v358 = vpack.c.b16 %v349, %v348
      %v359 = vpack.c.b16 %v351, %v350
      %368 = vmatprep.subr.bf16.mxu0 0
      %369 = vmatpush1.bf16.msra.mxu0 %v359
      %370 = vmatprep.subr.bf16.mxu0 0
      %371 = vmatpush1.bf16.msra.mxu0 %v358
      %372 = vmatprep.subr.bf16.mxu0 0
      %373 = vmatpush1.bf16.msra.mxu0 %v357
      %374 = vmatprep.subr.bf16.mxu0 0
      %375 = vmatpush1.bf16.msra.mxu0 %v356
      %376 = vmatprep.subr.bf16.mxu0 0
      %377 = vmatpush1.bf16.msra.mxu0 %v355
      %378 = vmatprep.subr.bf16.mxu0 0
      %379 = vmatpush1.bf16.msra.mxu0 %v354
      %380 = vmatprep.subr.bf16.mxu0 0
      %381 = vmatpush1.bf16.msra.mxu0 %v353
      %382 = vmatprep.subr.bf16.mxu0 0
      %383 = vmatpush1.bf16.msra.mxu0 %v352
      %384 = vmatprep.subr.bf16.mxu0 0
      %385 = vmatpush2.bf16.msra.mxu0 0
      %386 = vmatprep.subr.bf16.mxu0 0
      %387 = vmatpush2.bf16.msra.mxu0 0
      %388 = vmatprep.subr.bf16.mxu0 0
      %389 = vmatpush2.bf16.msra.mxu0 0
      %390 = vmatprep.subr.bf16.mxu0 0
      %391 = vmatpush2.bf16.msra.mxu0 0
      %392 = vmatprep.subr.bf16.mxu0 0
      %393 = vmatpush2.bf16.msra.mxu0 0
      %394 = vmatprep.subr.bf16.mxu0 0
      %395 = vmatpush2.bf16.msra.mxu0 0
      %396 = vmatprep.subr.bf16.mxu0 0
      %397 = vmatpush2.bf16.msra.mxu0 0
      %398 = vmatprep.subr.bf16.mxu0 0
      %399 = vmatpush2.bf16.msra.mxu0 0
      %400 = vmatprep.mubr.bf16.mxu0 0
      %401 = vmatmul.mubr.bf16.gmra.mxu0 %v214
      %v402 = vpop.f32.mrf.mxu0
      %v403 = vadd.f32 %v313, %v402
      %v404 = vpop.f32.mrf.mxu0
      %v405 = vpop.f32.mrf.mxu0
      %v406 = vadd.f32 %v316, %v405
      %v407 = vpop.f32.mrf.mxu0
      %408 = vdwg.mxu0
      %v409 = vld [vmem:[%s165] sm:$0xc]
      %v410 = vld [vmem:[%s165 + $0x8] sm:$0x3]
      %s411 = scalar_lea.vmem %s1, 128
      %v412 = vld [vmem:[%s411] sm:$0xf]
      %v413 = vld [vmem:[%s411 + $0x4] sm:$0xf]
      %v414 = vld [vmem:[%s411 + $0x8] sm:$0xf]
      %v415 = vld [vmem:[%s411 + $0xc] sm:$0xf]
      %v416 = vld [vmem:[%s411 + $0x10] sm:$0xf]
      %v417 = vld [vmem:[%s411 + $0x14] sm:$0xf]
      %v418 = vld [vmem:[%s411 + $0x18] sm:$0xf]
      %v419 = vld [vmem:[%s411 + $0x1c] sm:$0xf]
      %v420 = vld [vmem:[%s411 + $0x20] sm:$0xf]
      %v421 = vld [vmem:[%s411 + $0x24] sm:$0xf]
      %v422 = vld [vmem:[%s411 + $0x28] sm:$0xf]
      %v423 = vld [vmem:[%s411 + $0x2c] sm:$0xf]
      %v424 = vld [vmem:[%s411 + $0x30] sm:$0xf]
      %v425 = vld [vmem:[%s411 + $0x34] sm:$0xf]
      %v426 = vld [vmem:[%s411 + $0x38] sm:$0xf]
      %v427 = vld [vmem:[%s411 + $0x3c] sm:$0xf]
      %v430 = vunpack.c.l.b16 %v409
      %v431 = vunpack.c.l.b16 %v410
      %v432 = vpack.c.b16 %v212, %v430
      %v433 = vpack.c.b16 %v431, %v431
      %vm434 = vcmask 1045504
      %v435 = vrot.slane %v432, 2
      %v436 = vrot.slane %v433, 2
      %v437 = vsel %vm434, %v435, %v436
      %v455 = vunpack.c.l.b16 %v412
      %v456 = vunpack.c.l.b16 %v413
      %v457 = vunpack.c.l.b16 %v414
      %v458 = vunpack.c.l.b16 %v415
      %v459 = vunpack.c.l.b16 %v416
      %v460 = vunpack.c.l.b16 %v417
      %v461 = vunpack.c.l.b16 %v418
      %v462 = vunpack.c.l.b16 %v419
      %v463 = vunpack.c.l.b16 %v420
      %v464 = vunpack.c.l.b16 %v421
      %v465 = vunpack.c.l.b16 %v422
      %v466 = vunpack.c.l.b16 %v423
      %v467 = vunpack.c.l.b16 %v424
      %v468 = vunpack.c.l.b16 %v425
      %v469 = vunpack.c.l.b16 %v426
      %v470 = vunpack.c.l.b16 %v427
      %v471 = vpack.c.b16 %v456, %v455
      %v472 = vpack.c.b16 %v458, %v457
      %v473 = vpack.c.b16 %v460, %v459
      %v474 = vpack.c.b16 %v462, %v461
      %v475 = vpack.c.b16 %v464, %v463
      %v476 = vpack.c.b16 %v466, %v465
      %v477 = vpack.c.b16 %v468, %v467
      %v478 = vpack.c.b16 %v470, %v469
      %487 = vmatprep.subr.bf16.mxu0 0
      %488 = vmatpush1.bf16.msra.mxu0 %v478
      %489 = vmatprep.subr.bf16.mxu0 0
      %490 = vmatpush1.bf16.msra.mxu0 %v477
      %491 = vmatprep.subr.bf16.mxu0 0
      %492 = vmatpush1.bf16.msra.mxu0 %v476
      %493 = vmatprep.subr.bf16.mxu0 0
      %494 = vmatpush1.bf16.msra.mxu0 %v475
      %495 = vmatprep.subr.bf16.mxu0 0
      %496 = vmatpush1.bf16.msra.mxu0 %v474
      %497 = vmatprep.subr.bf16.mxu0 0
      %498 = vmatpush1.bf16.msra.mxu0 %v473
      %499 = vmatprep.subr.bf16.mxu0 0
      %500 = vmatpush1.bf16.msra.mxu0 %v472
      %501 = vmatprep.subr.bf16.mxu0 0
      %502 = vmatpush1.bf16.msra.mxu0 %v471
      %503 = vmatprep.subr.bf16.mxu0 0
      %504 = vmatpush2.bf16.msra.mxu0 0
      %505 = vmatprep.subr.bf16.mxu0 0
      %506 = vmatpush2.bf16.msra.mxu0 0
      %507 = vmatprep.subr.bf16.mxu0 0
      %508 = vmatpush2.bf16.msra.mxu0 0
      %509 = vmatprep.subr.bf16.mxu0 0
      %510 = vmatpush2.bf16.msra.mxu0 0
      %511 = vmatprep.subr.bf16.mxu0 0
      %512 = vmatpush2.bf16.msra.mxu0 0
      %513 = vmatprep.subr.bf16.mxu0 0
      %514 = vmatpush2.bf16.msra.mxu0 0
      %515 = vmatprep.subr.bf16.mxu0 0
      %516 = vmatpush2.bf16.msra.mxu0 0
      %517 = vmatprep.subr.bf16.mxu0 0
      %518 = vmatpush2.bf16.msra.mxu0 0
      %519 = vmatprep.mubr.bf16.mxu0 0
      %520 = vmatmul.mubr.bf16.gmra.mxu0 %v437
      %v521 = vpop.f32.mrf.mxu0
      %v522 = vadd.f32 0.0, %v521
      %v523 = vpop.f32.mrf.mxu0
      %v524 = vpop.f32.mrf.mxu0
      %v525 = vadd.f32 0.0, %v524
      %v526 = vpop.f32.mrf.mxu0
      %527 = vdwg.mxu0
      %v528 = vadd.f32 %v403, %v522
      %v529 = vadd.f32 %v406, %v525
      %v530 = vld [vmem:[%s165 + $0x8] sm:$0x7]
      %s531 = scalar_lea.vmem %s1, 192
      %v532 = vld [vmem:[%s531] sm:$0xf]
      %v533 = vld [vmem:[%s531 + $0x4] sm:$0xf]
      %v534 = vld [vmem:[%s531 + $0x8] sm:$0xf]
      %v535 = vld [vmem:[%s531 + $0xc] sm:$0xf]
      %v536 = vld [vmem:[%s531 + $0x10] sm:$0xf]
      %v537 = vld [vmem:[%s531 + $0x14] sm:$0xf]
      %v538 = vld [vmem:[%s531 + $0x18] sm:$0xf]
      %v539 = vld [vmem:[%s531 + $0x1c] sm:$0xf]
      %v540 = vld [vmem:[%s531 + $0x20] sm:$0xf]
      %v541 = vld [vmem:[%s531 + $0x24] sm:$0xf]
      %v542 = vld [vmem:[%s531 + $0x28] sm:$0xf]
      %v543 = vld [vmem:[%s531 + $0x2c] sm:$0xf]
      %v544 = vld [vmem:[%s531 + $0x30] sm:$0xf]
      %v545 = vld [vmem:[%s531 + $0x34] sm:$0xf]
      %v546 = vld [vmem:[%s531 + $0x38] sm:$0xf]
      %v547 = vld [vmem:[%s531 + $0x3c] sm:$0xf]
      %v549 = vunpack.c.l.b16 %v530
      %v550 = vpack.c.b16 %v549, %v549
      %vm551 = vsmask.f32 5376
      %v553 = vshrl.u32 %v432, 16
      %v555 = vrot.slane %v553, 2
      %v556 = vshll.u32 %v432, 16
      %v558 = vrot.slane %v556, 3
      %v559 = vor.u32 %v555, %v558
      %v561 = vshrl.u32 %v550, 16
      %v563 = vrot.slane %v561, 2
      %v564 = vshll.u32 %v550, 16
      %v566 = vrot.slane %v564, 3
      %v567 = vor.u32 %v563, %v566
      %v568 = vsel %vm551, %v559, %v567
      %v586 = vunpack.c.l.b16 %v532
      %v587 = vunpack.c.l.b16 %v533
      %v588 = vunpack.c.l.b16 %v534
      %v589 = vunpack.c.l.b16 %v535
      %v590 = vunpack.c.l.b16 %v536
      %v591 = vunpack.c.l.b16 %v537
      %v592 = vunpack.c.l.b16 %v538
      %v593 = vunpack.c.l.b16 %v539
      %v594 = vunpack.c.l.b16 %v540
      %v595 = vunpack.c.l.b16 %v541
      %v596 = vunpack.c.l.b16 %v542
      %v597 = vunpack.c.l.b16 %v543
      %v598 = vunpack.c.l.b16 %v544
      %v599 = vunpack.c.l.b16 %v545
      %v600 = vunpack.c.l.b16 %v546
      %v601 = vunpack.c.l.b16 %v547
      %v602 = vpack.c.b16 %v587, %v586
      %v603 = vpack.c.b16 %v589, %v588
      %v604 = vpack.c.b16 %v591, %v590
      %v605 = vpack.c.b16 %v593, %v592
      %v606 = vpack.c.b16 %v595, %v594
      %v607 = vpack.c.b16 %v597, %v596
      %v608 = vpack.c.b16 %v599, %v598
      %v609 = vpack.c.b16 %v601, %v600
      %618 = vmatprep.subr.bf16.mxu0 0
      %619 = vmatpush1.bf16.msra.mxu0 %v609
      %620 = vmatprep.subr.bf16.mxu0 0
      %621 = vmatpush1.bf16.msra.mxu0 %v608
      %622 = vmatprep.subr.bf16.mxu0 0
      %623 = vmatpush1.bf16.msra.mxu0 %v607
      %624 = vmatprep.subr.bf16.mxu0 0
      %625 = vmatpush1.bf16.msra.mxu0 %v606
      %626 = vmatprep.subr.bf16.mxu0 0
      %627 = vmatpush1.bf16.msra.mxu0 %v605
      %628 = vmatprep.subr.bf16.mxu0 0
      %629 = vmatpush1.bf16.msra.mxu0 %v604
      %630 = vmatprep.subr.bf16.mxu0 0
      %631 = vmatpush1.bf16.msra.mxu0 %v603
      %632 = vmatprep.subr.bf16.mxu0 0
      %633 = vmatpush1.bf16.msra.mxu0 %v602
      %634 = vmatprep.subr.bf16.mxu0 0
      %635 = vmatpush2.bf16.msra.mxu0 0
      %636 = vmatprep.subr.bf16.mxu0 0
      %637 = vmatpush2.bf16.msra.mxu0 0
      %638 = vmatprep.subr.bf16.mxu0 0
      %639 = vmatpush2.bf16.msra.mxu0 0
      %640 = vmatprep.subr.bf16.mxu0 0
      %641 = vmatpush2.bf16.msra.mxu0 0
      %642 = vmatprep.subr.bf16.mxu0 0
      %643 = vmatpush2.bf16.msra.mxu0 0
      %644 = vmatprep.subr.bf16.mxu0 0
      %645 = vmatpush2.bf16.msra.mxu0 0
      %646 = vmatprep.subr.bf16.mxu0 0
      %647 = vmatpush2.bf16.msra.mxu0 0
      %648 = vmatprep.subr.bf16.mxu0 0
      %649 = vmatpush2.bf16.msra.mxu0 0
      %650 = vmatprep.mubr.bf16.mxu0 0
      %651 = vmatmul.mubr.bf16.gmra.mxu0 %v568
      %v652 = vpop.f32.mrf.mxu0
      %v653 = vadd.f32 0.0, %v652
      %v654 = vpop.f32.mrf.mxu0
      %v655 = vpop.f32.mrf.mxu0
      %v656 = vadd.f32 0.0, %v655
      %v657 = vpop.f32.mrf.mxu0
      %658 = vdwg.mxu0
      %v659 = vadd.f32 %v528, %v653
      %v660 = vadd.f32 %v529, %v656
      %v661 = vld [vmem:[%s2] sm:$0x1]
      %v663 = vlaneseq
      %v664 = vshrl.u32 %v663, 7
      %v665 = vsub.s32 0, %v664
      %v666 = vrot.slane %v661, %v665
      %v668 = vadd.f32 %v659, %v666
      %v669 = vadd.f32 %v660, %v666
      %v670 = vmax.f32 %v668, 0.0
      %v671 = vmax.f32 %v669, 0.0
      %v672 = vpack.c.bf16 %v671, %v670
      %v674 = vunpack.c.l.b16 %v672
      %v675 = vunpack.c.h.b16 %v672
      %v676 = vpack.c.b16 %v674, %v674
      %v677 = vpack.c.b16 %v675, %v675
      %vm680 = vcmask 519168
      %681 = vst.msk [vmem:[%s170] sm:$0xf] %vm680, %v676
      %682 = vst.msk [vmem:[%s170 + $0x4] sm:$0xf] %vm680, %v677
      %p683 = scmp.lt.s32.totalorder %s14, 1
      %s684 = scalar_select %p683, %s14, 1
      %s685 = smul.addr %s684, 2
      %s686 = smul.addr %s685, 4
      %s687 = scalar_lea.vmem %s3, %s686
      // Predicated region
      $region33: #{nature_paper_conv_forward.5} parent=31 // pred_check
        %p688 = pneg %p100
      $region34: #{nature_paper_conv_forward.5} parent=31 // pred_check_branch
        %690 = sbr.rel (%p688) target = $region36
      $region35: #{nature_paper_conv_forward.5} parent=31 // pred_region
        _
      $region36: #{nature_paper_conv_forward.5} parent=31 // pred_fallthru
        _
    $region32: #{nature_paper_conv_forward.5} parent=5 // pred_fallthru
      _
    %p691 = scmp.le.s32.totalorder 2, %s9
    // Predicated region
    $region37: #{nature_paper_conv_forward.5} parent=5 // pred_check
      %p692 = pneg %p691
    $region38: #{nature_paper_conv_forward.5} parent=5 // pred_check_branch
      %694 = sbr.rel (%p692) target = $region40
    $region39: #{nature_paper_conv_forward.5} parent=5 // pred_region
      %s695 = ssub.s32 %s9, 2
      // Predicated region
      $region41: #{nature_paper_conv_forward.5} parent=39 // pred_check
        %p696 = pneg %p106
      $region42: #{nature_paper_conv_forward.5} parent=39 // pred_check_branch
        %698 = sbr.rel (%p696) target = $region44
      $region43: #{nature_paper_conv_forward.5} parent=39 // pred_region
        %p699 = scmp.lt.s32.totalorder %s15, 1
        %s700 = scalar_select %p699, %s15, 1
        %s701 = smul.addr %s700, 2
        %s702 = smul.addr %s701, 4
        %s703 = scalar_lea.vmem %s3, %s702
      $region44: #{nature_paper_conv_forward.5} parent=39 // pred_fallthru
        _
    $region40: #{nature_paper_conv_forward.5} parent=5 // pred_fallthru
      _
  $region6: #{nature_paper_conv_forward.5} parent=0 // loop_footer
    %s13 = sadd.s32 1, %s9
  $region7: #{nature_paper_conv_forward.5} parent=0 // loop_footer_branch
    %8 = sbr.rel target = $region3
  $region8: #{nature_paper_conv_forward.5} parent=0 // loop_exit
    _

// kernel: nature_paper_conv_forward.6
$region0: #{nature_paper_conv_forward.6}
  #allocation0 [shape = 'u32[]', space=smem, size = 0x4, offset = 0x4, fixed_abs, tag = 'smem constant byte address 0x4 - core index']
  #allocation1 [shape = 'u32[144,128]{1,0:T(1,128)}', space=vmem, size = 0x12000, scoped, tag = 'internal scratch']
  %s0 = inlined_call_operand.vmem [shape: bf16[2,32,64], index: 0, kind: input, shape index: {}]
  %s1 = inlined_call_operand.vmem [shape: bf16[9,64,64], index: 1, kind: input, shape index: {}]
  %s2 = inlined_call_operand.vmem [shape: f32[1,64], index: 2, kind: input, shape index: {}]
  %s3 = inlined_call_operand.vmem [shape: bf16[2,16,64], index: 3, kind: output, shape index: {}]
  %s4 = sld [smem:[#allocation0]]
  $region45: #{nature_paper_conv_forward.6} parent=0
    _
  %s6 = ssub.s32 1, %s4
  %s7 = scalar_select 0, %s6, %s4
  loop: start=0, step=1, limit=4
  $region2: #{nature_paper_conv_forward.6} parent=0 // loop_pre_header
    _
  $region3: #{nature_paper_conv_forward.6} parent=0 // loop_header
    %s9 = sphi 0, %s13
    %p10 = scmp.ge.s32.totalorder %s9, 4
    %s19 = sphi 0, %s21
    %s22 = sphi 0, %s19
    %s23 = sphi 0, %s22
    %s39 = sphi 0, %s23
    %s43 = sphi 0, %s43
    %s45 = sphi 0, %s43
    %s46 = sphi 0, %s45
    %s60 = sphi 0, %s46
    %s64 = sphi 0, %s64
    %s66 = sphi 0, %s64
    %s67 = sphi 0, %s66
    %s81 = sphi 0, %s67
    %s87 = sphi 0, %s89
    %s90 = sphi 0, %s87
    %s91 = sphi 0, %s90
    %s107 = sphi 0, %s91
  $region4: #{nature_paper_conv_forward.6} parent=0 // loop_header_branch
    %12 = sbr.rel (%p10) target = $region8
  $region5: #{nature_paper_conv_forward.6} parent=0 // loop_body
    %s14 = ssub.s32 %s9, 1
    %s15 = ssub.s32 %s9, 2
    %s16 = sadd.s32 %s9, 1
    %s17 = ssub.s32 %s9, %s16
    %p18 = scmp.eq.s32.totalorder %s17, 0
    %s20 = sadd.s32 %s19, 1
    %s21 = scalar_select %p18, %s19, %s20
    %p24 = pneg %p18
    %p25 = scmp.eq.s32.totalorder %s9, 1
    %p26 = por %p24, %p25
    %p27 = scmp.ne.s32.totalorder %s19, %s22
    %p28 = scmp.eq.s32.totalorder %s9, 0
    %p29 = por %p27, %p28
    %p30 = scmp.ne.s32.totalorder %s19, %s22
    %p31 = scmp.eq.s32.totalorder %s14, 1
    %p32 = por %p30, %p31
    %p33 = scmp.ne.s32.totalorder %s22, %s23
    %p34 = scmp.eq.s32.totalorder %s14, 0
    %p35 = por %p33, %p34
    %p36 = scmp.ne.s32.totalorder %s22, %s23
    %p37 = scmp.eq.s32.totalorder %s15, 1
    %p38 = por %p36, %p37
    %p40 = scmp.ne.s32.totalorder %s23, %s39
    %p41 = scmp.eq.s32.totalorder %s15, 0
    %p42 = por %p40, %p41
    %s44 = sadd.s32 %s43, 1
    %p47 = scmp.eq.s32.totalorder %s9, 1
    %p48 = scmp.ne.s32.totalorder %s43, %s45
    %p49 = scmp.eq.s32.totalorder %s9, 0
    %p50 = por %p48, %p49
    %p51 = scmp.ne.s32.totalorder %s43, %s45
    %p52 = scmp.eq.s32.totalorder %s14, 1
    %p53 = por %p51, %p52
    %p54 = scmp.ne.s32.totalorder %s45, %s46
    %p55 = scmp.eq.s32.totalorder %s14, 0
    %p56 = por %p54, %p55
    %p57 = scmp.ne.s32.totalorder %s45, %s46
    %p58 = scmp.eq.s32.totalorder %s15, 1
    %p59 = por %p57, %p58
    %p61 = scmp.ne.s32.totalorder %s46, %s60
    %p62 = scmp.eq.s32.totalorder %s15, 0
    %p63 = por %p61, %p62
    %s65 = sadd.s32 %s64, 1
    %p68 = scmp.eq.s32.totalorder %s9, 1
    %p69 = scmp.ne.s32.totalorder %s64, %s66
    %p70 = scmp.eq.s32.totalorder %s9, 0
    %p71 = por %p69, %p70
    %p72 = scmp.ne.s32.totalorder %s64, %s66
    %p73 = scmp.eq.s32.totalorder %s14, 1
    %p74 = por %p72, %p73
    %p75 = scmp.ne.s32.totalorder %s66, %s67
    %p76 = scmp.eq.s32.totalorder %s14, 0
    %p77 = por %p75, %p76
    %p78 = scmp.ne.s32.totalorder %s66, %s67
    %p79 = scmp.eq.s32.totalorder %s15, 1
    %p80 = por %p78, %p79
    %p82 = scmp.ne.s32.totalorder %s67, %s81
    %p83 = scmp.eq.s32.totalorder %s15, 0
    %p84 = por %p82, %p83
    %s85 = ssub.s32 %s9, %s16
    %p86 = scmp.eq.s32.totalorder %s85, 0
    %s88 = sadd.s32 %s87, 1
    %s89 = scalar_select %p86, %s87, %s88
    %p92 = pneg %p86
    %p93 = scmp.eq.s32.totalorder %s9, 1
    %p94 = por %p92, %p93
    %p95 = scmp.ne.s32.totalorder %s87, %s90
    %p96 = scmp.eq.s32.totalorder %s9, 0
    %p97 = por %p95, %p96
    %p98 = scmp.ne.s32.totalorder %s87, %s90
    %p99 = scmp.eq.s32.totalorder %s14, 1
    %p100 = por %p98, %p99
    %p101 = scmp.ne.s32.totalorder %s90, %s91
    %p102 = scmp.eq.s32.totalorder %s14, 0
    %p103 = por %p101, %p102
    %p104 = scmp.ne.s32.totalorder %s90, %s91
    %p105 = scmp.eq.s32.totalorder %s15, 1
    %p106 = por %p104, %p105
    %p108 = scmp.ne.s32.totalorder %s91, %s107
    %p109 = scmp.eq.s32.totalorder %s15, 0
    %p110 = por %p108, %p109
    %p111 = scmp.le.s32.totalorder 1, %s9
    %p112 = scmp.lt.s32.totalorder %s9, 3
    %p113 = pnand %p111, %p112
    %p114 = pneg %p113
    // Predicated region
    $region9: #{nature_paper_conv_forward.6} parent=5 // pred_check
      _
    $region10: #{nature_paper_conv_forward.6} parent=5 // pred_check_branch
      %116 = sbr.rel (%p113) target = $region12
    $region11: #{nature_paper_conv_forward.6} parent=5 // pred_region
      %s117 = ssub.s32 %s9, 1
      // Predicated region
      $region13: #{nature_paper_conv_forward.6} parent=11 // pred_check
        %p118 = pneg %p56
      $region14: #{nature_paper_conv_forward.6} parent=11 // pred_check_branch
        %120 = sbr.rel (%p118) target = $region16
      $region15: #{nature_paper_conv_forward.6} parent=11 // pred_region
        _
      $region16: #{nature_paper_conv_forward.6} parent=11 // pred_fallthru
        _
      // Predicated region
      $region17: #{nature_paper_conv_forward.6} parent=11 // pred_check
        %p121 = pneg %p77
      $region18: #{nature_paper_conv_forward.6} parent=11 // pred_check_branch
        %123 = sbr.rel (%p121) target = $region20
      $region19: #{nature_paper_conv_forward.6} parent=11 // pred_region
        _
      $region20: #{nature_paper_conv_forward.6} parent=11 // pred_fallthru
        _
    $region12: #{nature_paper_conv_forward.6} parent=5 // pred_fallthru
      _
    %p124 = scmp.lt.s32.totalorder %s9, 2
    // Predicated region
    $region21: #{nature_paper_conv_forward.6} parent=5 // pred_check
      %p125 = pneg %p124
    $region22: #{nature_paper_conv_forward.6} parent=5 // pred_check_branch
      %127 = sbr.rel (%p125) target = $region24
    $region23: #{nature_paper_conv_forward.6} parent=5 // pred_region
      // Predicated region
      $region25: #{nature_paper_conv_forward.6} parent=23 // pred_check
        %p128 = pneg %p29
      $region26: #{nature_paper_conv_forward.6} parent=23 // pred_check_branch
        %130 = sbr.rel (%p128) target = $region28
      $region27: #{nature_paper_conv_forward.6} parent=23 // pred_region
        %p131 = scmp.lt.s32.totalorder %s9, 1
        %s132 = scalar_select %p131, %s9, 1
        %s133 = smul.addr %s132, 4
        %s134 = smul.addr %s133, 4
        %s135 = scalar_lea.vmem %s0, %s134
      $region28: #{nature_paper_conv_forward.6} parent=23 // pred_fallthru
        _
    $region24: #{nature_paper_conv_forward.6} parent=5 // pred_fallthru
      _
    %p136 = scmp.le.s32.totalorder 1, %s9
    %p137 = scmp.lt.s32.totalorder %s9, 3
    %p138 = pnand %p136, %p137
    %p139 = pneg %p138
    // Predicated region
    $region29: #{nature_paper_conv_forward.6} parent=5 // pred_check
      _
    $region30: #{nature_paper_conv_forward.6} parent=5 // pred_check_branch
      %141 = sbr.rel (%p138) target = $region32
    $region31: #{nature_paper_conv_forward.6} parent=5 // pred_region
      %s142 = ssub.s32 %s9, 1
      %p143 = scmp.lt.s32.totalorder %s14, 1
      %s144 = scalar_select %p143, %s14, 1
      %s145 = smul.addr %s144, 4
      %s146 = smul.addr %s145, 4
      %s147 = scalar_lea.vmem %s0, %s146
      %p148 = pneg %p35
      %p149 = pneg %p32
      %p150 = pneg %p56
      %p151 = pneg %p53
      %p152 = pneg %p77
      %p153 = pneg %p74
      %p154 = pneg %p103
      %p155 = pneg %p100
      %p156 = scmp.lt.s32.totalorder %s14, 1
      %s157 = scalar_select %p156, %s14, 1
      %s158 = smul.addr %s157, 2
      %s159 = smul.addr %s158, 4
      %s160 = scalar_lea.vmem %s3, %s159
      %p161 = scmp.lt.s32.totalorder %s14, 1
      %s162 = scalar_select %p161, %s14, 1
      %s163 = smul.addr %s162, 4
      %s164 = smul.addr %s163, 4
      %s165 = scalar_lea.vmem %s0, %s164
      %p166 = scmp.lt.s32.totalorder %s14, 1
      %s167 = scalar_select %p166, %s14, 1
      %s168 = smul.addr %s167, 2
      %s169 = smul.addr %s168, 4
      %s170 = scalar_lea.vmem %s3, %s169
      %v172 = vld [vmem:[%s165] sm:$0xf]
      %v173 = vld [vmem:[%s165 + $0x4] sm:$0xf]
      %v174 = vld [vmem:[%s1] sm:$0xf]
      %v175 = vld [vmem:[%s1 + $0x4] sm:$0xf]
      %v176 = vld [vmem:[%s1 + $0x8] sm:$0xf]
      %v177 = vld [vmem:[%s1 + $0xc] sm:$0xf]
      %v178 = vld [vmem:[%s1 + $0x10] sm:$0xf]
      %v179 = vld [vmem:[%s1 + $0x14] sm:$0xf]
      %v180 = vld [vmem:[%s1 + $0x18] sm:$0xf]
      %v181 = vld [vmem:[%s1 + $0x1c] sm:$0xf]
      %v182 = vld [vmem:[%s165 + $0x8] sm:$0x1]
      %s183 = scalar_lea.vmem %s1, 32
      %v184 = vld [vmem:[%s183] sm:$0xf]
      %v185 = vld [vmem:[%s183 + $0x4] sm:$0xf]
      %v186 = vld [vmem:[%s183 + $0x8] sm:$0xf]
      %v187 = vld [vmem:[%s183 + $0xc] sm:$0xf]
      %v188 = vld [vmem:[%s183 + $0x10] sm:$0xf]
      %v189 = vld [vmem:[%s183 + $0x14] sm:$0xf]
      %v190 = vld [vmem:[%s183 + $0x18] sm:$0xf]
      %v191 = vld [vmem:[%s183 + $0x1c] sm:$0xf]
      %v195 = vunpack.c.l.b16 %v172
      %v196 = vunpack.c.l.b16 %v173
      %v197 = vunpack.c.l.b16 %v182
      %v198 = vpack.c.b16 %v196, %v195
      %v199 = vpack.c.b16 %v197, %v197
      %vm200 = vsmask.f32 7424
      %v202 = vshrl.u32 %v198, 16
      %v204 = vshll.u32 %v198, 16
      %v206 = vrot.slane %v204, 1
      %v207 = vor.u32 %v202, %v206
      %v209 = vshll.u32 %v199, 16
      %v211 = vrot.slane %v209, 1
      %v212 = vsel %vm200, %v207, %v211
      %v221 = vunpack.c.l.b16 %v184
      %v222 = vunpack.c.l.b16 %v185
      %v223 = vunpack.c.l.b16 %v186
      %v224 = vunpack.c.l.b16 %v187
      %v225 = vunpack.c.l.b16 %v188
      %v226 = vunpack.c.l.b16 %v189
      %v227 = vunpack.c.l.b16 %v190
      %v228 = vunpack.c.l.b16 %v191
      %v229 = vpack.c.b16 %v222, %v221
      %v230 = vpack.c.b16 %v224, %v223
      %v231 = vpack.c.b16 %v226, %v225
      %v232 = vpack.c.b16 %v228, %v227
      %vm237 = vcmask 523264
      %v239 = vsel %vm237, %v212, 0
      %241 = vmatprep.subr.bf16.mxu0 0
      %242 = vmatpush1.bf16.msra.mxu0 0
      %243 = vmatprep.subr.bf16.mxu0 0
      %244 = vmatpush1.bf16.msra.mxu0 0
      %245 = vmatprep.subr.bf16.mxu0 0
      %246 = vmatpush1.bf16.msra.mxu0 0
      %247 = vmatprep.subr.bf16.mxu0 0
      %248 = vmatpush1.bf16.msra.mxu0 0
      %249 = vmatprep.subr.bf16.mxu0 0
      %250 = vmatpush1.bf16.msra.mxu0 %v232
      %251 = vmatprep.subr.bf16.mxu0 0
      %252 = vmatpush1.bf16.msra.mxu0 %v231
      %253 = vmatprep.subr.bf16.mxu0 0
      %254 = vmatpush1.bf16.msra.mxu0 %v230
      %255 = vmatprep.subr.bf16.mxu0 0
      %256 = vmatpush1.bf16.msra.mxu0 %v229
      %257 = vmatprep.subr.bf16.mxu0 0
      %258 = vmatpush2.bf16.msra.mxu0 0
      %259 = vmatprep.subr.bf16.mxu0 0
      %260 = vmatpush2.bf16.msra.mxu0 0
      %261 = vmatprep.subr.bf16.mxu0 0
      %262 = vmatpush2.bf16.msra.mxu0 0
      %263 = vmatprep.subr.bf16.mxu0 0
      %264 = vmatpush2.bf16.msra.mxu0 0
      %265 = vmatprep.subr.bf16.mxu0 0
      %266 = vmatpush2.bf16.msra.mxu0 0
      %267 = vmatprep.subr.bf16.mxu0 0
      %268 = vmatpush2.bf16.msra.mxu0 0
      %269 = vmatprep.subr.bf16.mxu0 0
      %270 = vmatpush2.bf16.msra.mxu0 0
      %271 = vmatprep.subr.bf16.mxu0 0
      %272 = vmatpush2.bf16.msra.mxu0 0
      %273 = vmatprep.mubr.bf16.mxu0 0
      %274 = vmatmul.mubr.bf16.gmra.mxu0 %v239
      %v275 = vpop.f32.mrf.mxu0
      %v276 = vadd.f32 0.0, %v275
      %v277 = vpop.f32.mrf.mxu0
      %v278 = vpop.f32.mrf.mxu0
      %v279 = vadd.f32 0.0, %v278
      %v280 = vpop.f32.mrf.mxu0
      %281 = vdwg.mxu0
      %v290 = vunpack.c.l.b16 %v174
      %v291 = vunpack.c.l.b16 %v175
      %v292 = vunpack.c.l.b16 %v176
      %v293 = vunpack.c.l.b16 %v177
      %v294 = vunpack.c.l.b16 %v178
      %v295 = vunpack.c.l.b16 %v179
      %v296 = vunpack.c.l.b16 %v180
      %v297 = vunpack.c.l.b16 %v181
      %v298 = vpack.c.b16 %v291, %v290
      %v299 = vpack.c.b16 %v293, %v292
      %v300 = vpack.c.b16 %v295, %v294
      %v301 = vpack.c.b16 %v297, %v296
      %v306 = vsel %vm237, %v198, 0
      %308 = vmatprep.subr.bf16.mxu0 0
      %309 = vmatpush1.bf16.msra.mxu0 0
      %310 = vmatprep.subr.bf16.mxu0 0
      %311 = vmatpush1.bf16.msra.mxu0 0
      %312 = vmatprep.subr.bf16.mxu0 0
      %313 = vmatpush1.bf16.msra.mxu0 0
      %314 = vmatprep.subr.bf16.mxu0 0
      %315 = vmatpush1.bf16.msra.mxu0 0
      %316 = vmatprep.subr.bf16.mxu0 0
      %317 = vmatpush1.bf16.msra.mxu0 %v301
      %318 = vmatprep.subr.bf16.mxu0 0
      %319 = vmatpush1.bf16.msra.mxu0 %v300
      %320 = vmatprep.subr.bf16.mxu0 0
      %321 = vmatpush1.bf16.msra.mxu0 %v299
      %322 = vmatprep.subr.bf16.mxu0 0
      %323 = vmatpush1.bf16.msra.mxu0 %v298
      %324 = vmatprep.subr.bf16.mxu0 0
      %325 = vmatpush2.bf16.msra.mxu0 0
      %326 = vmatprep.subr.bf16.mxu0 0
      %327 = vmatpush2.bf16.msra.mxu0 0
      %328 = vmatprep.subr.bf16.mxu0 0
      %329 = vmatpush2.bf16.msra.mxu0 0
      %330 = vmatprep.subr.bf16.mxu0 0
      %331 = vmatpush2.bf16.msra.mxu0 0
      %332 = vmatprep.subr.bf16.mxu0 0
      %333 = vmatpush2.bf16.msra.mxu0 0
      %334 = vmatprep.subr.bf16.mxu0 0
      %335 = vmatpush2.bf16.msra.mxu0 0
      %336 = vmatprep.subr.bf16.mxu0 0
      %337 = vmatpush2.bf16.msra.mxu0 0
      %338 = vmatprep.subr.bf16.mxu0 0
      %339 = vmatpush2.bf16.msra.mxu0 0
      %340 = vmatprep.mubr.bf16.mxu0 0
      %341 = vmatmul.mubr.bf16.gmra.mxu0 %v306
      %v342 = vpop.f32.mrf.mxu0
      %v343 = vadd.f32 %v276, %v342
      %v344 = vpop.f32.mrf.mxu0
      %v345 = vpop.f32.mrf.mxu0
      %v346 = vadd.f32 %v279, %v345
      %v347 = vpop.f32.mrf.mxu0
      %348 = vdwg.mxu0
      %v349 = vld [vmem:[%s165] sm:$0xe]
      %s350 = scalar_lea.vmem %s1, 64
      %v351 = vld [vmem:[%s350] sm:$0xf]
      %v352 = vld [vmem:[%s350 + $0x4] sm:$0xf]
      %v353 = vld [vmem:[%s350 + $0x8] sm:$0xf]
      %v354 = vld [vmem:[%s350 + $0xc] sm:$0xf]
      %v355 = vld [vmem:[%s350 + $0x10] sm:$0xf]
      %v356 = vld [vmem:[%s350 + $0x14] sm:$0xf]
      %v357 = vld [vmem:[%s350 + $0x18] sm:$0xf]
      %v358 = vld [vmem:[%s350 + $0x1c] sm:$0xf]
      %v360 = vunpack.c.l.b16 %v349
      %v361 = vpack.c.b16 %v196, %v360
      %vm362 = vcmask 1046528
      %v363 = vrot.slane %v361, 1
      %v364 = vrot.slane %v199, 1
      %v365 = vsel %vm362, %v363, %v364
      %v374 = vunpack.c.l.b16 %v351
      %v375 = vunpack.c.l.b16 %v352
      %v376 = vunpack.c.l.b16 %v353
      %v377 = vunpack.c.l.b16 %v354
      %v378 = vunpack.c.l.b16 %v355
      %v379 = vunpack.c.l.b16 %v356
      %v380 = vunpack.c.l.b16 %v357
      %v381 = vunpack.c.l.b16 %v358
      %v382 = vpack.c.b16 %v375, %v374
      %v383 = vpack.c.b16 %v377, %v376
      %v384 = vpack.c.b16 %v379, %v378
      %v385 = vpack.c.b16 %v381, %v380
      %v391 = vsel %vm237, %v365, 0
      %393 = vmatprep.subr.bf16.mxu0 0
      %394 = vmatpush1.bf16.msra.mxu0 0
      %395 = vmatprep.subr.bf16.mxu0 0
      %396 = vmatpush1.bf16.msra.mxu0 0
      %397 = vmatprep.subr.bf16.mxu0 0
      %398 = vmatpush1.bf16.msra.mxu0 0
      %399 = vmatprep.subr.bf16.mxu0 0
      %400 = vmatpush1.bf16.msra.mxu0 0
      %401 = vmatprep.subr.bf16.mxu0 0
      %402 = vmatpush1.bf16.msra.mxu0 %v385
      %403 = vmatprep.subr.bf16.mxu0 0
      %404 = vmatpush1.bf16.msra.mxu0 %v384
      %405 = vmatprep.subr.bf16.mxu0 0
      %406 = vmatpush1.bf16.msra.mxu0 %v383
      %407 = vmatprep.subr.bf16.mxu0 0
      %408 = vmatpush1.bf16.msra.mxu0 %v382
      %409 = vmatprep.subr.bf16.mxu0 0
      %410 = vmatpush2.bf16.msra.mxu0 0
      %411 = vmatprep.subr.bf16.mxu0 0
      %412 = vmatpush2.bf16.msra.mxu0 0
      %413 = vmatprep.subr.bf16.mxu0 0
      %414 = vmatpush2.bf16.msra.mxu0 0
      %415 = vmatprep.subr.bf16.mxu0 0
      %416 = vmatpush2.bf16.msra.mxu0 0
      %417 = vmatprep.subr.bf16.mxu0 0
      %418 = vmatpush2.bf16.msra.mxu0 0
      %419 = vmatprep.subr.bf16.mxu0 0
      %420 = vmatpush2.bf16.msra.mxu0 0
      %421 = vmatprep.subr.bf16.mxu0 0
      %422 = vmatpush2.bf16.msra.mxu0 0
      %423 = vmatprep.subr.bf16.mxu0 0
      %424 = vmatpush2.bf16.msra.mxu0 0
      %425 = vmatprep.mubr.bf16.mxu0 0
      %426 = vmatmul.mubr.bf16.gmra.mxu0 %v391
      %v427 = vpop.f32.mrf.mxu0
      %v428 = vadd.f32 0.0, %v427
      %v429 = vpop.f32.mrf.mxu0
      %v430 = vpop.f32.mrf.mxu0
      %v431 = vadd.f32 0.0, %v430
      %v432 = vpop.f32.mrf.mxu0
      %433 = vdwg.mxu0
      %v434 = vadd.f32 %v343, %v428
      %v435 = vadd.f32 %v346, %v431
      %v436 = vld [vmem:[%s165 + $0x8] sm:$0x3]
      %s437 = scalar_lea.vmem %s1, 96
      %v438 = vld [vmem:[%s437] sm:$0xf]
      %v439 = vld [vmem:[%s437 + $0x4] sm:$0xf]
      %v440 = vld [vmem:[%s437 + $0x8] sm:$0xf]
      %v441 = vld [vmem:[%s437 + $0xc] sm:$0xf]
      %v442 = vld [vmem:[%s437 + $0x10] sm:$0xf]
      %v443 = vld [vmem:[%s437 + $0x14] sm:$0xf]
      %v444 = vld [vmem:[%s437 + $0x18] sm:$0xf]
      %v445 = vld [vmem:[%s437 + $0x1c] sm:$0xf]
      %v447 = vunpack.c.l.b16 %v436
      %v448 = vpack.c.b16 %v447, %v447
      %vm449 = vsmask.f32 6400
      %v451 = vshrl.u32 %v361, 16
      %v453 = vrot.slane %v451, 1
      %v454 = vshll.u32 %v361, 16
      %v456 = vrot.slane %v454, 2
      %v457 = vor.u32 %v453, %v456
      %v459 = vshrl.u32 %v448, 16
      %v461 = vrot.slane %v459, 1
      %v462 = vshll.u32 %v448, 16
      %v464 = vrot.slane %v462, 2
      %v465 = vor.u32 %v461, %v464
      %v466 = vsel %vm449, %v457, %v465
      %v475 = vunpack.c.l.b16 %v438
      %v476 = vunpack.c.l.b16 %v439
      %v477 = vunpack.c.l.b16 %v440
      %v478 = vunpack.c.l.b16 %v441
      %v479 = vunpack.c.l.b16 %v442
      %v480 = vunpack.c.l.b16 %v443
      %v481 = vunpack.c.l.b16 %v444
      %v482 = vunpack.c.l.b16 %v445
      %v483 = vpack.c.b16 %v476, %v475
      %v484 = vpack.c.b16 %v478, %v477
      %v485 = vpack.c.b16 %v480, %v479
      %v486 = vpack.c.b16 %v482, %v481
      %v492 = vsel %vm237, %v466, 0
      %494 = vmatprep.subr.bf16.mxu0 0
      %495 = vmatpush1.bf16.msra.mxu0 0
      %496 = vmatprep.subr.bf16.mxu0 0
      %497 = vmatpush1.bf16.msra.mxu0 0
      %498 = vmatprep.subr.bf16.mxu0 0
      %499 = vmatpush1.bf16.msra.mxu0 0
      %500 = vmatprep.subr.bf16.mxu0 0
      %501 = vmatpush1.bf16.msra.mxu0 0
      %502 = vmatprep.subr.bf16.mxu0 0
      %503 = vmatpush1.bf16.msra.mxu0 %v486
      %504 = vmatprep.subr.bf16.mxu0 0
      %505 = vmatpush1.bf16.msra.mxu0 %v485
      %506 = vmatprep.subr.bf16.mxu0 0
      %507 = vmatpush1.bf16.msra.mxu0 %v484
      %508 = vmatprep.subr.bf16.mxu0 0
      %509 = vmatpush1.bf16.msra.mxu0 %v483
      %510 = vmatprep.subr.bf16.mxu0 0
      %511 = vmatpush2.bf16.msra.mxu0 0
      %512 = vmatprep.subr.bf16.mxu0 0
      %513 = vmatpush2.bf16.msra.mxu0 0
      %514 = vmatprep.subr.bf16.mxu0 0
      %515 = vmatpush2.bf16.msra.mxu0 0
      %516 = vmatprep.subr.bf16.mxu0 0
      %517 = vmatpush2.bf16.msra.mxu0 0
      %518 = vmatprep.subr.bf16.mxu0 0
      %519 = vmatpush2.bf16.msra.mxu0 0
      %520 = vmatprep.subr.bf16.mxu0 0
      %521 = vmatpush2.bf16.msra.mxu0 0
      %522 = vmatprep.subr.bf16.mxu0 0
      %523 = vmatpush2.bf16.msra.mxu0 0
      %524 = vmatprep.subr.bf16.mxu0 0
      %525 = vmatpush2.bf16.msra.mxu0 0
      %526 = vmatprep.mubr.bf16.mxu0 0
      %527 = vmatmul.mubr.bf16.gmra.mxu0 %v492
      %v528 = vpop.f32.mrf.mxu0
      %v529 = vadd.f32 0.0, %v528
      %v530 = vpop.f32.mrf.mxu0
      %v531 = vpop.f32.mrf.mxu0
      %v532 = vadd.f32 0.0, %v531
      %v533 = vpop.f32.mrf.mxu0
      %534 = vdwg.mxu0
      %v535 = vadd.f32 %v434, %v529
      %v536 = vadd.f32 %v435, %v532
      %v537 = vld [vmem:[%s165] sm:$0xc]
      %s538 = scalar_lea.vmem %s1, 128
      %v539 = vld [vmem:[%s538] sm:$0xf]
      %v540 = vld [vmem:[%s538 + $0x4] sm:$0xf]
      %v541 = vld [vmem:[%s538 + $0x8] sm:$0xf]
      %v542 = vld [vmem:[%s538 + $0xc] sm:$0xf]
      %v543 = vld [vmem:[%s538 + $0x10] sm:$0xf]
      %v544 = vld [vmem:[%s538 + $0x14] sm:$0xf]
      %v545 = vld [vmem:[%s538 + $0x18] sm:$0xf]
      %v546 = vld [vmem:[%s538 + $0x1c] sm:$0xf]
      %v548 = vunpack.c.l.b16 %v537
      %v549 = vpack.c.b16 %v196, %v548
      %vm550 = vcmask 1045504
      %v551 = vrot.slane %v549, 2
      %v552 = vrot.slane %v448, 2
      %v553 = vsel %vm550, %v551, %v552
      %v562 = vunpack.c.l.b16 %v539
      %v563 = vunpack.c.l.b16 %v540
      %v564 = vunpack.c.l.b16 %v541
      %v565 = vunpack.c.l.b16 %v542
      %v566 = vunpack.c.l.b16 %v543
      %v567 = vunpack.c.l.b16 %v544
      %v568 = vunpack.c.l.b16 %v545
      %v569 = vunpack.c.l.b16 %v546
      %v570 = vpack.c.b16 %v563, %v562
      %v571 = vpack.c.b16 %v565, %v564
      %v572 = vpack.c.b16 %v567, %v566
      %v573 = vpack.c.b16 %v569, %v568
      %v579 = vsel %vm237, %v553, 0
      %581 = vmatprep.subr.bf16.mxu0 0
      %582 = vmatpush1.bf16.msra.mxu0 0
      %583 = vmatprep.subr.bf16.mxu0 0
      %584 = vmatpush1.bf16.msra.mxu0 0
      %585 = vmatprep.subr.bf16.mxu0 0
      %586 = vmatpush1.bf16.msra.mxu0 0
      %587 = vmatprep.subr.bf16.mxu0 0
      %588 = vmatpush1.bf16.msra.mxu0 0
      %589 = vmatprep.subr.bf16.mxu0 0
      %590 = vmatpush1.bf16.msra.mxu0 %v573
      %591 = vmatprep.subr.bf16.mxu0 0
      %592 = vmatpush1.bf16.msra.mxu0 %v572
      %593 = vmatprep.subr.bf16.mxu0 0
      %594 = vmatpush1.bf16.msra.mxu0 %v571
      %595 = vmatprep.subr.bf16.mxu0 0
      %596 = vmatpush1.bf16.msra.mxu0 %v570
      %597 = vmatprep.subr.bf16.mxu0 0
      %598 = vmatpush2.bf16.msra.mxu0 0
      %599 = vmatprep.subr.bf16.mxu0 0
      %600 = vmatpush2.bf16.msra.mxu0 0
      %601 = vmatprep.subr.bf16.mxu0 0
      %602 = vmatpush2.bf16.msra.mxu0 0
      %603 = vmatprep.subr.bf16.mxu0 0
      %604 = vmatpush2.bf16.msra.mxu0 0
      %605 = vmatprep.subr.bf16.mxu0 0
      %606 = vmatpush2.bf16.msra.mxu0 0
      %607 = vmatprep.subr.bf16.mxu0 0
      %608 = vmatpush2.bf16.msra.mxu0 0
      %609 = vmatprep.subr.bf16.mxu0 0
      %610 = vmatpush2.bf16.msra.mxu0 0
      %611 = vmatprep.subr.bf16.mxu0 0
      %612 = vmatpush2.bf16.msra.mxu0 0
      %613 = vmatprep.mubr.bf16.mxu0 0
      %614 = vmatmul.mubr.bf16.gmra.mxu0 %v579
      %v615 = vpop.f32.mrf.mxu0
      %v616 = vadd.f32 0.0, %v615
      %v617 = vpop.f32.mrf.mxu0
      %v618 = vpop.f32.mrf.mxu0
      %v619 = vadd.f32 0.0, %v618
      %v620 = vpop.f32.mrf.mxu0
      %621 = vdwg.mxu0
      %v622 = vadd.f32 %v535, %v616
      %v623 = vadd.f32 %v536, %v619
      %v624 = vld [vmem:[%s165 + $0x8] sm:$0x7]
      %s625 = scalar_lea.vmem %s1, 160
      %v626 = vld [vmem:[%s625] sm:$0xf]
      %v627 = vld [vmem:[%s625 + $0x4] sm:$0xf]
      %v628 = vld [vmem:[%s625 + $0x8] sm:$0xf]
      %v629 = vld [vmem:[%s625 + $0xc] sm:$0xf]
      %v630 = vld [vmem:[%s625 + $0x10] sm:$0xf]
      %v631 = vld [vmem:[%s625 + $0x14] sm:$0xf]
      %v632 = vld [vmem:[%s625 + $0x18] sm:$0xf]
      %v633 = vld [vmem:[%s625 + $0x1c] sm:$0xf]
      %v635 = vunpack.c.l.b16 %v624
      %v636 = vpack.c.b16 %v635, %v635
      %vm637 = vsmask.f32 5376
      %v639 = vshrl.u32 %v549, 16
      %v641 = vrot.slane %v639, 2
      %v642 = vshll.u32 %v549, 16
      %v644 = vrot.slane %v642, 3
      %v645 = vor.u32 %v641, %v644
      %v647 = vshrl.u32 %v636, 16
      %v649 = vrot.slane %v647, 2
      %v650 = vshll.u32 %v636, 16
      %v652 = vrot.slane %v650, 3
      %v653 = vor.u32 %v649, %v652
      %v654 = vsel %vm637, %v645, %v653
      %v663 = vunpack.c.l.b16 %v626
      %v664 = vunpack.c.l.b16 %v627
      %v665 = vunpack.c.l.b16 %v628
      %v666 = vunpack.c.l.b16 %v629
      %v667 = vunpack.c.l.b16 %v630
      %v668 = vunpack.c.l.b16 %v631
      %v669 = vunpack.c.l.b16 %v632
      %v670 = vunpack.c.l.b16 %v633
      %v671 = vpack.c.b16 %v664, %v663
      %v672 = vpack.c.b16 %v666, %v665
      %v673 = vpack.c.b16 %v668, %v667
      %v674 = vpack.c.b16 %v670, %v669
      %v680 = vsel %vm237, %v654, 0
      %682 = vmatprep.subr.bf16.mxu0 0
      %683 = vmatpush1.bf16.msra.mxu0 0
      %684 = vmatprep.subr.bf16.mxu0 0
      %685 = vmatpush1.bf16.msra.mxu0 0
      %686 = vmatprep.subr.bf16.mxu0 0
      %687 = vmatpush1.bf16.msra.mxu0 0
      %688 = vmatprep.subr.bf16.mxu0 0
      %689 = vmatpush1.bf16.msra.mxu0 0
      %690 = vmatprep.subr.bf16.mxu0 0
      %691 = vmatpush1.bf16.msra.mxu0 %v674
      %692 = vmatprep.subr.bf16.mxu0 0
      %693 = vmatpush1.bf16.msra.mxu0 %v673
      %694 = vmatprep.subr.bf16.mxu0 0
      %695 = vmatpush1.bf16.msra.mxu0 %v672
      %696 = vmatprep.subr.bf16.mxu0 0
      %697 = vmatpush1.bf16.msra.mxu0 %v671
      %698 = vmatprep.subr.bf16.mxu0 0
      %699 = vmatpush2.bf16.msra.mxu0 0
      %700 = vmatprep.subr.bf16.mxu0 0
      %701 = vmatpush2.bf16.msra.mxu0 0
      %702 = vmatprep.subr.bf16.mxu0 0
      %703 = vmatpush2.bf16.msra.mxu0 0
      %704 = vmatprep.subr.bf16.mxu0 0
      %705 = vmatpush2.bf16.msra.mxu0 0
      %706 = vmatprep.subr.bf16.mxu0 0
      %707 = vmatpush2.bf16.msra.mxu0 0
      %708 = vmatprep.subr.bf16.mxu0 0
      %709 = vmatpush2.bf16.msra.mxu0 0
      %710 = vmatprep.subr.bf16.mxu0 0
      %711 = vmatpush2.bf16.msra.mxu0 0
      %712 = vmatprep.subr.bf16.mxu0 0
      %713 = vmatpush2.bf16.msra.mxu0 0
      %714 = vmatprep.mubr.bf16.mxu0 0
      %715 = vmatmul.mubr.bf16.gmra.mxu0 %v680
      %v716 = vpop.f32.mrf.mxu0
      %v717 = vadd.f32 0.0, %v716
      %v718 = vpop.f32.mrf.mxu0
      %v719 = vpop.f32.mrf.mxu0
      %v720 = vadd.f32 0.0, %v719
      %v721 = vpop.f32.mrf.mxu0
      %722 = vdwg.mxu0
      %v723 = vadd.f32 %v622, %v717
      %v724 = vadd.f32 %v623, %v720
      %v725 = vld [vmem:[%s165] sm:$0x8]
      %s726 = scalar_lea.vmem %s1, 192
      %v727 = vld [vmem:[%s726] sm:$0xf]
      %v728 = vld [vmem:[%s726 + $0x4] sm:$0xf]
      %v729 = vld [vmem:[%s726 + $0x8] sm:$0xf]
      %v730 = vld [vmem:[%s726 + $0xc] sm:$0xf]
      %v731 = vld [vmem:[%s726 + $0x10] sm:$0xf]
      %v732 = vld [vmem:[%s726 + $0x14] sm:$0xf]
      %v733 = vld [vmem:[%s726 + $0x18] sm:$0xf]
      %v734 = vld [vmem:[%s726 + $0x1c] sm:$0xf]
      %v736 = vunpack.c.l.b16 %v725
      %v737 = vpack.c.b16 %v196, %v736
      %vm738 = vcmask 1044480
      %v739 = vrot.slane %v737, 3
      %v740 = vrot.slane %v636, 3
      %v741 = vsel %vm738, %v739, %v740
      %v750 = vunpack.c.l.b16 %v727
      %v751 = vunpack.c.l.b16 %v728
      %v752 = vunpack.c.l.b16 %v729
      %v753 = vunpack.c.l.b16 %v730
      %v754 = vunpack.c.l.b16 %v731
      %v755 = vunpack.c.l.b16 %v732
      %v756 = vunpack.c.l.b16 %v733
      %v757 = vunpack.c.l.b16 %v734
      %v758 = vpack.c.b16 %v751, %v750
      %v759 = vpack.c.b16 %v753, %v752
      %v760 = vpack.c.b16 %v755, %v754
      %v761 = vpack.c.b16 %v757, %v756
      %v767 = vsel %vm237, %v741, 0
      %769 = vmatprep.subr.bf16.mxu0 0
      %770 = vmatpush1.bf16.msra.mxu0 0
      %771 = vmatprep.subr.bf16.mxu0 0
      %772 = vmatpush1.bf16.msra.mxu0 0
      %773 = vmatprep.subr.bf16.mxu0 0
      %774 = vmatpush1.bf16.msra.mxu0 0
      %775 = vmatprep.subr.bf16.mxu0 0
      %776 = vmatpush1.bf16.msra.mxu0 0
      %777 = vmatprep.subr.bf16.mxu0 0
      %778 = vmatpush1.bf16.msra.mxu0 %v761
      %779 = vmatprep.subr.bf16.mxu0 0
      %780 = vmatpush1.bf16.msra.mxu0 %v760
      %781 = vmatprep.subr.bf16.mxu0 0
      %782 = vmatpush1.bf16.msra.mxu0 %v759
      %783 = vmatprep.subr.bf16.mxu0 0
      %784 = vmatpush1.bf16.msra.mxu0 %v758
      %785 = vmatprep.subr.bf16.mxu0 0
      %786 = vmatpush2.bf16.msra.mxu0 0
      %787 = vmatprep.subr.bf16.mxu0 0
      %788 = vmatpush2.bf16.msra.mxu0 0
      %789 = vmatprep.subr.bf16.mxu0 0
      %790 = vmatpush2.bf16.msra.mxu0 0
      %791 = vmatprep.subr.bf16.mxu0 0
      %792 = vmatpush2.bf16.msra.mxu0 0
      %793 = vmatprep.subr.bf16.mxu0 0
      %794 = vmatpush2.bf16.msra.mxu0 0
      %795 = vmatprep.subr.bf16.mxu0 0
      %796 = vmatpush2.bf16.msra.mxu0 0
      %797 = vmatprep.subr.bf16.mxu0 0
      %798 = vmatpush2.bf16.msra.mxu0 0
      %799 = vmatprep.subr.bf16.mxu0 0
      %800 = vmatpush2.bf16.msra.mxu0 0
      %801 = vmatprep.mubr.bf16.mxu0 0
      %802 = vmatmul.mubr.bf16.gmra.mxu0 %v767
      %v803 = vpop.f32.mrf.mxu0
      %v804 = vadd.f32 0.0, %v803
      %v805 = vpop.f32.mrf.mxu0
      %v806 = vpop.f32.mrf.mxu0
      %v807 = vadd.f32 0.0, %v806
      %v808 = vpop.f32.mrf.mxu0
      %809 = vdwg.mxu0
      %v810 = vadd.f32 %v723, %v804
      %v811 = vadd.f32 %v724, %v807
      %v812 = vld [vmem:[%s165 + $0x8] sm:$0xf]
      %s813 = scalar_lea.vmem %s1, 224
      %v814 = vld [vmem:[%s813] sm:$0xf]
      %v815 = vld [vmem:[%s813 + $0x4] sm:$0xf]
      %v816 = vld [vmem:[%s813 + $0x8] sm:$0xf]
      %v817 = vld [vmem:[%s813 + $0xc] sm:$0xf]
      %v818 = vld [vmem:[%s813 + $0x10] sm:$0xf]
      %v819 = vld [vmem:[%s813 + $0x14] sm:$0xf]
      %v820 = vld [vmem:[%s813 + $0x18] sm:$0xf]
      %v821 = vld [vmem:[%s813 + $0x1c] sm:$0xf]
      %v823 = vunpack.c.l.b16 %v812
      %v824 = vpack.c.b16 %v823, %v823
      %vm825 = vsmask.f32 4352
      %v827 = vshrl.u32 %v737, 16
      %v829 = vrot.slane %v827, 3
      %v830 = vshll.u32 %v737, 16
      %v832 = vrot.slane %v830, 4
      %v833 = vor.u32 %v829, %v832
      %v835 = vshrl.u32 %v824, 16
      %v837 = vrot.slane %v835, 3
      %v838 = vshll.u32 %v824, 16
      %v840 = vrot.slane %v838, 4
      %v841 = vor.u32 %v837, %v840
      %v842 = vsel %vm825, %v833, %v841
      %v851 = vunpack.c.l.b16 %v814
      %v852 = vunpack.c.l.b16 %v815
      %v853 = vunpack.c.l.b16 %v816
      %v854 = vunpack.c.l.b16 %v817
      %v855 = vunpack.c.l.b16 %v818
      %v856 = vunpack.c.l.b16 %v819
      %v857 = vunpack.c.l.b16 %v820
      %v858 = vunpack.c.l.b16 %v821
      %v859 = vpack.c.b16 %v852, %v851
      %v860 = vpack.c.b16 %v854, %v853
      %v861 = vpack.c.b16 %v856, %v855
      %v862 = vpack.c.b16 %v858, %v857
      %v868 = vsel %vm237, %v842, 0
      %870 = vmatprep.subr.bf16.mxu0 0
      %871 = vmatpush1.bf16.msra.mxu0 0
      %872 = vmatprep.subr.bf16.mxu0 0
      %873 = vmatpush1.bf16.msra.mxu0 0
      %874 = vmatprep.subr.bf16.mxu0 0
      %875 = vmatpush1.bf16.msra.mxu0 0
      %876 = vmatprep.subr.bf16.mxu0 0
      %877 = vmatpush1.bf16.msra.mxu0 0
      %878 = vmatprep.subr.bf16.mxu0 0
      %879 = vmatpush1.bf16.msra.mxu0 %v862
      %880 = vmatprep.subr.bf16.mxu0 0
      %881 = vmatpush1.bf16.msra.mxu0 %v861
      %882 = vmatprep.subr.bf16.mxu0 0
      %883 = vmatpush1.bf16.msra.mxu0 %v860
      %884 = vmatprep.subr.bf16.mxu0 0
      %885 = vmatpush1.bf16.msra.mxu0 %v859
      %886 = vmatprep.subr.bf16.mxu0 0
      %887 = vmatpush2.bf16.msra.mxu0 0
      %888 = vmatprep.subr.bf16.mxu0 0
      %889 = vmatpush2.bf16.msra.mxu0 0
      %890 = vmatprep.subr.bf16.mxu0 0
      %891 = vmatpush2.bf16.msra.mxu0 0
      %892 = vmatprep.subr.bf16.mxu0 0
      %893 = vmatpush2.bf16.msra.mxu0 0
      %894 = vmatprep.subr.bf16.mxu0 0
      %895 = vmatpush2.bf16.msra.mxu0 0
      %896 = vmatprep.subr.bf16.mxu0 0
      %897 = vmatpush2.bf16.msra.mxu0 0
      %898 = vmatprep.subr.bf16.mxu0 0
      %899 = vmatpush2.bf16.msra.mxu0 0
      %900 = vmatprep.subr.bf16.mxu0 0
      %901 = vmatpush2.bf16.msra.mxu0 0
      %902 = vmatprep.mubr.bf16.mxu0 0
      %903 = vmatmul.mubr.bf16.gmra.mxu0 %v868
      %v904 = vpop.f32.mrf.mxu0
      %v905 = vadd.f32 0.0, %v904
      %v906 = vpop.f32.mrf.mxu0
      %v907 = vpop.f32.mrf.mxu0
      %v908 = vadd.f32 0.0, %v907
      %v909 = vpop.f32.mrf.mxu0
      %910 = vdwg.mxu0
      %v911 = vadd.f32 %v810, %v905
      %v912 = vadd.f32 %v811, %v908
      %s913 = scalar_lea.vmem %s1, 256
      %v914 = vld [vmem:[%s913] sm:$0xf]
      %v915 = vld [vmem:[%s913 + $0x4] sm:$0xf]
      %v916 = vld [vmem:[%s913 + $0x8] sm:$0xf]
      %v917 = vld [vmem:[%s913 + $0xc] sm:$0xf]
      %v918 = vld [vmem:[%s913 + $0x10] sm:$0xf]
      %v919 = vld [vmem:[%s913 + $0x14] sm:$0xf]
      %v920 = vld [vmem:[%s913 + $0x18] sm:$0xf]
      %v921 = vld [vmem:[%s913 + $0x1c] sm:$0xf]
      %v922 = vpack.c.b16 %v823, %v196
      %v931 = vunpack.c.l.b16 %v914
      %v932 = vunpack.c.l.b16 %v915
      %v933 = vunpack.c.l.b16 %v916
      %v934 = vunpack.c.l.b16 %v917
      %v935 = vunpack.c.l.b16 %v918
      %v936 = vunpack.c.l.b16 %v919
      %v937 = vunpack.c.l.b16 %v920
      %v938 = vunpack.c.l.b16 %v921
      %v939 = vpack.c.b16 %v932, %v931
      %v940 = vpack.c.b16 %v934, %v933
      %v941 = vpack.c.b16 %v936, %v935
      %v942 = vpack.c.b16 %v938, %v937
      %v948 = vsel %vm237, %v922, 0
      %950 = vmatprep.subr.bf16.mxu0 0
      %951 = vmatpush1.bf16.msra.mxu0 0
      %952 = vmatprep.subr.bf16.mxu0 0
      %953 = vmatpush1.bf16.msra.mxu0 0
      %954 = vmatprep.subr.bf16.mxu0 0
      %955 = vmatpush1.bf16.msra.mxu0 0
      %956 = vmatprep.subr.bf16.mxu0 0
      %957 = vmatpush1.bf16.msra.mxu0 0
      %958 = vmatprep.subr.bf16.mxu0 0
      %959 = vmatpush1.bf16.msra.mxu0 %v942
      %960 = vmatprep.subr.bf16.mxu0 0
      %961 = vmatpush1.bf16.msra.mxu0 %v941
      %962 = vmatprep.subr.bf16.mxu0 0
      %963 = vmatpush1.bf16.msra.mxu0 %v940
      %964 = vmatprep.subr.bf16.mxu0 0
      %965 = vmatpush1.bf16.msra.mxu0 %v939
      %966 = vmatprep.subr.bf16.mxu0 0
      %967 = vmatpush2.bf16.msra.mxu0 0
      %968 = vmatprep.subr.bf16.mxu0 0
      %969 = vmatpush2.bf16.msra.mxu0 0
      %970 = vmatprep.subr.bf16.mxu0 0
      %971 = vmatpush2.bf16.msra.mxu0 0
      %972 = vmatprep.subr.bf16.mxu0 0
      %973 = vmatpush2.bf16.msra.mxu0 0
      %974 = vmatprep.subr.bf16.mxu0 0
      %975 = vmatpush2.bf16.msra.mxu0 0
      %976 = vmatprep.subr.bf16.mxu0 0
      %977 = vmatpush2.bf16.msra.mxu0 0
      %978 = vmatprep.subr.bf16.mxu0 0
      %979 = vmatpush2.bf16.msra.mxu0 0
      %980 = vmatprep.subr.bf16.mxu0 0
      %981 = vmatpush2.bf16.msra.mxu0 0
      %982 = vmatprep.mubr.bf16.mxu0 0
      %983 = vmatmul.mubr.bf16.gmra.mxu0 %v948
      %v984 = vpop.f32.mrf.mxu0
      %v985 = vadd.f32 0.0, %v984
      %v986 = vpop.f32.mrf.mxu0
      %v987 = vpop.f32.mrf.mxu0
      %v988 = vadd.f32 0.0, %v987
      %v989 = vpop.f32.mrf.mxu0
      %990 = vdwg.mxu0
      %v991 = vadd.f32 %v911, %v985
      %v992 = vadd.f32 %v912, %v988
      %v993 = vld [vmem:[%s2] sm:$0x1]
      %v995 = vlaneseq
      %v996 = vshrl.u32 %v995, 7
      %v997 = vsub.s32 0, %v996
      %v998 = vrot.slane %v993, %v997
      %v1000 = vadd.f32 %v991, %v998
      %v1001 = vadd.f32 %v992, %v998
      %v1002 = vmax.f32 %v1000, 0.0
      %v1003 = vmax.f32 %v1001, 0.0
      %v1004 = vpack.c.bf16 %v1003, %v1002
      %v1006 = vunpack.c.l.b16 %v1004
      %v1007 = vunpack.c.h.b16 %v1004
      %v1008 = vpack.c.b16 %v1006, %v1006
      %v1009 = vpack.c.b16 %v1007, %v1007
      %vm1012 = vcmask 519168
      %1013 = vst.msk [vmem:[%s170] sm:$0xf] %vm1012, %v1008
      %1014 = vst.msk [vmem:[%s170 + $0x4] sm:$0xf] %vm1012, %v1009
      %p1015 = scmp.lt.s32.totalorder %s14, 1
      %s1016 = scalar_select %p1015, %s14, 1
      %s1017 = smul.addr %s1016, 2
      %s1018 = smul.addr %s1017, 4
      %s1019 = scalar_lea.vmem %s3, %s1018
      // Predicated region
      $region33: #{nature_paper_conv_forward.6} parent=31 // pred_check
        %p1020 = pneg %p100
      $region34: #{nature_paper_conv_forward.6} parent=31 // pred_check_branch
        %1022 = sbr.rel (%p1020) target = $region36
      $region35: #{nature_paper_conv_forward.6} parent=31 // pred_region
        _
      $region36: #{nature_paper_conv_forward.6} parent=31 // pred_fallthru
        _
    $region32: #{nature_paper_conv_forward.6} parent=5 // pred_fallthru
      _
    %p1023 = scmp.le.s32.totalorder 2, %s9
    // Predicated region
    $region37: #{nature_paper_conv_forward.6} parent=5 // pred_check
      %p1024 = pneg %p1023
    $region38: #{nature_paper_conv_forward.6} parent=5 // pred_check_branch
      %1026 = sbr.rel (%p1024) target = $region40
    $region39: #{nature_paper_conv_forward.6} parent=5 // pred_region
      %s1027 = ssub.s32 %s9, 2
      // Predicated region
      $region41: #{nature_paper_conv_forward.6} parent=39 // pred_check
        %p1028 = pneg %p106
      $region42: #{nature_paper_conv_forward.6} parent=39 // pred_check_branch
        %1030 = sbr.rel (%p1028) target = $region44
      $region43: #{nature_paper_conv_forward.6} parent=39 // pred_region
        %p1031 = scmp.lt.s32.totalorder %s15, 1
        %s1032 = scalar_select %p1031, %s15, 1
        %s1033 = smul.addr %s1032, 2
        %s1034 = smul.addr %s1033, 4
        %s1035 = scalar_lea.vmem %s3, %s1034
      $region44: #{nature_paper_conv_forward.6} parent=39 // pred_fallthru
        _
    $region40: #{nature_paper_conv_forward.6} parent=5 // pred_fallthru
      _
  $region6: #{nature_paper_conv_forward.6} parent=0 // loop_footer
    %s13 = sadd.s32 1, %s9
  $region7: #{nature_paper_conv_forward.6} parent=0 // loop_footer_branch
    %8 = sbr.rel target = $region3
  $region8: #{nature_paper_conv_forward.6} parent=0 // loop_exit
    _

// kernel: nature_paper_conv_forward.7
$region0: #{nature_paper_conv_forward.7}
  #allocation0 [shape = 'u32[]', space=smem, size = 0x4, offset = 0x4, fixed_abs, tag = 'smem constant byte address 0x4 - core index']
  #allocation1 [shape = 'u32[144,128]{1,0:T(1,128)}', space=vmem, size = 0x12000, scoped, tag = 'internal scratch']
  %s0 = inlined_call_operand.vmem [shape: bf16[16,64], index: 0, kind: input, shape index: {}]
  %s1 = inlined_call_operand.vmem [shape: bf16[64,512], index: 1, kind: input, shape index: {}]
  %s2 = inlined_call_operand.vmem [shape: f32[1,512], index: 2, kind: input, shape index: {}]
  %s3 = inlined_call_operand.vmem [shape: bf16[512,6], index: 3, kind: input, shape index: {}]
  %s4 = inlined_call_operand.vmem [shape: f32[1,6], index: 4, kind: input, shape index: {}]
  %s5 = inlined_call_operand.vmem [shape: f32[16,6], index: 5, kind: output, shape index: {}]
  %s6 = sld [smem:[#allocation0]]
  $region30: #{nature_paper_conv_forward.7} parent=0
    _
  %s8 = ssub.s32 1, %s6
  %s9 = scalar_select 0, %s8, %s6
  // Predicated region
  $region2: #{nature_paper_conv_forward.7} parent=0 // pred_check
    _
  $region3: #{nature_paper_conv_forward.7} parent=0 // pred_check_branch
    %11 = sbr.rel (0) target = $region5
  $region4: #{nature_paper_conv_forward.7} parent=0 // pred_region
    _
  $region5: #{nature_paper_conv_forward.7} parent=0 // pred_fallthru
    _
  // Predicated region
  $region6: #{nature_paper_conv_forward.7} parent=0 // pred_check
    _
  $region7: #{nature_paper_conv_forward.7} parent=0 // pred_check_branch
    %13 = sbr.rel (0) target = $region9
  $region8: #{nature_paper_conv_forward.7} parent=0 // pred_region
    _
  $region9: #{nature_paper_conv_forward.7} parent=0 // pred_fallthru
    _
  // Predicated region
  $region10: #{nature_paper_conv_forward.7} parent=0 // pred_check
    _
  $region11: #{nature_paper_conv_forward.7} parent=0 // pred_check_branch
    %15 = sbr.rel (0) target = $region13
  $region12: #{nature_paper_conv_forward.7} parent=0 // pred_region
    _
  $region13: #{nature_paper_conv_forward.7} parent=0 // pred_fallthru
    _
  // Predicated region
  $region14: #{nature_paper_conv_forward.7} parent=0 // pred_check
    _
  $region15: #{nature_paper_conv_forward.7} parent=0 // pred_check_branch
    %17 = sbr.rel (0) target = $region17
  $region16: #{nature_paper_conv_forward.7} parent=0 // pred_region
    _
  $region17: #{nature_paper_conv_forward.7} parent=0 // pred_fallthru
    _
  // Predicated region
  $region18: #{nature_paper_conv_forward.7} parent=0 // pred_check
    _
  $region19: #{nature_paper_conv_forward.7} parent=0 // pred_check_branch
    %19 = sbr.rel (0) target = $region21
  $region20: #{nature_paper_conv_forward.7} parent=0 // pred_region
    _
  $region21: #{nature_paper_conv_forward.7} parent=0 // pred_fallthru
    _
  %v21 = vld [vmem:[%s0] sm:$0xf]
  %v22 = vld [vmem:[%s0 + $0x4] sm:$0xf]
  %v23 = vld [vmem:[%s1] sm:$0xff]
  %v24 = vld [vmem:[%s1 + $0x8] sm:$0xff]
  %v25 = vld [vmem:[%s1 + $0x10] sm:$0xff]
  %v26 = vld [vmem:[%s1 + $0x18] sm:$0xff]
  %v27 = vld [vmem:[%s1 + $0x20] sm:$0xff]
  %v28 = vld [vmem:[%s1 + $0x28] sm:$0xff]
  %v29 = vld [vmem:[%s1 + $0x30] sm:$0xff]
  %v30 = vld [vmem:[%s1 + $0x38] sm:$0xff]
  %v31 = vld [vmem:[%s1 + $0x40] sm:$0xff]
  %v32 = vld [vmem:[%s1 + $0x48] sm:$0xff]
  %v33 = vld [vmem:[%s1 + $0x50] sm:$0xff]
  %v34 = vld [vmem:[%s1 + $0x58] sm:$0xff]
  %v35 = vld [vmem:[%s1 + $0x60] sm:$0xff]
  %v36 = vld [vmem:[%s1 + $0x68] sm:$0xff]
  %v37 = vld [vmem:[%s1 + $0x70] sm:$0xff]
  %v38 = vld [vmem:[%s1 + $0x78] sm:$0xff]
  %v39 = vld [vmem:[%s2] sm:$0xf]
  %v41 = vlaneseq
  %v42 = vshrl.u32 %v41, 7
  %v43 = vsub.s32 0, %v42
  %v44 = vrot.slane %v39, %v43
  %v45 = vlaneseq
  %v46 = vshrl.u32 %v45, 7
  %v47 = vsub.s32 1, %v46
  %v48 = vrot.slane %v39, %v47
  %v49 = vlaneseq
  %v50 = vshrl.u32 %v49, 7
  %v51 = vsub.s32 2, %v50
  %v52 = vrot.slane %v39, %v51
  %v53 = vlaneseq
  %v54 = vshrl.u32 %v53, 7
  %v55 = vsub.s32 3, %v54
  %v56 = vrot.slane %v39, %v55
  %v63 = vunpack.c.l.b16 %v21
  %v64 = vunpack.c.l.b16 %v22
  %v65 = vpack.c.b16 %v64, %v63
  %v82 = vunpack.c.l.b16 %v23
  %v83 = vunpack.c.h.b16 %v23
  %v84 = vunpack.c.l.b16 %v24
  %v85 = vunpack.c.h.b16 %v24
  %v86 = vunpack.c.l.b16 %v25
  %v87 = vunpack.c.h.b16 %v25
  %v88 = vunpack.c.l.b16 %v26
  %v89 = vunpack.c.h.b16 %v26
  %v90 = vunpack.c.l.b16 %v27
  %v91 = vunpack.c.h.b16 %v27
  %v92 = vunpack.c.l.b16 %v28
  %v93 = vunpack.c.h.b16 %v28
  %v94 = vunpack.c.l.b16 %v29
  %v95 = vunpack.c.h.b16 %v29
  %v96 = vunpack.c.l.b16 %v30
  %v97 = vunpack.c.h.b16 %v30
  %v98 = vunpack.c.l.b16 %v31
  %v99 = vunpack.c.h.b16 %v31
  %v100 = vunpack.c.l.b16 %v32
  %v101 = vunpack.c.h.b16 %v32
  %v102 = vunpack.c.l.b16 %v33
  %v103 = vunpack.c.h.b16 %v33
  %v104 = vunpack.c.l.b16 %v34
  %v105 = vunpack.c.h.b16 %v34
  %v106 = vunpack.c.l.b16 %v35
  %v107 = vunpack.c.h.b16 %v35
  %v108 = vunpack.c.l.b16 %v36
  %v109 = vunpack.c.h.b16 %v36
  %v110 = vunpack.c.l.b16 %v37
  %v111 = vunpack.c.h.b16 %v37
  %v112 = vunpack.c.l.b16 %v38
  %v113 = vunpack.c.h.b16 %v38
  %v114 = vpack.c.b16 %v86, %v82
  %v115 = vpack.c.b16 %v87, %v83
  %v116 = vpack.c.b16 %v88, %v84
  %v117 = vpack.c.b16 %v89, %v85
  %v118 = vpack.c.b16 %v94, %v90
  %v119 = vpack.c.b16 %v95, %v91
  %v120 = vpack.c.b16 %v96, %v92
  %v121 = vpack.c.b16 %v97, %v93
  %v122 = vpack.c.b16 %v102, %v98
  %v123 = vpack.c.b16 %v103, %v99
  %v124 = vpack.c.b16 %v104, %v100
  %v125 = vpack.c.b16 %v105, %v101
  %v126 = vpack.c.b16 %v110, %v106
  %v127 = vpack.c.b16 %v111, %v107
  %v128 = vpack.c.b16 %v112, %v108
  %v129 = vpack.c.b16 %v113, %v109
  %vm146 = vcmask 523264
  %v148 = vsel %vm146, %v65, 0
  %150 = vmatprep.subr.bf16.mxu0 0
  %151 = vmatpush1.bf16.msra.mxu0 0
  %152 = vmatprep.subr.bf16.mxu0 0
  %153 = vmatpush1.bf16.msra.mxu0 0
  %154 = vmatprep.subr.bf16.mxu0 0
  %155 = vmatpush1.bf16.msra.mxu0 0
  %156 = vmatprep.subr.bf16.mxu0 0
  %157 = vmatpush1.bf16.msra.mxu0 0
  %158 = vmatprep.subr.bf16.mxu0 %v127
  %159 = vmatpush1.bf16.msra.mxu0 %v126
  %160 = vmatprep.subr.bf16.mxu0 %v123
  %161 = vmatpush1.bf16.msra.mxu0 %v122
  %162 = vmatprep.subr.bf16.mxu0 %v119
  %163 = vmatpush1.bf16.msra.mxu0 %v118
  %164 = vmatprep.subr.bf16.mxu0 %v115
  %165 = vmatpush1.bf16.msra.mxu0 %v114
  %166 = vmatprep.subr.bf16.mxu0 0
  %167 = vmatpush2.bf16.msra.mxu0 0
  %168 = vmatprep.subr.bf16.mxu0 0
  %169 = vmatpush2.bf16.msra.mxu0 0
  %170 = vmatprep.subr.bf16.mxu0 0
  %171 = vmatpush2.bf16.msra.mxu0 0
  %172 = vmatprep.subr.bf16.mxu0 0
  %173 = vmatpush2.bf16.msra.mxu0 0
  %174 = vmatprep.subr.bf16.mxu0 0
  %175 = vmatpush2.bf16.msra.mxu0 0
  %176 = vmatprep.subr.bf16.mxu0 0
  %177 = vmatpush2.bf16.msra.mxu0 0
  %178 = vmatprep.subr.bf16.mxu0 0
  %179 = vmatpush2.bf16.msra.mxu0 0
  %180 = vmatprep.subr.bf16.mxu0 0
  %181 = vmatpush2.bf16.msra.mxu0 0
  %182 = vmatprep.mubr.bf16.mxu0 0
  %183 = vmatmul.mubr.bf16.gmra.mxu0 %v148
  %v184 = vpop.f32.mrf.mxu0
  %v185 = vadd.f32 %v44, %v184
  %v186 = vpop.f32.mrf.mxu0
  %v187 = vadd.f32 %v48, %v186
  %v188 = vpop.f32.mrf.mxu0
  %v189 = vadd.f32 %v44, %v188
  %v190 = vpop.f32.mrf.mxu0
  %v191 = vadd.f32 %v48, %v190
  %192 = vdwg.mxu0
  %193 = vmatprep.subr.bf16.mxu0 0
  %194 = vmatpush1.bf16.msra.mxu0 0
  %195 = vmatprep.subr.bf16.mxu0 0
  %196 = vmatpush1.bf16.msra.mxu0 0
  %197 = vmatprep.subr.bf16.mxu0 0
  %198 = vmatpush1.bf16.msra.mxu0 0
  %199 = vmatprep.subr.bf16.mxu0 0
  %200 = vmatpush1.bf16.msra.mxu0 0
  %201 = vmatprep.subr.bf16.mxu0 %v129
  %202 = vmatpush1.bf16.msra.mxu0 %v128
  %203 = vmatprep.subr.bf16.mxu0 %v125
  %204 = vmatpush1.bf16.msra.mxu0 %v124
  %205 = vmatprep.subr.bf16.mxu0 %v121
  %206 = vmatpush1.bf16.msra.mxu0 %v120
  %207 = vmatprep.subr.bf16.mxu0 %v117
  %208 = vmatpush1.bf16.msra.mxu0 %v116
  %209 = vmatprep.subr.bf16.mxu0 0
  %210 = vmatpush2.bf16.msra.mxu0 0
  %211 = vmatprep.subr.bf16.mxu0 0
  %212 = vmatpush2.bf16.msra.mxu0 0
  %213 = vmatprep.subr.bf16.mxu0 0
  %214 = vmatpush2.bf16.msra.mxu0 0
  %215 = vmatprep.subr.bf16.mxu0 0
  %216 = vmatpush2.bf16.msra.mxu0 0
  %217 = vmatprep.subr.bf16.mxu0 0
  %218 = vmatpush2.bf16.msra.mxu0 0
  %219 = vmatprep.subr.bf16.mxu0 0
  %220 = vmatpush2.bf16.msra.mxu0 0
  %221 = vmatprep.subr.bf16.mxu0 0
  %222 = vmatpush2.bf16.msra.mxu0 0
  %223 = vmatprep.subr.bf16.mxu0 0
  %224 = vmatpush2.bf16.msra.mxu0 0
  %225 = vmatprep.mubr.bf16.mxu0 0
  %226 = vmatmul.mubr.bf16.gmra.mxu0 %v148
  %v227 = vpop.f32.mrf.mxu0
  %v228 = vadd.f32 %v52, %v227
  %v229 = vpop.f32.mrf.mxu0
  %v230 = vadd.f32 %v56, %v229
  %v231 = vpop.f32.mrf.mxu0
  %v232 = vadd.f32 %v52, %v231
  %v233 = vpop.f32.mrf.mxu0
  %v234 = vadd.f32 %v56, %v233
  %235 = vdwg.mxu0
  %v236 = vmax.f32 %v185, 0.0
  %v237 = vmax.f32 %v187, 0.0
  %v238 = vmax.f32 %v228, 0.0
  %v239 = vmax.f32 %v230, 0.0
  %v240 = vmax.f32 %v189, 0.0
  %v241 = vmax.f32 %v191, 0.0
  %v242 = vmax.f32 %v232, 0.0
  %v243 = vmax.f32 %v234, 0.0
  %v244 = vpack.c.bf16 %v240, %v236
  %v245 = vpack.c.bf16 %v241, %v237
  %v246 = vpack.c.bf16 %v242, %v238
  %v247 = vpack.c.bf16 %v243, %v239
  %v248 = vld [vmem:[%s3] sm:$0xf]
  %v249 = vld [vmem:[%s3 + $0x4] sm:$0xf]
  %v250 = vld [vmem:[%s3 + $0x8] sm:$0xf]
  %v251 = vld [vmem:[%s3 + $0xc] sm:$0xf]
  %v252 = vld [vmem:[%s3 + $0x10] sm:$0xf]
  %v253 = vld [vmem:[%s3 + $0x14] sm:$0xf]
  %v254 = vld [vmem:[%s3 + $0x18] sm:$0xf]
  %v255 = vld [vmem:[%s3 + $0x1c] sm:$0xf]
  %v256 = vld [vmem:[%s3 + $0x20] sm:$0xf]
  %v257 = vld [vmem:[%s3 + $0x24] sm:$0xf]
  %v258 = vld [vmem:[%s3 + $0x28] sm:$0xf]
  %v259 = vld [vmem:[%s3 + $0x2c] sm:$0xf]
  %v260 = vld [vmem:[%s3 + $0x30] sm:$0xf]
  %v261 = vld [vmem:[%s3 + $0x34] sm:$0xf]
  %v262 = vld [vmem:[%s3 + $0x38] sm:$0xf]
  %v263 = vld [vmem:[%s3 + $0x3c] sm:$0xf]
  %v264 = vld [vmem:[%s3 + $0x40] sm:$0xf]
  %v265 = vld [vmem:[%s3 + $0x44] sm:$0xf]
  %v266 = vld [vmem:[%s3 + $0x48] sm:$0xf]
  %v267 = vld [vmem:[%s3 + $0x4c] sm:$0xf]
  %v268 = vld [vmem:[%s3 + $0x50] sm:$0xf]
  %v269 = vld [vmem:[%s3 + $0x54] sm:$0xf]
  %v270 = vld [vmem:[%s3 + $0x58] sm:$0xf]
  %v271 = vld [vmem:[%s3 + $0x5c] sm:$0xf]
  %v272 = vld [vmem:[%s3 + $0x60] sm:$0xf]
  %v273 = vld [vmem:[%s3 + $0x64] sm:$0xf]
  %v274 = vld [vmem:[%s3 + $0x68] sm:$0xf]
  %v275 = vld [vmem:[%s3 + $0x6c] sm:$0xf]
  %v276 = vld [vmem:[%s3 + $0x70] sm:$0xf]
  %v277 = vld [vmem:[%s3 + $0x74] sm:$0xf]
  %v278 = vld [vmem:[%s3 + $0x78] sm:$0xf]
  %v279 = vld [vmem:[%s3 + $0x7c] sm:$0xf]
  %v280 = vld [vmem:[%s3 + $0x80] sm:$0xf]
  %v281 = vld [vmem:[%s3 + $0x84] sm:$0xf]
  %v282 = vld [vmem:[%s3 + $0x88] sm:$0xf]
  %v283 = vld [vmem:[%s3 + $0x8c] sm:$0xf]
  %v284 = vld [vmem:[%s3 + $0x90] sm:$0xf]
  %v285 = vld [vmem:[%s3 + $0x94] sm:$0xf]
  %v286 = vld [vmem:[%s3 + $0x98] sm:$0xf]
  %v287 = vld [vmem:[%s3 + $0x9c] sm:$0xf]
  %v288 = vld [vmem:[%s3 + $0xa0] sm:$0xf]
  %v289 = vld [vmem:[%s3 + $0xa4] sm:$0xf]
  %v290 = vld [vmem:[%s3 + $0xa8] sm:$0xf]
  %v291 = vld [vmem:[%s3 + $0xac] sm:$0xf]
  %v292 = vld [vmem:[%s3 + $0xb0] sm:$0xf]
  %v293 = vld [vmem:[%s3 + $0xb4] sm:$0xf]
  %v294 = vld [vmem:[%s3 + $0xb8] sm:$0xf]
  %v295 = vld [vmem:[%s3 + $0xbc] sm:$0xf]
  %v296 = vld [vmem:[%s3 + $0xc0] sm:$0xf]
  %v297 = vld [vmem:[%s3 + $0xc4] sm:$0xf]
  %v298 = vld [vmem:[%s3 + $0xc8] sm:$0xf]
  %v299 = vld [vmem:[%s3 + $0xcc] sm:$0xf]
  %v300 = vld [vmem:[%s3 + $0xd0] sm:$0xf]
  %v301 = vld [vmem:[%s3 + $0xd4] sm:$0xf]
  %v302 = vld [vmem:[%s3 + $0xd8] sm:$0xf]
  %v303 = vld [vmem:[%s3 + $0xdc] sm:$0xf]
  %v304 = vld [vmem:[%s3 + $0xe0] sm:$0xf]
  %v305 = vld [vmem:[%s3 + $0xe4] sm:$0xf]
  %v306 = vld [vmem:[%s3 + $0xe8] sm:$0xf]
  %v307 = vld [vmem:[%s3 + $0xec] sm:$0xf]
  %v308 = vld [vmem:[%s3 + $0xf0] sm:$0xf]
  %v309 = vld [vmem:[%s3 + $0xf4] sm:$0xf]
  %v310 = vld [vmem:[%s3 + $0xf8] sm:$0xf]
  %v311 = vld [vmem:[%s3 + $0xfc] sm:$0xf]
  %v312 = vld [vmem:[%s4] sm:$0x1]
  %v314 = vlaneseq
  %v315 = vshrl.u32 %v314, 7
  %v316 = vsub.s32 0, %v315
  %v317 = vrot.slane %v312, %v316
  %v383 = vunpack.c.l.b16 %v248
  %v384 = vunpack.c.l.b16 %v249
  %v385 = vunpack.c.l.b16 %v250
  %v386 = vunpack.c.l.b16 %v251
  %v387 = vunpack.c.l.b16 %v252
  %v388 = vunpack.c.l.b16 %v253
  %v389 = vunpack.c.l.b16 %v254
  %v390 = vunpack.c.l.b16 %v255
  %v391 = vunpack.c.l.b16 %v256
  %v392 = vunpack.c.l.b16 %v257
  %v393 = vunpack.c.l.b16 %v258
  %v394 = vunpack.c.l.b16 %v259
  %v395 = vunpack.c.l.b16 %v260
  %v396 = vunpack.c.l.b16 %v261
  %v397 = vunpack.c.l.b16 %v262
  %v398 = vunpack.c.l.b16 %v263
  %v399 = vunpack.c.l.b16 %v264
  %v400 = vunpack.c.l.b16 %v265
  %v401 = vunpack.c.l.b16 %v266
  %v402 = vunpack.c.l.b16 %v267
  %v403 = vunpack.c.l.b16 %v268
  %v404 = vunpack.c.l.b16 %v269
  %v405 = vunpack.c.l.b16 %v270
  %v406 = vunpack.c.l.b16 %v271
  %v407 = vunpack.c.l.b16 %v272
  %v408 = vunpack.c.l.b16 %v273
  %v409 = vunpack.c.l.b16 %v274
  %v410 = vunpack.c.l.b16 %v275
  %v411 = vunpack.c.l.b16 %v276
  %v412 = vunpack.c.l.b16 %v277
  %v413 = vunpack.c.l.b16 %v278
  %v414 = vunpack.c.l.b16 %v279
  %v415 = vunpack.c.l.b16 %v280
  %v416 = vunpack.c.l.b16 %v281
  %v417 = vunpack.c.l.b16 %v282
  %v418 = vunpack.c.l.b16 %v283
  %v419 = vunpack.c.l.b16 %v284
  %v420 = vunpack.c.l.b16 %v285
  %v421 = vunpack.c.l.b16 %v286
  %v422 = vunpack.c.l.b16 %v287
  %v423 = vunpack.c.l.b16 %v288
  %v424 = vunpack.c.l.b16 %v289
  %v425 = vunpack.c.l.b16 %v290
  %v426 = vunpack.c.l.b16 %v291
  %v427 = vunpack.c.l.b16 %v292
  %v428 = vunpack.c.l.b16 %v293
  %v429 = vunpack.c.l.b16 %v294
  %v430 = vunpack.c.l.b16 %v295
  %v431 = vunpack.c.l.b16 %v296
  %v432 = vunpack.c.l.b16 %v297
  %v433 = vunpack.c.l.b16 %v298
  %v434 = vunpack.c.l.b16 %v299
  %v435 = vunpack.c.l.b16 %v300
  %v436 = vunpack.c.l.b16 %v301
  %v437 = vunpack.c.l.b16 %v302
  %v438 = vunpack.c.l.b16 %v303
  %v439 = vunpack.c.l.b16 %v304
  %v440 = vunpack.c.l.b16 %v305
  %v441 = vunpack.c.l.b16 %v306
  %v442 = vunpack.c.l.b16 %v307
  %v443 = vunpack.c.l.b16 %v308
  %v444 = vunpack.c.l.b16 %v309
  %v445 = vunpack.c.l.b16 %v310
  %v446 = vunpack.c.l.b16 %v311
  %v447 = vpack.c.b16 %v384, %v383
  %v448 = vpack.c.b16 %v386, %v385
  %v449 = vpack.c.b16 %v388, %v387
  %v450 = vpack.c.b16 %v390, %v389
  %v451 = vpack.c.b16 %v392, %v391
  %v452 = vpack.c.b16 %v394, %v393
  %v453 = vpack.c.b16 %v396, %v395
  %v454 = vpack.c.b16 %v398, %v397
  %v455 = vpack.c.b16 %v400, %v399
  %v456 = vpack.c.b16 %v402, %v401
  %v457 = vpack.c.b16 %v404, %v403
  %v458 = vpack.c.b16 %v406, %v405
  %v459 = vpack.c.b16 %v408, %v407
  %v460 = vpack.c.b16 %v410, %v409
  %v461 = vpack.c.b16 %v412, %v411
  %v462 = vpack.c.b16 %v414, %v413
  %v463 = vpack.c.b16 %v416, %v415
  %v464 = vpack.c.b16 %v418, %v417
  %v465 = vpack.c.b16 %v420, %v419
  %v466 = vpack.c.b16 %v422, %v421
  %v467 = vpack.c.b16 %v424, %v423
  %v468 = vpack.c.b16 %v426, %v425
  %v469 = vpack.c.b16 %v428, %v427
  %v470 = vpack.c.b16 %v430, %v429
  %v471 = vpack.c.b16 %v432, %v431
  %v472 = vpack.c.b16 %v434, %v433
  %v473 = vpack.c.b16 %v436, %v435
  %v474 = vpack.c.b16 %v438, %v437
  %v475 = vpack.c.b16 %v440, %v439
  %v476 = vpack.c.b16 %v442, %v441
  %v477 = vpack.c.b16 %v444, %v443
  %v478 = vpack.c.b16 %v446, %v445
  %511 = vmatprep.subr.bf16.mxu0 0
  %512 = vmatpush1.bf16.msra.mxu0 %v454
  %513 = vmatprep.subr.bf16.mxu0 0
  %514 = vmatpush1.bf16.msra.mxu0 %v453
  %515 = vmatprep.subr.bf16.mxu0 0
  %516 = vmatpush1.bf16.msra.mxu0 %v452
  %517 = vmatprep.subr.bf16.mxu0 0
  %518 = vmatpush1.bf16.msra.mxu0 %v451
  %519 = vmatprep.subr.bf16.mxu0 0
  %520 = vmatpush1.bf16.msra.mxu0 %v450
  %521 = vmatprep.subr.bf16.mxu0 0
  %522 = vmatpush1.bf16.msra.mxu0 %v449
  %523 = vmatprep.subr.bf16.mxu0 0
  %524 = vmatpush1.bf16.msra.mxu0 %v448
  %525 = vmatprep.subr.bf16.mxu0 0
  %526 = vmatpush1.bf16.msra.mxu0 %v447
  %527 = vmatprep.subr.bf16.mxu0 0
  %528 = vmatpush2.bf16.msra.mxu0 %v462
  %529 = vmatprep.subr.bf16.mxu0 0
  %530 = vmatpush2.bf16.msra.mxu0 %v461
  %531 = vmatprep.subr.bf16.mxu0 0
  %532 = vmatpush2.bf16.msra.mxu0 %v460
  %533 = vmatprep.subr.bf16.mxu0 0
  %534 = vmatpush2.bf16.msra.mxu0 %v459
  %535 = vmatprep.subr.bf16.mxu0 0
  %536 = vmatpush2.bf16.msra.mxu0 %v458
  %537 = vmatprep.subr.bf16.mxu0 0
  %538 = vmatpush2.bf16.msra.mxu0 %v457
  %539 = vmatprep.subr.bf16.mxu0 0
  %540 = vmatpush2.bf16.msra.mxu0 %v456
  %541 = vmatprep.subr.bf16.mxu0 0
  %542 = vmatpush2.bf16.msra.mxu0 %v455
  %543 = vmatprep.mubr.bf16.mxu0 %v245
  %544 = vmatmul.mubr.bf16.gmra.mxu0 %v244
  %v545 = vpop.f32.mrf.mxu0
  %v546 = vadd.f32 %v317, %v545
  %v547 = vpop.f32.mrf.mxu0
  %v548 = vpop.f32.mrf.mxu0
  %v549 = vadd.f32 %v317, %v548
  %v550 = vpop.f32.mrf.mxu0
  %551 = vdwg.mxu0
  %552 = vmatprep.subr.bf16.mxu0 0
  %553 = vmatpush1.bf16.msra.mxu0 %v470
  %554 = vmatprep.subr.bf16.mxu0 0
  %555 = vmatpush1.bf16.msra.mxu0 %v469
  %556 = vmatprep.subr.bf16.mxu0 0
  %557 = vmatpush1.bf16.msra.mxu0 %v468
  %558 = vmatprep.subr.bf16.mxu0 0
  %559 = vmatpush1.bf16.msra.mxu0 %v467
  %560 = vmatprep.subr.bf16.mxu0 0
  %561 = vmatpush1.bf16.msra.mxu0 %v466
  %562 = vmatprep.subr.bf16.mxu0 0
  %563 = vmatpush1.bf16.msra.mxu0 %v465
  %564 = vmatprep.subr.bf16.mxu0 0
  %565 = vmatpush1.bf16.msra.mxu0 %v464
  %566 = vmatprep.subr.bf16.mxu0 0
  %567 = vmatpush1.bf16.msra.mxu0 %v463
  %568 = vmatprep.subr.bf16.mxu0 0
  %569 = vmatpush2.bf16.msra.mxu0 %v478
  %570 = vmatprep.subr.bf16.mxu0 0
  %571 = vmatpush2.bf16.msra.mxu0 %v477
  %572 = vmatprep.subr.bf16.mxu0 0
  %573 = vmatpush2.bf16.msra.mxu0 %v476
  %574 = vmatprep.subr.bf16.mxu0 0
  %575 = vmatpush2.bf16.msra.mxu0 %v475
  %576 = vmatprep.subr.bf16.mxu0 0
  %577 = vmatpush2.bf16.msra.mxu0 %v474
  %578 = vmatprep.subr.bf16.mxu0 0
  %579 = vmatpush2.bf16.msra.mxu0 %v473
  %580 = vmatprep.subr.bf16.mxu0 0
  %581 = vmatpush2.bf16.msra.mxu0 %v472
  %582 = vmatprep.subr.bf16.mxu0 0
  %583 = vmatpush2.bf16.msra.mxu0 %v471
  %584 = vmatprep.mubr.bf16.mxu0 %v247
  %585 = vmatmul.mubr.bf16.gmra.mxu0 %v246
  %v586 = vpop.f32.mrf.mxu0
  %v587 = vadd.f32 %v546, %v586
  %v588 = vpop.f32.mrf.mxu0
  %v589 = vpop.f32.mrf.mxu0
  %v590 = vadd.f32 %v549, %v589
  %v591 = vpop.f32.mrf.mxu0
  %592 = vdwg.mxu0
  %vm593 = vcmask 48128
  %594 = vst.msk [vmem:[%s5] sm:$0xff] %vm593, %v587
  %595 = vst.msk [vmem:[%s5 + $0x8] sm:$0xff] %vm593, %v590
  // Predicated region
  $region22: #{nature_paper_conv_forward.7} parent=0 // pred_check
    _
  $region23: #{nature_paper_conv_forward.7} parent=0 // pred_check_branch
    %597 = sbr.rel (0) target = $region25
  $region24: #{nature_paper_conv_forward.7} parent=0 // pred_region
    _
  $region25: #{nature_paper_conv_forward.7} parent=0 // pred_fallthru
    _
  // Predicated region
  $region26: #{nature_paper_conv_forward.7} parent=0 // pred_check
    _
  $region27: #{nature_paper_conv_forward.7} parent=0 // pred_check_branch
    %599 = sbr.rel (0) target = $region29
  $region28: #{nature_paper_conv_forward.7} parent=0 // pred_region
    _
  $region29: #{nature_paper_conv_forward.7} parent=0 // pred_fallthru
    _

</llo_original>
